<compile_context>
chip_gen: v7x
topology: tpu7x:2x2x1
jax: 0.10.0
libtpu: 0.0.40
codegen_flags: <defaults>
</compile_context>

<pallas_src>
import jax
import jax.numpy as jnp
from jax.experimental import pallas as pl
from jax.experimental.pallas import tpu as pltpu


def _round_up(x, m):
    return ((x + m - 1) // m) * m


def _choose_lane_tile(n, target):
    """Pick a lane-axis tile (multiple of 128) for an extent n.

    Prefers >=2 grid steps when the padded extent allows it (feeds both v7x
    TensorCores) while targeting large (`target`) tiles so per-step overhead
    (~0.35us) and DMA efficiency stay good. Returns (tile, padded_extent)."""
    n_pad = _round_up(n, 128)
    if n_pad <= 128:
        return n_pad, n_pad
    n_tiles = max(2, pl.cdiv(n_pad, target))
    tile = min(_round_up(pl.cdiv(n_pad, n_tiles), 128), n_pad)
    return tile, _round_up(n_pad, tile)


# ----------------------------------------------------------------------------
# Pallas kernel 1: transposed matmul + bias + optional LeakyReLU(0.2)
#   out^T (Cout, M) = W (Cout, K) @ A^T (K, M)
#   * M = B*OH*OW sits on lanes; K / Cout padded only to 16 (sublane granule)
#   * bf16 MXU operands, f32 accumulation; result cast to the consumer dtype
# ----------------------------------------------------------------------------
def _make_matmul_t_kernel(activate):
    def kernel(w_ref, at_ref, bias_ref, o_ref):
        acc = jnp.dot(w_ref[...], at_ref[...], preferred_element_type=jnp.float32)
        acc = acc + bias_ref[...]                       # (Cp, 1) broadcast over lanes
        if activate:
            acc = jnp.where(acc > 0, acc, 0.2 * acc)    # LeakyReLU(0.2)
        o_ref[...] = acc.astype(o_ref.dtype)
    return kernel


def matmul_t_bias_act(w_mat, at, bias, activate, out_dtype):
    """w_mat: (Cout, K), at: (K, M), bias: (Cout,) -> (Cout, M) in out_dtype."""
    cout, k = w_mat.shape
    _, m = at.shape
    kp = _round_up(k, 16)
    cp = _round_up(cout, 16)
    tm, mp = _choose_lane_tile(m, 512)

    w_p = jnp.pad(w_mat.astype(jnp.bfloat16), ((0, cp - cout), (0, kp - k)))
    at_p = jnp.pad(at.astype(jnp.bfloat16), ((0, kp - k), (0, mp - m)))
    b_p = jnp.pad(bias.astype(jnp.float32), (0, cp - cout)).reshape(cp, 1)

    out = pl.pallas_call(
        _make_matmul_t_kernel(activate),
        out_shape=jax.ShapeDtypeStruct((cp, mp), out_dtype),
        grid=(mp // tm,),
        in_specs=[
            pl.BlockSpec((cp, kp), lambda i: (0, 0)),
            pl.BlockSpec((kp, tm), lambda i: (0, i)),
            pl.BlockSpec((cp, 1), lambda i: (0, 0)),
        ],
        out_specs=pl.BlockSpec((cp, tm), lambda i: (0, i)),
        compiler_params=pltpu.CompilerParams(dimension_semantics=("parallel",)),
    )(w_p, at_p, b_p)
    return out[:cout, :m]


# ----------------------------------------------------------------------------
# Convolutions (patch extraction in JAX, transposed matmul in Pallas)
# ----------------------------------------------------------------------------
def conv2d_cf(x, w, b, stride, padding, activate, out_dtype):
    """x: (Cin, B, H, W); w: (Cout, Cin, kh, kw) (PyTorch layout); zero padding."""
    # TODO(synk): im2col patches are still materialized by XLA; a fully fused
    # Pallas conv (spatial output tile + halo input block) would remove it.
    cin, bsz, h, wdt = x.shape
    cout, _, kh, kw = w.shape
    xp = jnp.pad(x, ((0, 0), (0, 0), (padding, padding), (padding, padding)))
    oh = (h + 2 * padding - kh) // stride + 1
    ow = (wdt + 2 * padding - kw) // stride + 1
    blocks = [xp[:, :, ky:ky + stride * oh:stride, kx:kx + stride * ow:stride]
              for ky in range(kh) for kx in range(kw)]
    at = jnp.concatenate(blocks, axis=0).reshape(kh * kw * cin, bsz * oh * ow)
    wm = w.transpose(0, 2, 3, 1).reshape(cout, kh * kw * cin)
    out = matmul_t_bias_act(wm, at, b, activate, out_dtype)
    return out.reshape(cout, bsz, oh, ow)


def conv_transpose2d_cf(x, w, b, activate, out_dtype):
    """PyTorch ConvTranspose2d(k=3, stride=2, padding=1, output_padding=1) via
    the 4-parity fractionally-strided decomposition (one matmul, K = 4*Cin).
    x: (Cin, B, H, W); w: (Cin, Cout, 3, 3) -> (Cout, B, 2H, 2W)."""
    cin, bsz, h, wdt = x.shape
    _, cout, kh, kw = w.shape
    xp = jnp.pad(x, ((0, 0), (0, 0), (0, 1), (0, 1)))   # bottom/right halo
    taps = [xp[:, :, dy:dy + h, dx:dx + wdt]
            for dy, dx in ((0, 0), (0, 1), (1, 0), (1, 1))]
    at = jnp.concatenate(taps, axis=0).reshape(4 * cin, bsz * h * wdt)

    def wblk(a, bb):                                    # (Cout, Cin)
        return w[:, :, a, bb].T
    zero = jnp.zeros((cout, cin), w.dtype)
    # rows: output parity planes [ee, eo, oe, oo];
    # cols: taps [x(p,q), x(p,q+1), x(p+1,q), x(p+1,q+1)]
    wm = jnp.block([
        [wblk(1, 1), zero,       zero,       zero      ],
        [wblk(1, 2), wblk(1, 0), zero,       zero      ],
        [wblk(2, 1), zero,       wblk(0, 1), zero      ],
        [wblk(2, 2), wblk(2, 0), wblk(0, 2), wblk(0, 0)],
    ])
    bias4 = jnp.tile(b, 4)
    out = matmul_t_bias_act(wm, at, bias4, activate, out_dtype)   # (4*Cout, B*H*W)
    ee, eo, oe, oo = out.reshape(4, cout, bsz, h, wdt)
    top = jnp.stack([ee, eo], axis=-1).reshape(cout, bsz, h, 2 * wdt)
    bot = jnp.stack([oe, oo], axis=-1).reshape(cout, bsz, h, 2 * wdt)
    return jnp.stack([top, bot], axis=-2).reshape(cout, bsz, 2 * h, 2 * wdt)


# ----------------------------------------------------------------------------
# Pallas kernel 2: fused bilinear weights + 4-tap blend (grid_pull / resize /
# scaling-and-squaring). Taps are packed into ONE (B, 4, C, N) stream and the
# fractional weights are computed on-chip from the raw coordinates.
# ----------------------------------------------------------------------------
def _pull_blend_kernel(taps_ref, coord_ref, o_ref):
    cy = coord_ref[0, 0:1, :]                           # (1, tn)
    cx = coord_ref[0, 1:2, :]
    wy = cy - jnp.floor(cy)
    wx = cx - jnp.floor(cx)
    v00 = taps_ref[0, 0, :, :]                          # (C, tn)
    v01 = taps_ref[0, 1, :, :]
    v10 = taps_ref[0, 2, :, :]
    v11 = taps_ref[0, 3, :, :]
    top = v00 + wx * (v01 - v00)
    bot = v10 + wx * (v11 - v10)
    o_ref[0, :, :] = top + wy * (bot - top)


def _bilinear_blend(taps, coords):
    """taps: (B, 4, C, N) f32 (tap order v00,v01,v10,v11); coords: (B, 2, N)
    f32 (row 0 = y, row 1 = x voxel coordinates) -> (B, C, N) f32."""
    bsz, _, c, n = taps.shape
    tn, n_pad = _choose_lane_tile(n, 1024)
    taps_p = jnp.pad(taps, ((0, 0), (0, 0), (0, 0), (0, n_pad - n)))
    coords_p = jnp.pad(coords, ((0, 0), (0, 0), (0, n_pad - n)))
    out = pl.pallas_call(
        _pull_blend_kernel,
        out_shape=jax.ShapeDtypeStruct((bsz, c, n_pad), jnp.float32),
        grid=(bsz, n_pad // tn),
        in_specs=[
            pl.BlockSpec((1, 4, c, tn), lambda b, j: (b, 0, 0, j)),
            pl.BlockSpec((1, 2, tn), lambda b, j: (b, 0, j)),
        ],
        out_specs=pl.BlockSpec((1, c, tn), lambda b, j: (b, 0, j)),
        compiler_params=pltpu.CompilerParams(
            dimension_semantics=("parallel", "parallel")),
    )(taps_p, coords_p)
    return out[:, :, :n]


def _bound_index(idx, n, bound):
    if bound == 'dft':                                  # circular / wrap
        return jnp.mod(idx, n)
    # 'dct2' reflect (Neumann, symmetric with edge duplication)
    m = jnp.mod(idx, 2 * n)
    return jnp.where(m >= n, 2 * n - 1 - m, m)


def _pull_coords(x, coords, bound):
    """x: (B, C, Hin, Win); coords: (B, 2, Nout) voxel coords (y, x).
    4-tap bilinear interpolation, O(4*Nout). Returns (B, C, Nout) f32."""
    bsz, c, hin, win = x.shape
    nout = coords.shape[-1]
    y0 = jnp.floor(coords[:, 0, :]).astype(jnp.int32)   # (B, Nout)
    x0 = jnp.floor(coords[:, 1, :]).astype(jnp.int32)
    idx = []
    for dy in (0, 1):
        for dx in (0, 1):
            yy = _bound_index(y0 + dy, hin, bound)
            xx = _bound_index(x0 + dx, win, bound)
            idx.append(yy * win + xx)
    idx = jnp.stack(idx, axis=1)                        # (B, 4, Nout)
    # TODO(synk): the data-dependent 4-tap gather stays in XLA (no robust
    # general gather in Pallas TPU); it is one stacked gather of exactly the
    # O(4*Nout) values the blend kernel consumes.
    x_flat = x.astype(jnp.float32).reshape(bsz, c, hin * win)
    idx_g = jnp.broadcast_to(idx.reshape(bsz, 1, 4 * nout), (bsz, c, 4 * nout))
    taps = jnp.take_along_axis(x_flat, idx_g, axis=2)
    taps = taps.reshape(bsz, c, 4, nout).transpose(0, 2, 1, 3)   # (B, 4, C, N)
    return _bilinear_blend(taps, coords.astype(jnp.float32))


# ----------------------------------------------------------------------------
# Spatial helpers (resize, scaling-and-squaring exponentiation)
# ----------------------------------------------------------------------------
def identity_grid_cf(h, w):
    yy, xx = jnp.meshgrid(jnp.arange(h, dtype=jnp.float32),
                          jnp.arange(w, dtype=jnp.float32), indexing='ij')
    return jnp.stack([yy, xx], axis=0)                  # (2, h, w)


def resize_field_cf(field, out_shape, bound):
    """Resize a (B, 2, Hin, Win) grid/displacement field to out_shape and
    rescale the values to output-voxel units ('centers' anchor)."""
    # TODO(synk): nitorch's resize_grid rescales by the exact user factor; we
    # use the align-corners ratio (n_out-1)/(n_in-1) (close but not bit-exact)
    # and apply the same value rescaling to 'grid' and 'displacement' types.
    bsz, d, hin, win = field.shape
    hout, wout = out_shape
    sy = (hin - 1) / max(hout - 1, 1)
    sx = (win - 1) / max(wout - 1, 1)
    yy, xx = jnp.meshgrid(jnp.arange(hout, dtype=jnp.float32) * sy,
                          jnp.arange(wout, dtype=jnp.float32) * sx, indexing='ij')
    coords = jnp.stack([yy, xx], axis=0).reshape(1, 2, hout * wout)
    coords = jnp.broadcast_to(coords, (bsz, 2, hout * wout))
    out = _pull_coords(field, coords, bound).reshape(bsz, d, hout, wout)
    scale = jnp.array([(hout - 1) / max(hin - 1, 1),
                       (wout - 1) / max(win - 1, 1)], jnp.float32)
    return out * scale.reshape(1, 2, 1, 1)


def exp_velocity(vel_small, steps=8):
    """Scaling-and-squaring exponentiation of a stationary velocity field.
    vel_small: (B, 2, h, w) displacement -> transformation grid (B, 2, h, w)."""
    # TODO(synk): nitorch guesses `steps` from the velocity magnitude when
    # steps=None; we fix steps=8.
    bsz, _, h, w = vel_small.shape
    d = vel_small / (2.0 ** steps)
    idg = identity_grid_cf(h, w)[None]                  # (1, 2, h, w)
    for _ in range(steps):
        coords = (idg + d).reshape(bsz, 2, h * w)
        pulled = _pull_coords(d, coords, bound='dft')   # (B, 2, h*w)
        d = d + pulled.reshape(bsz, 2, h, w)
    return idg + d


# ----------------------------------------------------------------------------
# VoxelMorph forward
# ----------------------------------------------------------------------------
def init_params(key, dim=2, in_ch=2, enc=(8, 16), dec=(16, 8), k=3):
    """Deterministic synthetic parameters (He-style scaled normals, zero bias)."""
    keys = jax.random.split(key, 8)
    def conv_w(kk, cout, cin):
        fan = cin * k * k
        return jax.random.normal(kk, (cout, cin, k, k), jnp.float32) / jnp.sqrt(fan)
    def convT_w(kk, cin, cout):
        fan = cin * k * k
        return jax.random.normal(kk, (cin, cout, k, k), jnp.float32) / jnp.sqrt(fan)
    p = {}
    p['e1_w'] = conv_w(keys[0], enc[0], in_ch);            p['e1_b'] = jnp.zeros((enc[0],))
    p['e2_w'] = conv_w(keys[1], enc[1], enc[0]);           p['e2_b'] = jnp.zeros((enc[1],))
    p['d1_w'] = convT_w(keys[2], enc[1], dec[0]);          p['d1_b'] = jnp.zeros((dec[0],))
    p['d2_w'] = convT_w(keys[3], dec[0] + enc[0], dec[1]); p['d2_b'] = jnp.zeros((dec[1],))
    # final conv -> velocity (small init so the flow stays well-behaved)
    p['f_w'] = conv_w(keys[4], dim, dec[1] + in_ch) * 0.05
    p['f_b'] = jnp.zeros((dim,))
    return p


def unet(params, x):
    """Fully-convolutional UNet (strided convs / transposed convs, LeakyReLU 0.2).
    x: (2C, B, H, W) -> velocity (dim, B, H, W) float32."""
    # TODO(synk): nitorch's UNet defaults (encoder=[16,32,32,32], extra decoder
    # stacks) are reduced here to a structurally faithful encoder/decoder.
    bf16 = jnp.bfloat16
    e1 = conv2d_cf(x, params['e1_w'], params['e1_b'], 2, 1, True, bf16)
    e2 = conv2d_cf(e1, params['e2_w'], params['e2_b'], 2, 1, True, bf16)
    d1 = conv_transpose2d_cf(e2, params['d1_w'], params['d1_b'], True, bf16)
    d1 = jnp.concatenate([d1, e1], axis=0)
    d2 = conv_transpose2d_cf(d1, params['d2_w'], params['d2_b'], True, bf16)
    d2 = jnp.concatenate([d2, x.astype(bf16)], axis=0)
    # precision-sensitive flow conv writes f32
    vel = conv2d_cf(d2, params['f_w'], params['f_b'], 1, 1, False, jnp.float32)
    return vel


def voxelmorph_forward(params, source, target, downsample_velocity=2):
    """source, target: (B, C, H, W). Returns (deformed_source, velocity)."""
    bsz, c, h, w = source.shape
    x = jnp.concatenate([source, target], axis=1)        # (B, 2C, H, W)
    vel_cf = unet(params, x.transpose(1, 0, 2, 3))       # (2, B, H, W)
    velocity = vel_cf.transpose(1, 2, 3, 0)              # channel2last: (B, H, W, 2)
    vel_b2hw = vel_cf.transpose(1, 0, 2, 3)              # (B, 2, H, W)

    # self.exp(velocity): downsample vel -> integrate -> upsample grid
    small = (h // downsample_velocity, w // downsample_velocity)
    vel_small = resize_field_cf(vel_b2hw, small, bound='dft')
    grid_small = exp_velocity(vel_small, steps=8)        # transformation grid
    grid = resize_field_cf(grid_small, (h, w), bound='dft')

    # GridPull(image_bound='dct2', linear, extrapolate)
    deformed = _pull_coords(source, grid.reshape(bsz, 2, h * w), bound='dct2')
    return deformed.reshape(bsz, c, h, w), velocity


if __name__ == "__main__":
    key = jax.random.PRNGKey(0)
    kp, ks, kt = jax.random.split(key, 3)
    B, C, H, W = 2, 1, 16, 16
    source = jax.random.normal(ks, (B, C, H, W), jnp.float32)
    target = jax.random.normal(kt, (B, C, H, W), jnp.float32)
    params = init_params(kp, dim=2, in_ch=2 * C)

    fwd = jax.jit(voxelmorph_forward)
    deformed, velocity = fwd(params, source, target)
    jax.block_until_ready((deformed, velocity))

    assert deformed.shape == (B, C, H, W)
    assert velocity.shape == (B, H, W, 2)
    assert bool(jnp.isfinite(deformed).all()) and bool(jnp.isfinite(velocity).all())
    print("KERNEL_OK")
</pallas_src>

<mosaic_0001>
module attributes {stable_mosaic.version = 11 : i64} {
  func.func @kernel(%arg0: i32, %arg1: memref<16x32xbf16, #tpu.memory_space<vmem>>, %arg2: memref<32x128xbf16, #tpu.memory_space<vmem>>, %arg3: memref<16x1xf32, #tpu.memory_space<vmem>>, %arg4: memref<16x128xbf16, #tpu.memory_space<vmem>>) attributes {dimension_semantics = [#tpu.dimension_semantics<parallel>], iteration_bounds = array<i64: 1>, scalar_prefetch = 0 : i64, scratch_operands = 0 : i64, tpu.core_type = #tpu.core_type<tc>, window_params = [{pipeline_mode = #tpu.pipeline_mode<synchronous>, transform_indices = @transform_0, window_bounds = array<i64: 16, 32>}, {transform_indices = @transform_1, window_bounds = array<i64: 32, 128>}, {pipeline_mode = #tpu.pipeline_mode<synchronous>, transform_indices = @transform_2, window_bounds = array<i64: 16, 1>}, {transform_indices = @transform_3, window_bounds = array<i64: 16, 128>}]} {
    %c0 = arith.constant 0 : index
    %c0_0 = arith.constant 0 : index
    %0 = vector.load %arg1[%c0, %c0_0] : memref<16x32xbf16, #tpu.memory_space<vmem>>, vector<16x32xbf16>
    %c0_1 = arith.constant 0 : index
    %c0_2 = arith.constant 0 : index
    %1 = vector.load %arg2[%c0_1, %c0_2] : memref<32x128xbf16, #tpu.memory_space<vmem>>, vector<32x128xbf16>
    %cst = arith.constant dense<0.000000e+00> : vector<16x128xf32>
    %2 = tpu.matmul %0, %1, %cst {dimension_numbers = #tpu.dot_dimension_numbers<[1], [0], [0], [1], [0, 0, 1, 1], [], []>} : vector<16x32xbf16>, vector<32x128xbf16>, vector<16x128xf32> -> vector<16x128xf32>
    %c0_3 = arith.constant 0 : index
    %c0_4 = arith.constant 0 : index
    %3 = vector.load %arg3[%c0_3, %c0_4] : memref<16x1xf32, #tpu.memory_space<vmem>>, vector<16x1xf32>
    %4 = vector.broadcast %3 : vector<16x1xf32> to vector<16x128xf32>
    %5 = arith.addf %2, %4 : vector<16x128xf32>
    %cst_5 = arith.constant 0.000000e+00 : f32
    %6 = vector.broadcast %cst_5 : f32 to vector<16x128xf32>
    %7 = arith.cmpf ogt, %5, %6 : vector<16x128xf32>
    %cst_6 = arith.constant 2.000000e-01 : f32
    %8 = vector.broadcast %cst_6 : f32 to vector<16x128xf32>
    %9 = arith.mulf %8, %5 : vector<16x128xf32>
    %10 = arith.select %7, %5, %9 : vector<16x128xi1>, vector<16x128xf32>
    %11 = arith.truncf %10 : vector<16x128xf32> to vector<16x128xbf16>
    %c0_7 = arith.constant 0 : index
    %c0_8 = arith.constant 0 : index
    %12 = vector.load %arg4[%c0_7, %c0_8] : memref<16x128xbf16, #tpu.memory_space<vmem>>, vector<16x128xbf16>
    tpu.vector_store %arg4[%c0_7, %c0_8], %11 {strides = array<i32>} : memref<16x128xbf16, #tpu.memory_space<vmem>>, vector<16x128xbf16>,
    return
  }
  func.func @transform_0(%arg0: i32) -> (i32, i32) {
    %c0_i32 = arith.constant 0 : i32
    %c0_i32_0 = arith.constant 0 : i32
    %c0_i32_1 = arith.constant 0 : i32
    return %c0_i32, %c0_i32_0 : i32, i32
  }
  func.func @transform_1(%arg0: i32) -> (i32, i32) {
    %c0_i32 = arith.constant 0 : i32
    %c0_i32_0 = arith.constant 0 : i32
    return %c0_i32, %arg0 : i32, i32
  }
  func.func @transform_2(%arg0: i32) -> (i32, i32) {
    %c0_i32 = arith.constant 0 : i32
    %c0_i32_0 = arith.constant 0 : i32
    %c0_i32_1 = arith.constant 0 : i32
    return %c0_i32, %c0_i32_0 : i32, i32
  }
  func.func @transform_3(%arg0: i32) -> (i32, i32) {
    %c0_i32 = arith.constant 0 : i32
    %c0_i32_0 = arith.constant 0 : i32
    return %c0_i32, %arg0 : i32, i32
  }
}

module attributes {stable_mosaic.version = 11 : i64} {
  func.func @kernel(%arg0: i32, %arg1: memref<16x80xbf16, #tpu.memory_space<vmem>>, %arg2: memref<80x128xbf16, #tpu.memory_space<vmem>>, %arg3: memref<16x1xf32, #tpu.memory_space<vmem>>, %arg4: memref<16x128xbf16, #tpu.memory_space<vmem>>) attributes {dimension_semantics = [#tpu.dimension_semantics<parallel>], iteration_bounds = array<i64: 1>, scalar_prefetch = 0 : i64, scratch_operands = 0 : i64, tpu.core_type = #tpu.core_type<tc>, window_params = [{pipeline_mode = #tpu.pipeline_mode<synchronous>, transform_indices = @transform_0, window_bounds = array<i64: 16, 80>}, {transform_indices = @transform_1, window_bounds = array<i64: 80, 128>}, {pipeline_mode = #tpu.pipeline_mode<synchronous>, transform_indices = @transform_2, window_bounds = array<i64: 16, 1>}, {transform_indices = @transform_3, window_bounds = array<i64: 16, 128>}]} {
    %c0 = arith.constant 0 : index
    %c0_0 = arith.constant 0 : index
    %0 = vector.load %arg1[%c0, %c0_0] : memref<16x80xbf16, #tpu.memory_space<vmem>>, vector<16x80xbf16>
    %c0_1 = arith.constant 0 : index
    %c0_2 = arith.constant 0 : index
    %1 = vector.load %arg2[%c0_1, %c0_2] : memref<80x128xbf16, #tpu.memory_space<vmem>>, vector<80x128xbf16>
    %cst = arith.constant dense<0.000000e+00> : vector<16x128xf32>
    %2 = tpu.matmul %0, %1, %cst {dimension_numbers = #tpu.dot_dimension_numbers<[1], [0], [0], [1], [0, 0, 1, 1], [], []>} : vector<16x80xbf16>, vector<80x128xbf16>, vector<16x128xf32> -> vector<16x128xf32>
    %c0_3 = arith.constant 0 : index
    %c0_4 = arith.constant 0 : index
    %3 = vector.load %arg3[%c0_3, %c0_4] : memref<16x1xf32, #tpu.memory_space<vmem>>, vector<16x1xf32>
    %4 = vector.broadcast %3 : vector<16x1xf32> to vector<16x128xf32>
    %5 = arith.addf %2, %4 : vector<16x128xf32>
    %cst_5 = arith.constant 0.000000e+00 : f32
    %6 = vector.broadcast %cst_5 : f32 to vector<16x128xf32>
    %7 = arith.cmpf ogt, %5, %6 : vector<16x128xf32>
    %cst_6 = arith.constant 2.000000e-01 : f32
    %8 = vector.broadcast %cst_6 : f32 to vector<16x128xf32>
    %9 = arith.mulf %8, %5 : vector<16x128xf32>
    %10 = arith.select %7, %5, %9 : vector<16x128xi1>, vector<16x128xf32>
    %11 = arith.truncf %10 : vector<16x128xf32> to vector<16x128xbf16>
    %c0_7 = arith.constant 0 : index
    %c0_8 = arith.constant 0 : index
    %12 = vector.load %arg4[%c0_7, %c0_8] : memref<16x128xbf16, #tpu.memory_space<vmem>>, vector<16x128xbf16>
    tpu.vector_store %arg4[%c0_7, %c0_8], %11 {strides = array<i32>} : memref<16x128xbf16, #tpu.memory_space<vmem>>, vector<16x128xbf16>,
    return
  }
  func.func @transform_0(%arg0: i32) -> (i32, i32) {
    %c0_i32 = arith.constant 0 : i32
    %c0_i32_0 = arith.constant 0 : i32
    %c0_i32_1 = arith.constant 0 : i32
    return %c0_i32, %c0_i32_0 : i32, i32
  }
  func.func @transform_1(%arg0: i32) -> (i32, i32) {
    %c0_i32 = arith.constant 0 : i32
    %c0_i32_0 = arith.constant 0 : i32
    return %c0_i32, %arg0 : i32, i32
  }
  func.func @transform_2(%arg0: i32) -> (i32, i32) {
    %c0_i32 = arith.constant 0 : i32
    %c0_i32_0 = arith.constant 0 : i32
    %c0_i32_1 = arith.constant 0 : i32
    return %c0_i32, %c0_i32_0 : i32, i32
  }
  func.func @transform_3(%arg0: i32) -> (i32, i32) {
    %c0_i32 = arith.constant 0 : i32
    %c0_i32_0 = arith.constant 0 : i32
    return %c0_i32, %arg0 : i32, i32
  }
}

module attributes {stable_mosaic.version = 11 : i64} {
  func.func @kernel(%arg0: i32, %arg1: memref<64x64xbf16, #tpu.memory_space<vmem>>, %arg2: memref<64x128xbf16, #tpu.memory_space<vmem>>, %arg3: memref<64x1xf32, #tpu.memory_space<vmem>>, %arg4: memref<64x128xbf16, #tpu.memory_space<vmem>>) attributes {dimension_semantics = [#tpu.dimension_semantics<parallel>], iteration_bounds = array<i64: 1>, scalar_prefetch = 0 : i64, scratch_operands = 0 : i64, tpu.core_type = #tpu.core_type<tc>, window_params = [{pipeline_mode = #tpu.pipeline_mode<synchronous>, transform_indices = @transform_0, window_bounds = array<i64: 64, 64>}, {transform_indices = @transform_1, window_bounds = array<i64: 64, 128>}, {pipeline_mode = #tpu.pipeline_mode<synchronous>, transform_indices = @transform_2, window_bounds = array<i64: 64, 1>}, {transform_indices = @transform_3, window_bounds = array<i64: 64, 128>}]} {
    %c0 = arith.constant 0 : index
    %c0_0 = arith.constant 0 : index
    %0 = vector.load %arg1[%c0, %c0_0] : memref<64x64xbf16, #tpu.memory_space<vmem>>, vector<64x64xbf16>
    %c0_1 = arith.constant 0 : index
    %c0_2 = arith.constant 0 : index
    %1 = vector.load %arg2[%c0_1, %c0_2] : memref<64x128xbf16, #tpu.memory_space<vmem>>, vector<64x128xbf16>
    %cst = arith.constant dense<0.000000e+00> : vector<64x128xf32>
    %2 = tpu.matmul %0, %1, %cst {dimension_numbers = #tpu.dot_dimension_numbers<[1], [0], [0], [1], [0, 0, 1, 1], [], []>} : vector<64x64xbf16>, vector<64x128xbf16>, vector<64x128xf32> -> vector<64x128xf32>
    %c0_3 = arith.constant 0 : index
    %c0_4 = arith.constant 0 : index
    %3 = vector.load %arg3[%c0_3, %c0_4] : memref<64x1xf32, #tpu.memory_space<vmem>>, vector<64x1xf32>
    %4 = vector.broadcast %3 : vector<64x1xf32> to vector<64x128xf32>
    %5 = arith.addf %2, %4 : vector<64x128xf32>
    %cst_5 = arith.constant 0.000000e+00 : f32
    %6 = vector.broadcast %cst_5 : f32 to vector<64x128xf32>
    %7 = arith.cmpf ogt, %5, %6 : vector<64x128xf32>
    %cst_6 = arith.constant 2.000000e-01 : f32
    %8 = vector.broadcast %cst_6 : f32 to vector<64x128xf32>
    %9 = arith.mulf %8, %5 : vector<64x128xf32>
    %10 = arith.select %7, %5, %9 : vector<64x128xi1>, vector<64x128xf32>
    %11 = arith.truncf %10 : vector<64x128xf32> to vector<64x128xbf16>
    %c0_7 = arith.constant 0 : index
    %c0_8 = arith.constant 0 : index
    %12 = vector.load %arg4[%c0_7, %c0_8] : memref<64x128xbf16, #tpu.memory_space<vmem>>, vector<64x128xbf16>
    tpu.vector_store %arg4[%c0_7, %c0_8], %11 {strides = array<i32>} : memref<64x128xbf16, #tpu.memory_space<vmem>>, vector<64x128xbf16>,
    return
  }
  func.func @transform_0(%arg0: i32) -> (i32, i32) {
    %c0_i32 = arith.constant 0 : i32
    %c0_i32_0 = arith.constant 0 : i32
    %c0_i32_1 = arith.constant 0 : i32
    return %c0_i32, %c0_i32_0 : i32, i32
  }
  func.func @transform_1(%arg0: i32) -> (i32, i32) {
    %c0_i32 = arith.constant 0 : i32
    %c0_i32_0 = arith.constant 0 : i32
    return %c0_i32, %arg0 : i32, i32
  }
  func.func @transform_2(%arg0: i32) -> (i32, i32) {
    %c0_i32 = arith.constant 0 : i32
    %c0_i32_0 = arith.constant 0 : i32
    %c0_i32_1 = arith.constant 0 : i32
    return %c0_i32, %c0_i32_0 : i32, i32
  }
  func.func @transform_3(%arg0: i32) -> (i32, i32) {
    %c0_i32 = arith.constant 0 : i32
    %c0_i32_0 = arith.constant 0 : i32
    return %c0_i32, %arg0 : i32, i32
  }
}

module attributes {stable_mosaic.version = 11 : i64} {
  func.func @kernel(%arg0: i32, %arg1: memref<32x96xbf16, #tpu.memory_space<vmem>>, %arg2: memref<96x128xbf16, #tpu.memory_space<vmem>>, %arg3: memref<32x1xf32, #tpu.memory_space<vmem>>, %arg4: memref<32x128xbf16, #tpu.memory_space<vmem>>) attributes {dimension_semantics = [#tpu.dimension_semantics<parallel>], iteration_bounds = array<i64: 1>, scalar_prefetch = 0 : i64, scratch_operands = 0 : i64, tpu.core_type = #tpu.core_type<tc>, window_params = [{pipeline_mode = #tpu.pipeline_mode<synchronous>, transform_indices = @transform_0, window_bounds = array<i64: 32, 96>}, {transform_indices = @transform_1, window_bounds = array<i64: 96, 128>}, {pipeline_mode = #tpu.pipeline_mode<synchronous>, transform_indices = @transform_2, window_bounds = array<i64: 32, 1>}, {transform_indices = @transform_3, window_bounds = array<i64: 32, 128>}]} {
    %c0 = arith.constant 0 : index
    %c0_0 = arith.constant 0 : index
    %0 = vector.load %arg1[%c0, %c0_0] : memref<32x96xbf16, #tpu.memory_space<vmem>>, vector<32x96xbf16>
    %c0_1 = arith.constant 0 : index
    %c0_2 = arith.constant 0 : index
    %1 = vector.load %arg2[%c0_1, %c0_2] : memref<96x128xbf16, #tpu.memory_space<vmem>>, vector<96x128xbf16>
    %cst = arith.constant dense<0.000000e+00> : vector<32x128xf32>
    %2 = tpu.matmul %0, %1, %cst {dimension_numbers = #tpu.dot_dimension_numbers<[1], [0], [0], [1], [0, 0, 1, 1], [], []>} : vector<32x96xbf16>, vector<96x128xbf16>, vector<32x128xf32> -> vector<32x128xf32>
    %c0_3 = arith.constant 0 : index
    %c0_4 = arith.constant 0 : index
    %3 = vector.load %arg3[%c0_3, %c0_4] : memref<32x1xf32, #tpu.memory_space<vmem>>, vector<32x1xf32>
    %4 = vector.broadcast %3 : vector<32x1xf32> to vector<32x128xf32>
    %5 = arith.addf %2, %4 : vector<32x128xf32>
    %cst_5 = arith.constant 0.000000e+00 : f32
    %6 = vector.broadcast %cst_5 : f32 to vector<32x128xf32>
    %7 = arith.cmpf ogt, %5, %6 : vector<32x128xf32>
    %cst_6 = arith.constant 2.000000e-01 : f32
    %8 = vector.broadcast %cst_6 : f32 to vector<32x128xf32>
    %9 = arith.mulf %8, %5 : vector<32x128xf32>
    %10 = arith.select %7, %5, %9 : vector<32x128xi1>, vector<32x128xf32>
    %11 = arith.truncf %10 : vector<32x128xf32> to vector<32x128xbf16>
    %c0_7 = arith.constant 0 : index
    %c0_8 = arith.constant 0 : index
    %12 = vector.load %arg4[%c0_7, %c0_8] : memref<32x128xbf16, #tpu.memory_space<vmem>>, vector<32x128xbf16>
    tpu.vector_store %arg4[%c0_7, %c0_8], %11 {strides = array<i32>} : memref<32x128xbf16, #tpu.memory_space<vmem>>, vector<32x128xbf16>,
    return
  }
  func.func @transform_0(%arg0: i32) -> (i32, i32) {
    %c0_i32 = arith.constant 0 : i32
    %c0_i32_0 = arith.constant 0 : i32
    %c0_i32_1 = arith.constant 0 : i32
    return %c0_i32, %c0_i32_0 : i32, i32
  }
  func.func @transform_1(%arg0: i32) -> (i32, i32) {
    %c0_i32 = arith.constant 0 : i32
    %c0_i32_0 = arith.constant 0 : i32
    return %c0_i32, %arg0 : i32, i32
  }
  func.func @transform_2(%arg0: i32) -> (i32, i32) {
    %c0_i32 = arith.constant 0 : i32
    %c0_i32_0 = arith.constant 0 : i32
    %c0_i32_1 = arith.constant 0 : i32
    return %c0_i32, %c0_i32_0 : i32, i32
  }
  func.func @transform_3(%arg0: i32) -> (i32, i32) {
    %c0_i32 = arith.constant 0 : i32
    %c0_i32_0 = arith.constant 0 : i32
    return %c0_i32, %arg0 : i32, i32
  }
}

module attributes {stable_mosaic.version = 11 : i64} {
  func.func @kernel(%arg0: i32, %arg1: memref<16x96xbf16, #tpu.memory_space<vmem>>, %arg2: memref<96x256xbf16, #tpu.memory_space<vmem>>, %arg3: memref<16x1xf32, #tpu.memory_space<vmem>>, %arg4: memref<16x256xf32, #tpu.memory_space<vmem>>) attributes {dimension_semantics = [#tpu.dimension_semantics<parallel>], iteration_bounds = array<i64: 2>, scalar_prefetch = 0 : i64, scratch_operands = 0 : i64, tpu.core_type = #tpu.core_type<tc>, window_params = [{pipeline_mode = #tpu.pipeline_mode<synchronous>, transform_indices = @transform_0, window_bounds = array<i64: 16, 96>}, {transform_indices = @transform_1, window_bounds = array<i64: 96, 256>}, {pipeline_mode = #tpu.pipeline_mode<synchronous>, transform_indices = @transform_2, window_bounds = array<i64: 16, 1>}, {transform_indices = @transform_3, window_bounds = array<i64: 16, 256>}]} {
    %c0 = arith.constant 0 : index
    %c0_0 = arith.constant 0 : index
    %0 = vector.load %arg1[%c0, %c0_0] : memref<16x96xbf16, #tpu.memory_space<vmem>>, vector<16x96xbf16>
    %c0_1 = arith.constant 0 : index
    %c0_2 = arith.constant 0 : index
    %1 = vector.load %arg2[%c0_1, %c0_2] : memref<96x256xbf16, #tpu.memory_space<vmem>>, vector<96x256xbf16>
    %cst = arith.constant dense<0.000000e+00> : vector<16x256xf32>
    %2 = tpu.matmul %0, %1, %cst {dimension_numbers = #tpu.dot_dimension_numbers<[1], [0], [0], [1], [0, 0, 1, 1], [], []>} : vector<16x96xbf16>, vector<96x256xbf16>, vector<16x256xf32> -> vector<16x256xf32>
    %c0_3 = arith.constant 0 : index
    %c0_4 = arith.constant 0 : index
    %3 = vector.load %arg3[%c0_3, %c0_4] : memref<16x1xf32, #tpu.memory_space<vmem>>, vector<16x1xf32>
    %4 = vector.broadcast %3 : vector<16x1xf32> to vector<16x256xf32>
    %5 = arith.addf %2, %4 : vector<16x256xf32>
    %c0_5 = arith.constant 0 : index
    %c0_6 = arith.constant 0 : index
    %6 = vector.load %arg4[%c0_5, %c0_6] : memref<16x256xf32, #tpu.memory_space<vmem>>, vector<16x256xf32>
    tpu.vector_store %arg4[%c0_5, %c0_6], %5 {strides = array<i32>} : memref<16x256xf32, #tpu.memory_space<vmem>>, vector<16x256xf32>,
    return
  }
  func.func @transform_0(%arg0: i32) -> (i32, i32) {
    %c0_i32 = arith.constant 0 : i32
    %c0_i32_0 = arith.constant 0 : i32
    %c0_i32_1 = arith.constant 0 : i32
    return %c0_i32, %c0_i32_0 : i32, i32
  }
  func.func @transform_1(%arg0: i32) -> (i32, i32) {
    %c0_i32 = arith.constant 0 : i32
    %c0_i32_0 = arith.constant 0 : i32
    return %c0_i32, %arg0 : i32, i32
  }
  func.func @transform_2(%arg0: i32) -> (i32, i32) {
    %c0_i32 = arith.constant 0 : i32
    %c0_i32_0 = arith.constant 0 : i32
    %c0_i32_1 = arith.constant 0 : i32
    return %c0_i32, %c0_i32_0 : i32, i32
  }
  func.func @transform_3(%arg0: i32) -> (i32, i32) {
    %c0_i32 = arith.constant 0 : i32
    %c0_i32_0 = arith.constant 0 : i32
    return %c0_i32, %arg0 : i32, i32
  }
}

module attributes {stable_mosaic.version = 11 : i64} {
  func.func @_pull_blend_kernel(%arg0: i32, %arg1: i32, %arg2: memref<1x4x2x128xf32, #tpu.memory_space<vmem>>, %arg3: memref<1x2x128xf32, #tpu.memory_space<vmem>>, %arg4: memref<1x2x128xf32, #tpu.memory_space<vmem>>) attributes {dimension_semantics = [#tpu.dimension_semantics<parallel>, #tpu.dimension_semantics<parallel>], iteration_bounds = array<i64: 2, 1>, scalar_prefetch = 0 : i64, scratch_operands = 0 : i64, tpu.core_type = #tpu.core_type<tc>, window_params = [{transform_indices = @transform_0, window_bounds = array<i64: 1, 4, 2, 128>}, {transform_indices = @transform_1, window_bounds = array<i64: 1, 2, 128>}, {transform_indices = @transform_2, window_bounds = array<i64: 1, 2, 128>}]} {
    %c0 = arith.constant 0 : index
    %c0_0 = arith.constant 0 : index
    %c0_1 = arith.constant 0 : index
    %0 = vector.load %arg3[%c0, %c0_0, %c0_1] : memref<1x2x128xf32, #tpu.memory_space<vmem>>, vector<1x1x128xf32>
    %1 = vector.shape_cast %0 : vector<1x1x128xf32> to vector<1x128xf32>
    %c0_2 = arith.constant 0 : index
    %c1 = arith.constant 1 : index
    %c0_3 = arith.constant 0 : index
    %2 = vector.load %arg3[%c0_2, %c1, %c0_3] : memref<1x2x128xf32, #tpu.memory_space<vmem>>, vector<1x1x128xf32>
    %3 = vector.shape_cast %2 : vector<1x1x128xf32> to vector<1x128xf32>
    %4 = math.floor %1 : vector<1x128xf32>
    %5 = arith.subf %1, %4 : vector<1x128xf32>
    %6 = math.floor %3 : vector<1x128xf32>
    %7 = arith.subf %3, %6 : vector<1x128xf32>
    %c0_4 = arith.constant 0 : index
    %c0_5 = arith.constant 0 : index
    %c0_6 = arith.constant 0 : index
    %c0_7 = arith.constant 0 : index
    %8 = vector.load %arg2[%c0_4, %c0_5, %c0_6, %c0_7] : memref<1x4x2x128xf32, #tpu.memory_space<vmem>>, vector<1x1x2x128xf32>
    %9 = vector.shape_cast %8 : vector<1x1x2x128xf32> to vector<2x128xf32>
    %c0_8 = arith.constant 0 : index
    %c1_9 = arith.constant 1 : index
    %c0_10 = arith.constant 0 : index
    %c0_11 = arith.constant 0 : index
    %10 = vector.load %arg2[%c0_8, %c1_9, %c0_10, %c0_11] : memref<1x4x2x128xf32, #tpu.memory_space<vmem>>, vector<1x1x2x128xf32>
    %11 = vector.shape_cast %10 : vector<1x1x2x128xf32> to vector<2x128xf32>
    %c0_12 = arith.constant 0 : index
    %c2 = arith.constant 2 : index
    %c0_13 = arith.constant 0 : index
    %c0_14 = arith.constant 0 : index
    %12 = vector.load %arg2[%c0_12, %c2, %c0_13, %c0_14] : memref<1x4x2x128xf32, #tpu.memory_space<vmem>>, vector<1x1x2x128xf32>
    %13 = vector.shape_cast %12 : vector<1x1x2x128xf32> to vector<2x128xf32>
    %c0_15 = arith.constant 0 : index
    %c3 = arith.constant 3 : index
    %c0_16 = arith.constant 0 : index
    %c0_17 = arith.constant 0 : index
    %14 = vector.load %arg2[%c0_15, %c3, %c0_16, %c0_17] : memref<1x4x2x128xf32, #tpu.memory_space<vmem>>, vector<1x1x2x128xf32>
    %15 = vector.shape_cast %14 : vector<1x1x2x128xf32> to vector<2x128xf32>
    %16 = arith.subf %11, %9 : vector<2x128xf32>
    %17 = vector.broadcast %7 : vector<1x128xf32> to vector<2x128xf32>
    %18 = arith.mulf %17, %16 : vector<2x128xf32>
    %19 = arith.addf %9, %18 : vector<2x128xf32>
    %20 = arith.subf %15, %13 : vector<2x128xf32>
    %21 = vector.broadcast %7 : vector<1x128xf32> to vector<2x128xf32>
    %22 = arith.mulf %21, %20 : vector<2x128xf32>
    %23 = arith.addf %13, %22 : vector<2x128xf32>
    %24 = arith.subf %23, %19 : vector<2x128xf32>
    %25 = vector.broadcast %5 : vector<1x128xf32> to vector<2x128xf32>
    %26 = arith.mulf %25, %24 : vector<2x128xf32>
    %27 = arith.addf %19, %26 : vector<2x128xf32>
    %c0_18 = arith.constant 0 : index
    %c0_19 = arith.constant 0 : index
    %c0_20 = arith.constant 0 : index
    %28 = vector.load %arg4[%c0_18, %c0_19, %c0_20] : memref<1x2x128xf32, #tpu.memory_space<vmem>>, vector<1x2x128xf32>
    %29 = vector.shape_cast %28 : vector<1x2x128xf32> to vector<2x128xf32>
    %30 = vector.shape_cast %27 : vector<2x128xf32> to vector<1x2x128xf32>
    tpu.vector_store %arg4[%c0_18, %c0_19, %c0_20], %30 {strides = array<i32>} : memref<1x2x128xf32, #tpu.memory_space<vmem>>, vector<1x2x128xf32>,
    return
  }
  func.func @transform_0(%arg0: i32, %arg1: i32) -> (i32, i32, i32, i32) {
    %c0_i32 = arith.constant 0 : i32
    %c0_i32_0 = arith.constant 0 : i32
    %c0_i32_1 = arith.constant 0 : i32
    return %arg0, %c0_i32, %c0_i32_0, %arg1 : i32, i32, i32, i32
  }
  func.func @transform_1(%arg0: i32, %arg1: i32) -> (i32, i32, i32) {
    %c0_i32 = arith.constant 0 : i32
    %c0_i32_0 = arith.constant 0 : i32
    return %arg0, %c0_i32, %arg1 : i32, i32, i32
  }
  func.func @transform_2(%arg0: i32, %arg1: i32) -> (i32, i32, i32) {
    %c0_i32 = arith.constant 0 : i32
    %c0_i32_0 = arith.constant 0 : i32
    return %arg0, %c0_i32, %arg1 : i32, i32, i32
  }
}

module attributes {stable_mosaic.version = 11 : i64} {
  func.func @_pull_blend_kernel(%arg0: i32, %arg1: i32, %arg2: memref<1x4x2x128xf32, #tpu.memory_space<vmem>>, %arg3: memref<1x2x128xf32, #tpu.memory_space<vmem>>, %arg4: memref<1x2x128xf32, #tpu.memory_space<vmem>>) attributes {dimension_semantics = [#tpu.dimension_semantics<parallel>, #tpu.dimension_semantics<parallel>], iteration_bounds = array<i64: 2, 2>, scalar_prefetch = 0 : i64, scratch_operands = 0 : i64, tpu.core_type = #tpu.core_type<tc>, window_params = [{transform_indices = @transform_0, window_bounds = array<i64: 1, 4, 2, 128>}, {transform_indices = @transform_1, window_bounds = array<i64: 1, 2, 128>}, {transform_indices = @transform_2, window_bounds = array<i64: 1, 2, 128>}]} {
    %c0 = arith.constant 0 : index
    %c0_0 = arith.constant 0 : index
    %c0_1 = arith.constant 0 : index
    %0 = vector.load %arg3[%c0, %c0_0, %c0_1] : memref<1x2x128xf32, #tpu.memory_space<vmem>>, vector<1x1x128xf32>
    %1 = vector.shape_cast %0 : vector<1x1x128xf32> to vector<1x128xf32>
    %c0_2 = arith.constant 0 : index
    %c1 = arith.constant 1 : index
    %c0_3 = arith.constant 0 : index
    %2 = vector.load %arg3[%c0_2, %c1, %c0_3] : memref<1x2x128xf32, #tpu.memory_space<vmem>>, vector<1x1x128xf32>
    %3 = vector.shape_cast %2 : vector<1x1x128xf32> to vector<1x128xf32>
    %4 = math.floor %1 : vector<1x128xf32>
    %5 = arith.subf %1, %4 : vector<1x128xf32>
    %6 = math.floor %3 : vector<1x128xf32>
    %7 = arith.subf %3, %6 : vector<1x128xf32>
    %c0_4 = arith.constant 0 : index
    %c0_5 = arith.constant 0 : index
    %c0_6 = arith.constant 0 : index
    %c0_7 = arith.constant 0 : index
    %8 = vector.load %arg2[%c0_4, %c0_5, %c0_6, %c0_7] : memref<1x4x2x128xf32, #tpu.memory_space<vmem>>, vector<1x1x2x128xf32>
    %9 = vector.shape_cast %8 : vector<1x1x2x128xf32> to vector<2x128xf32>
    %c0_8 = arith.constant 0 : index
    %c1_9 = arith.constant 1 : index
    %c0_10 = arith.constant 0 : index
    %c0_11 = arith.constant 0 : index
    %10 = vector.load %arg2[%c0_8, %c1_9, %c0_10, %c0_11] : memref<1x4x2x128xf32, #tpu.memory_space<vmem>>, vector<1x1x2x128xf32>
    %11 = vector.shape_cast %10 : vector<1x1x2x128xf32> to vector<2x128xf32>
    %c0_12 = arith.constant 0 : index
    %c2 = arith.constant 2 : index
    %c0_13 = arith.constant 0 : index
    %c0_14 = arith.constant 0 : index
    %12 = vector.load %arg2[%c0_12, %c2, %c0_13, %c0_14] : memref<1x4x2x128xf32, #tpu.memory_space<vmem>>, vector<1x1x2x128xf32>
    %13 = vector.shape_cast %12 : vector<1x1x2x128xf32> to vector<2x128xf32>
    %c0_15 = arith.constant 0 : index
    %c3 = arith.constant 3 : index
    %c0_16 = arith.constant 0 : index
    %c0_17 = arith.constant 0 : index
    %14 = vector.load %arg2[%c0_15, %c3, %c0_16, %c0_17] : memref<1x4x2x128xf32, #tpu.memory_space<vmem>>, vector<1x1x2x128xf32>
    %15 = vector.shape_cast %14 : vector<1x1x2x128xf32> to vector<2x128xf32>
    %16 = arith.subf %11, %9 : vector<2x128xf32>
    %17 = vector.broadcast %7 : vector<1x128xf32> to vector<2x128xf32>
    %18 = arith.mulf %17, %16 : vector<2x128xf32>
    %19 = arith.addf %9, %18 : vector<2x128xf32>
    %20 = arith.subf %15, %13 : vector<2x128xf32>
    %21 = vector.broadcast %7 : vector<1x128xf32> to vector<2x128xf32>
    %22 = arith.mulf %21, %20 : vector<2x128xf32>
    %23 = arith.addf %13, %22 : vector<2x128xf32>
    %24 = arith.subf %23, %19 : vector<2x128xf32>
    %25 = vector.broadcast %5 : vector<1x128xf32> to vector<2x128xf32>
    %26 = arith.mulf %25, %24 : vector<2x128xf32>
    %27 = arith.addf %19, %26 : vector<2x128xf32>
    %c0_18 = arith.constant 0 : index
    %c0_19 = arith.constant 0 : index
    %c0_20 = arith.constant 0 : index
    %28 = vector.load %arg4[%c0_18, %c0_19, %c0_20] : memref<1x2x128xf32, #tpu.memory_space<vmem>>, vector<1x2x128xf32>
    %29 = vector.shape_cast %28 : vector<1x2x128xf32> to vector<2x128xf32>
    %30 = vector.shape_cast %27 : vector<2x128xf32> to vector<1x2x128xf32>
    tpu.vector_store %arg4[%c0_18, %c0_19, %c0_20], %30 {strides = array<i32>} : memref<1x2x128xf32, #tpu.memory_space<vmem>>, vector<1x2x128xf32>,
    return
  }
  func.func @transform_0(%arg0: i32, %arg1: i32) -> (i32, i32, i32, i32) {
    %c0_i32 = arith.constant 0 : i32
    %c0_i32_0 = arith.constant 0 : i32
    %c0_i32_1 = arith.constant 0 : i32
    return %arg0, %c0_i32, %c0_i32_0, %arg1 : i32, i32, i32, i32
  }
  func.func @transform_1(%arg0: i32, %arg1: i32) -> (i32, i32, i32) {
    %c0_i32 = arith.constant 0 : i32
    %c0_i32_0 = arith.constant 0 : i32
    return %arg0, %c0_i32, %arg1 : i32, i32, i32
  }
  func.func @transform_2(%arg0: i32, %arg1: i32) -> (i32, i32, i32) {
    %c0_i32 = arith.constant 0 : i32
    %c0_i32_0 = arith.constant 0 : i32
    return %arg0, %c0_i32, %arg1 : i32, i32, i32
  }
}

module attributes {stable_mosaic.version = 11 : i64} {
  func.func @_pull_blend_kernel(%arg0: i32, %arg1: i32, %arg2: memref<1x4x1x128xf32, #tpu.memory_space<vmem>>, %arg3: memref<1x2x128xf32, #tpu.memory_space<vmem>>, %arg4: memref<1x1x128xf32, #tpu.memory_space<vmem>>) attributes {dimension_semantics = [#tpu.dimension_semantics<parallel>, #tpu.dimension_semantics<parallel>], iteration_bounds = array<i64: 2, 2>, scalar_prefetch = 0 : i64, scratch_operands = 0 : i64, tpu.core_type = #tpu.core_type<tc>, window_params = [{transform_indices = @transform_0, window_bounds = array<i64: 1, 4, 1, 128>}, {transform_indices = @transform_1, window_bounds = array<i64: 1, 2, 128>}, {transform_indices = @transform_2, window_bounds = array<i64: 1, 1, 128>}]} {
    %c0 = arith.constant 0 : index
    %c0_0 = arith.constant 0 : index
    %c0_1 = arith.constant 0 : index
    %0 = vector.load %arg3[%c0, %c0_0, %c0_1] : memref<1x2x128xf32, #tpu.memory_space<vmem>>, vector<1x1x128xf32>
    %1 = vector.shape_cast %0 : vector<1x1x128xf32> to vector<1x128xf32>
    %c0_2 = arith.constant 0 : index
    %c1 = arith.constant 1 : index
    %c0_3 = arith.constant 0 : index
    %2 = vector.load %arg3[%c0_2, %c1, %c0_3] : memref<1x2x128xf32, #tpu.memory_space<vmem>>, vector<1x1x128xf32>
    %3 = vector.shape_cast %2 : vector<1x1x128xf32> to vector<1x128xf32>
    %4 = math.floor %1 : vector<1x128xf32>
    %5 = arith.subf %1, %4 : vector<1x128xf32>
    %6 = math.floor %3 : vector<1x128xf32>
    %7 = arith.subf %3, %6 : vector<1x128xf32>
    %c0_4 = arith.constant 0 : index
    %c0_5 = arith.constant 0 : index
    %c0_6 = arith.constant 0 : index
    %c0_7 = arith.constant 0 : index
    %8 = vector.load %arg2[%c0_4, %c0_5, %c0_6, %c0_7] : memref<1x4x1x128xf32, #tpu.memory_space<vmem>>, vector<1x1x1x128xf32>
    %9 = vector.shape_cast %8 : vector<1x1x1x128xf32> to vector<1x128xf32>
    %c0_8 = arith.constant 0 : index
    %c1_9 = arith.constant 1 : index
    %c0_10 = arith.constant 0 : index
    %c0_11 = arith.constant 0 : index
    %10 = vector.load %arg2[%c0_8, %c1_9, %c0_10, %c0_11] : memref<1x4x1x128xf32, #tpu.memory_space<vmem>>, vector<1x1x1x128xf32>
    %11 = vector.shape_cast %10 : vector<1x1x1x128xf32> to vector<1x128xf32>
    %c0_12 = arith.constant 0 : index
    %c2 = arith.constant 2 : index
    %c0_13 = arith.constant 0 : index
    %c0_14 = arith.constant 0 : index
    %12 = vector.load %arg2[%c0_12, %c2, %c0_13, %c0_14] : memref<1x4x1x128xf32, #tpu.memory_space<vmem>>, vector<1x1x1x128xf32>
    %13 = vector.shape_cast %12 : vector<1x1x1x128xf32> to vector<1x128xf32>
    %c0_15 = arith.constant 0 : index
    %c3 = arith.constant 3 : index
    %c0_16 = arith.constant 0 : index
    %c0_17 = arith.constant 0 : index
    %14 = vector.load %arg2[%c0_15, %c3, %c0_16, %c0_17] : memref<1x4x1x128xf32, #tpu.memory_space<vmem>>, vector<1x1x1x128xf32>
    %15 = vector.shape_cast %14 : vector<1x1x1x128xf32> to vector<1x128xf32>
    %16 = arith.subf %11, %9 : vector<1x128xf32>
    %17 = arith.mulf %7, %16 : vector<1x128xf32>
    %18 = arith.addf %9, %17 : vector<1x128xf32>
    %19 = arith.subf %15, %13 : vector<1x128xf32>
    %20 = arith.mulf %7, %19 : vector<1x128xf32>
    %21 = arith.addf %13, %20 : vector<1x128xf32>
    %22 = arith.subf %21, %18 : vector<1x128xf32>
    %23 = arith.mulf %5, %22 : vector<1x128xf32>
    %24 = arith.addf %18, %23 : vector<1x128xf32>
    %c0_18 = arith.constant 0 : index
    %c0_19 = arith.constant 0 : index
    %c0_20 = arith.constant 0 : index
    %25 = vector.load %arg4[%c0_18, %c0_19, %c0_20] : memref<1x1x128xf32, #tpu.memory_space<vmem>>, vector<1x1x128xf32>
    %26 = vector.shape_cast %25 : vector<1x1x128xf32> to vector<1x128xf32>
    %27 = vector.shape_cast %24 : vector<1x128xf32> to vector<1x1x128xf32>
    tpu.vector_store %arg4[%c0_18, %c0_19, %c0_20], %27 {strides = array<i32>} : memref<1x1x128xf32, #tpu.memory_space<vmem>>, vector<1x1x128xf32>,
    return
  }
  func.func @transform_0(%arg0: i32, %arg1: i32) -> (i32, i32, i32, i32) {
    %c0_i32 = arith.constant 0 : i32
    %c0_i32_0 = arith.constant 0 : i32
    %c0_i32_1 = arith.constant 0 : i32
    return %arg0, %c0_i32, %c0_i32_0, %arg1 : i32, i32, i32, i32
  }
  func.func @transform_1(%arg0: i32, %arg1: i32) -> (i32, i32, i32) {
    %c0_i32 = arith.constant 0 : i32
    %c0_i32_0 = arith.constant 0 : i32
    return %arg0, %c0_i32, %arg1 : i32, i32, i32
  }
  func.func @transform_2(%arg0: i32, %arg1: i32) -> (i32, i32, i32) {
    %c0_i32 = arith.constant 0 : i32
    %c0_i32_0 = arith.constant 0 : i32
    return %arg0, %c0_i32, %arg1 : i32, i32, i32
  }
}

</mosaic_0001>

<llo_original>
// kernel: tile.13
$region0: #{tile.13}
  #allocation2 [shape = 's32[1]{0}', space=sflag, size = 0x4, scoped, tag = 'scoped memory for tile.13']
  %s0 = inlined_call_operand.hbm [shape: f32[16], index: 0, kind: input, shape index: {}]
  %s1 = inlined_call_operand.vmem [shape: f32[4,16], index: 1, kind: output, shape index: {}]
  $region1: #{tile.13} parent=0
    #allocation0 [shape = 'u8[512]{0}', space=vmem, size = 0x400, scoped, tag = 'operand span for operand 0']
    #allocation1 [shape = 's32[1]{0}', space=sflag, size = 0x4, scoped, tag = 'scoped memory for tile.13']
    %2 = vsyncpa [#allocation1], 0
    // Predicated region
    $region2: #{tile.13} parent=1 // pred_check
      _
    $region3: #{tile.13} parent=1 // pred_check_branch
      %4 = sbr.rel (0) target = $region5
    $region4: #{tile.13} parent=1 // pred_region
      %s6 = ssub.s32 16, 16
      %7 = vsyncadd [#allocation1], %s6
      %s9 = sshll.u32 [#allocation0], 4
      %s10 = int_to_ptr.vmem [resolvable:$true] %s9
      %12 = dma.hbm_to_vmem [thread:$0]  %s0, 16, %s10, [#allocation1]
    $region5: #{tile.13} parent=1 // pred_fallthru
      _
    // Predicated region
    $region6: #{tile.13} parent=1 // pred_check
      _
    $region7: #{tile.13} parent=1 // pred_check_branch
      %14 = sbr.rel (0) target = $region9
    $region8: #{tile.13} parent=1 // pred_region
      %15 = dma.done [#allocation1], 16
    $region9: #{tile.13} parent=1 // pred_fallthru
      _
    %v16 = vld [vmem:[#allocation0] ss:$0 sm:$0xff]
    %17 = vst [vmem:[%s1] sm:$0xf] %v16
    %18 = vsyncpa [#allocation1], 1

// kernel: tile.18
$region0: #{tile.18}
  #allocation2 [shape = 's32[1]{0}', space=sflag, size = 0x4, scoped, tag = 'scoped memory for tile.18']
  %s0 = inlined_call_operand.hbm [shape: f32[8], index: 0, kind: input, shape index: {}]
  %s1 = inlined_call_operand.vmem [shape: f32[4,8], index: 1, kind: output, shape index: {}]
  $region1: #{tile.18} parent=0
    #allocation0 [shape = 'u8[512]{0}', space=vmem, size = 0x400, scoped, tag = 'operand span for operand 0']
    #allocation1 [shape = 's32[1]{0}', space=sflag, size = 0x4, scoped, tag = 'scoped memory for tile.18']
    %2 = vsyncpa [#allocation1], 0
    // Predicated region
    $region2: #{tile.18} parent=1 // pred_check
      _
    $region3: #{tile.18} parent=1 // pred_check_branch
      %4 = sbr.rel (0) target = $region5
    $region4: #{tile.18} parent=1 // pred_region
      %s6 = ssub.s32 16, 16
      %7 = vsyncadd [#allocation1], %s6
      %s9 = sshll.u32 [#allocation0], 4
      %s10 = int_to_ptr.vmem [resolvable:$true] %s9
      %12 = dma.hbm_to_vmem [thread:$0]  %s0, 16, %s10, [#allocation1]
    $region5: #{tile.18} parent=1 // pred_fallthru
      _
    // Predicated region
    $region6: #{tile.18} parent=1 // pred_check
      _
    $region7: #{tile.18} parent=1 // pred_check_branch
      %14 = sbr.rel (0) target = $region9
    $region8: #{tile.18} parent=1 // pred_region
      %15 = dma.done [#allocation1], 16
    $region9: #{tile.18} parent=1 // pred_fallthru
      _
    %v16 = vld [vmem:[#allocation0] ss:$0 sm:$0xff]
    %17 = vst [vmem:[%s1] sm:$0xf] %v16
    %18 = vsyncpa [#allocation1], 1

// kernel: voxelmorph_forward.16
$region0: #{voxelmorph_forward.16}
  #allocation0 [shape = 'u32[]', space=smem, size = 0x4, offset = 0x4, fixed_abs, tag = 'smem constant byte address 0x4 - core index']
  #allocation1 [shape = 'u32[144,128]{1,0:T(1,128)}', space=vmem, size = 0x12000, scoped, tag = 'internal scratch']
  %s0 = inlined_call_operand.vmem [shape: bf16[16,32], index: 0, kind: input, shape index: {}]
  %s1 = inlined_call_operand.vmem [shape: bf16[32,128], index: 1, kind: input, shape index: {}]
  %s2 = inlined_call_operand.vmem [shape: f32[16,1], index: 2, kind: input, shape index: {}]
  %s3 = inlined_call_operand.vmem [shape: bf16[16,128], index: 3, kind: output, shape index: {}]
  %s4 = sld [smem:[#allocation0]]
  $region22: #{voxelmorph_forward.16} parent=0
    _
  %s6 = ssub.s32 1, %s4
  %s7 = scalar_select 0, %s6, %s4
  // Predicated region
  $region2: #{voxelmorph_forward.16} parent=0 // pred_check
    _
  $region3: #{voxelmorph_forward.16} parent=0 // pred_check_branch
    %9 = sbr.rel (0) target = $region5
  $region4: #{voxelmorph_forward.16} parent=0 // pred_region
    _
  $region5: #{voxelmorph_forward.16} parent=0 // pred_fallthru
    _
  // Predicated region
  $region6: #{voxelmorph_forward.16} parent=0 // pred_check
    _
  $region7: #{voxelmorph_forward.16} parent=0 // pred_check_branch
    %11 = sbr.rel (0) target = $region9
  $region8: #{voxelmorph_forward.16} parent=0 // pred_region
    _
  $region9: #{voxelmorph_forward.16} parent=0 // pred_fallthru
    _
  // Predicated region
  $region10: #{voxelmorph_forward.16} parent=0 // pred_check
    _
  $region11: #{voxelmorph_forward.16} parent=0 // pred_check_branch
    %13 = sbr.rel (0) target = $region13
  $region12: #{voxelmorph_forward.16} parent=0 // pred_region
    _
  $region13: #{voxelmorph_forward.16} parent=0 // pred_fallthru
    _
  %v15 = vld [vmem:[%s0] sm:$0xf]
  %v16 = vld [vmem:[%s0 + $0x4] sm:$0xf]
  %v17 = vld [vmem:[%s1] sm:$0xf]
  %v18 = vld [vmem:[%s1 + $0x4] sm:$0xf]
  %v19 = vld [vmem:[%s1 + $0x8] sm:$0xf]
  %v20 = vld [vmem:[%s1 + $0xc] sm:$0xf]
  %v21 = vld [vmem:[%s2] sm:$0xff]
  %v22 = vld [vmem:[%s2 + $0x8] sm:$0xff]
  %24 = vset.pattern.permute.xlu0 0
  %25 = vperm.xlu0 %24, %v21
  %v26 = vpop.permute.xlu0 %25
  %29 = vset.pattern.permute.xlu0 0
  %30 = vperm.xlu0 %29, %v22
  %v31 = vpop.permute.xlu0 %30
  %v35 = vunpack.c.l.b16 %v15
  %v36 = vunpack.c.l.b16 %v16
  %v37 = vpack.c.b16 %v36, %v35
  %v42 = vunpack.c.l.b16 %v17
  %v43 = vunpack.c.l.b16 %v18
  %v44 = vunpack.c.l.b16 %v19
  %v45 = vunpack.c.l.b16 %v20
  %v46 = vpack.c.b16 %v43, %v42
  %v47 = vpack.c.b16 %v45, %v44
  %vm50 = vcmask 261120
  %v52 = vsel %vm50, %v37, 0
  %54 = vmatprep.subr.bf16.mxu0 0
  %55 = vmatpush1.bf16.msra.mxu0 %v46
  %56 = vmatprep.subr.bf16.mxu0 0
  %57 = vmatpush1.bf16.msra.mxu0 %v47
  %58 = vmatprep.subr.bf16.mxu0 0
  %59 = vmatpush1.bf16.msra.mxu0 0
  %60 = vmatprep.subr.bf16.mxu0 0
  %61 = vmatpush1.bf16.msra.mxu0 0
  %62 = vmatprep.subr.bf16.mxu0 0
  %63 = vmatpush1.bf16.msra.mxu0 0
  %64 = vmatprep.subr.bf16.mxu0 0
  %65 = vmatpush1.bf16.msra.mxu0 0
  %66 = vmatprep.subr.bf16.mxu0 0
  %67 = vmatpush1.bf16.msra.mxu0 0
  %68 = vmatprep.subr.bf16.mxu0 0
  %69 = vmatpush1.bf16.msra.mxu0 0
  %70 = vmatprep.subr.bf16.mxu0 0
  %71 = vmatpush1.bf16.msra.mxu0 0
  %72 = vmatprep.subr.bf16.mxu0 0
  %73 = vmatpush1.bf16.msra.mxu0 0
  %74 = vmatprep.subr.bf16.mxu0 0
  %75 = vmatpush1.bf16.msra.mxu0 0
  %76 = vmatprep.subr.bf16.mxu0 0
  %77 = vmatpush1.bf16.msra.mxu0 0
  %78 = vmatprep.subr.bf16.mxu0 0
  %79 = vmatpush1.bf16.msra.mxu0 0
  %80 = vmatprep.subr.bf16.mxu0 0
  %81 = vmatpush1.bf16.msra.mxu0 0
  %82 = vmatprep.subr.bf16.mxu0 0
  %83 = vmatpush1.bf16.msra.mxu0 0
  %84 = vmatprep.subr.bf16.mxu0 0
  %85 = vmatpush1.bf16.msra.mxu0 0
  %86 = vmatprep.mubr.bf16.mxu0 0
  %87 = vmatmul.mubr.bf16.gmra.mrb[0].mxu0 %v52
  %v88 = vpop.f32.mrb[0].mxu0
  %v89 = vadd.f32 %v26, %v88
  %v90 = vpop.f32.mrb[0].mxu0
  %v91 = vpop.f32.mrb[0].mxu0
  %v92 = vadd.f32 %v31, %v91
  %v93 = vpop.f32.mrb[0].mxu0
  %94 = vdwg.mxu0
  %vm95 = vcmp.gt.f32.partialorder %v89, 0.0
  %vm96 = vcmp.gt.f32.partialorder %v92, 0.0
  %v97 = vmul.f32 %v89, 0.2
  %v98 = vmul.f32 %v92, 0.2
  %v99 = vsel %vm95, %v89, %v97
  %v100 = vsel %vm96, %v92, %v98
  %v101 = vpack.c.bf16 %v100, %v99
  %v103 = vunpack.c.l.b16 %v101
  %v104 = vunpack.c.h.b16 %v101
  %v105 = vpack.c.b16 %v103, %v103
  %v106 = vpack.c.b16 %v104, %v104
  %109 = vst [vmem:[%s3] sm:$0xf] %v105
  %110 = vst [vmem:[%s3 + $0x4] sm:$0xf] %v106
  // Predicated region
  $region14: #{voxelmorph_forward.16} parent=0 // pred_check
    _
  $region15: #{voxelmorph_forward.16} parent=0 // pred_check_branch
    %112 = sbr.rel (0) target = $region17
  $region16: #{voxelmorph_forward.16} parent=0 // pred_region
    _
  $region17: #{voxelmorph_forward.16} parent=0 // pred_fallthru
    _
  // Predicated region
  $region18: #{voxelmorph_forward.16} parent=0 // pred_check
    _
  $region19: #{voxelmorph_forward.16} parent=0 // pred_check_branch
    %114 = sbr.rel (0) target = $region21
  $region20: #{voxelmorph_forward.16} parent=0 // pred_region
    _
  $region21: #{voxelmorph_forward.16} parent=0 // pred_fallthru
    _

// kernel: voxelmorph_forward.17
$region0: #{voxelmorph_forward.17}
  #allocation0 [shape = 'u32[]', space=smem, size = 0x4, offset = 0x4, fixed_abs, tag = 'smem constant byte address 0x4 - core index']
  #allocation1 [shape = 'u32[144,128]{1,0:T(1,128)}', space=vmem, size = 0x12000, scoped, tag = 'internal scratch']
  %s0 = inlined_call_operand.vmem [shape: bf16[16,80], index: 0, kind: input, shape index: {}]
  %s1 = inlined_call_operand.vmem [shape: bf16[80,128], index: 1, kind: input, shape index: {}]
  %s2 = inlined_call_operand.vmem [shape: f32[16,1], index: 2, kind: input, shape index: {}]
  %s3 = inlined_call_operand.vmem [shape: bf16[16,128], index: 3, kind: output, shape index: {}]
  %s4 = sld [smem:[#allocation0]]
  $region22: #{voxelmorph_forward.17} parent=0
    _
  %s6 = ssub.s32 1, %s4
  %s7 = scalar_select 0, %s6, %s4
  // Predicated region
  $region2: #{voxelmorph_forward.17} parent=0 // pred_check
    _
  $region3: #{voxelmorph_forward.17} parent=0 // pred_check_branch
    %9 = sbr.rel (0) target = $region5
  $region4: #{voxelmorph_forward.17} parent=0 // pred_region
    _
  $region5: #{voxelmorph_forward.17} parent=0 // pred_fallthru
    _
  // Predicated region
  $region6: #{voxelmorph_forward.17} parent=0 // pred_check
    _
  $region7: #{voxelmorph_forward.17} parent=0 // pred_check_branch
    %11 = sbr.rel (0) target = $region9
  $region8: #{voxelmorph_forward.17} parent=0 // pred_region
    _
  $region9: #{voxelmorph_forward.17} parent=0 // pred_fallthru
    _
  // Predicated region
  $region10: #{voxelmorph_forward.17} parent=0 // pred_check
    _
  $region11: #{voxelmorph_forward.17} parent=0 // pred_check_branch
    %13 = sbr.rel (0) target = $region13
  $region12: #{voxelmorph_forward.17} parent=0 // pred_region
    _
  $region13: #{voxelmorph_forward.17} parent=0 // pred_fallthru
    _
  %v15 = vld [vmem:[%s0] sm:$0xf]
  %v16 = vld [vmem:[%s0 + $0x4] sm:$0xf]
  %v17 = vld [vmem:[%s1] sm:$0xf]
  %v18 = vld [vmem:[%s1 + $0x4] sm:$0xf]
  %v19 = vld [vmem:[%s1 + $0x8] sm:$0xf]
  %v20 = vld [vmem:[%s1 + $0xc] sm:$0xf]
  %v21 = vld [vmem:[%s1 + $0x10] sm:$0xf]
  %v22 = vld [vmem:[%s1 + $0x14] sm:$0xf]
  %v23 = vld [vmem:[%s1 + $0x18] sm:$0xf]
  %v24 = vld [vmem:[%s1 + $0x1c] sm:$0xf]
  %v25 = vld [vmem:[%s1 + $0x20] sm:$0xf]
  %v26 = vld [vmem:[%s1 + $0x24] sm:$0xf]
  %v27 = vld [vmem:[%s2] sm:$0xff]
  %v28 = vld [vmem:[%s2 + $0x8] sm:$0xff]
  %30 = vset.pattern.permute.xlu0 0
  %31 = vperm.xlu0 %30, %v27
  %v32 = vpop.permute.xlu0 %31
  %35 = vset.pattern.permute.xlu0 0
  %36 = vperm.xlu0 %35, %v28
  %v37 = vpop.permute.xlu0 %36
  %v41 = vunpack.c.l.b16 %v15
  %v42 = vunpack.c.l.b16 %v16
  %v43 = vpack.c.b16 %v42, %v41
  %v54 = vunpack.c.l.b16 %v17
  %v55 = vunpack.c.l.b16 %v18
  %v56 = vunpack.c.l.b16 %v19
  %v57 = vunpack.c.l.b16 %v20
  %v58 = vunpack.c.l.b16 %v21
  %v59 = vunpack.c.l.b16 %v22
  %v60 = vunpack.c.l.b16 %v23
  %v61 = vunpack.c.l.b16 %v24
  %v62 = vunpack.c.l.b16 %v25
  %v63 = vunpack.c.l.b16 %v26
  %v64 = vpack.c.b16 %v55, %v54
  %v65 = vpack.c.b16 %v57, %v56
  %v66 = vpack.c.b16 %v59, %v58
  %v67 = vpack.c.b16 %v61, %v60
  %v68 = vpack.c.b16 %v63, %v62
  %vm74 = vcmask 654336
  %v76 = vsel %vm74, %v43, 0
  %78 = vmatprep.subr.bf16.mxu0 0
  %79 = vmatpush1.bf16.msra.mxu0 %v64
  %80 = vmatprep.subr.bf16.mxu0 0
  %81 = vmatpush1.bf16.msra.mxu0 %v65
  %82 = vmatprep.subr.bf16.mxu0 0
  %83 = vmatpush1.bf16.msra.mxu0 %v66
  %84 = vmatprep.subr.bf16.mxu0 0
  %85 = vmatpush1.bf16.msra.mxu0 %v67
  %86 = vmatprep.subr.bf16.mxu0 0
  %87 = vmatpush1.bf16.msra.mxu0 %v68
  %88 = vmatprep.subr.bf16.mxu0 0
  %89 = vmatpush1.bf16.msra.mxu0 0
  %90 = vmatprep.subr.bf16.mxu0 0
  %91 = vmatpush1.bf16.msra.mxu0 0
  %92 = vmatprep.subr.bf16.mxu0 0
  %93 = vmatpush1.bf16.msra.mxu0 0
  %94 = vmatprep.subr.bf16.mxu0 0
  %95 = vmatpush1.bf16.msra.mxu0 0
  %96 = vmatprep.subr.bf16.mxu0 0
  %97 = vmatpush1.bf16.msra.mxu0 0
  %98 = vmatprep.subr.bf16.mxu0 0
  %99 = vmatpush1.bf16.msra.mxu0 0
  %100 = vmatprep.subr.bf16.mxu0 0
  %101 = vmatpush1.bf16.msra.mxu0 0
  %102 = vmatprep.subr.bf16.mxu0 0
  %103 = vmatpush1.bf16.msra.mxu0 0
  %104 = vmatprep.subr.bf16.mxu0 0
  %105 = vmatpush1.bf16.msra.mxu0 0
  %106 = vmatprep.subr.bf16.mxu0 0
  %107 = vmatpush1.bf16.msra.mxu0 0
  %108 = vmatprep.subr.bf16.mxu0 0
  %109 = vmatpush1.bf16.msra.mxu0 0
  %110 = vmatprep.mubr.bf16.mxu0 0
  %111 = vmatmul.mubr.bf16.gmra.mrb[0].mxu0 %v76
  %v112 = vpop.f32.mrb[0].mxu0
  %v113 = vadd.f32 %v32, %v112
  %v114 = vpop.f32.mrb[0].mxu0
  %v115 = vpop.f32.mrb[0].mxu0
  %v116 = vadd.f32 %v37, %v115
  %v117 = vpop.f32.mrb[0].mxu0
  %118 = vdwg.mxu0
  %vm119 = vcmp.gt.f32.partialorder %v113, 0.0
  %vm120 = vcmp.gt.f32.partialorder %v116, 0.0
  %v121 = vmul.f32 %v113, 0.2
  %v122 = vmul.f32 %v116, 0.2
  %v123 = vsel %vm119, %v113, %v121
  %v124 = vsel %vm120, %v116, %v122
  %v125 = vpack.c.bf16 %v124, %v123
  %v127 = vunpack.c.l.b16 %v125
  %v128 = vunpack.c.h.b16 %v125
  %v129 = vpack.c.b16 %v127, %v127
  %v130 = vpack.c.b16 %v128, %v128
  %133 = vst [vmem:[%s3] sm:$0xf] %v129
  %134 = vst [vmem:[%s3 + $0x4] sm:$0xf] %v130
  // Predicated region
  $region14: #{voxelmorph_forward.17} parent=0 // pred_check
    _
  $region15: #{voxelmorph_forward.17} parent=0 // pred_check_branch
    %136 = sbr.rel (0) target = $region17
  $region16: #{voxelmorph_forward.17} parent=0 // pred_region
    _
  $region17: #{voxelmorph_forward.17} parent=0 // pred_fallthru
    _
  // Predicated region
  $region18: #{voxelmorph_forward.17} parent=0 // pred_check
    _
  $region19: #{voxelmorph_forward.17} parent=0 // pred_check_branch
    %138 = sbr.rel (0) target = $region21
  $region20: #{voxelmorph_forward.17} parent=0 // pred_region
    _
  $region21: #{voxelmorph_forward.17} parent=0 // pred_fallthru
    _

// kernel: voxelmorph_forward.18
$region0: #{voxelmorph_forward.18}
  #allocation0 [shape = 'u32[]', space=smem, size = 0x4, offset = 0x4, fixed_abs, tag = 'smem constant byte address 0x4 - core index']
  #allocation1 [shape = 'u32[144,128]{1,0:T(1,128)}', space=vmem, size = 0x12000, scoped, tag = 'internal scratch']
  %s0 = inlined_call_operand.vmem [shape: bf16[64,64], index: 0, kind: input, shape index: {}]
  %s1 = inlined_call_operand.vmem [shape: bf16[64,128], index: 1, kind: input, shape index: {}]
  %s2 = inlined_call_operand.vmem [shape: f32[64,1], index: 2, kind: input, shape index: {}]
  %s3 = inlined_call_operand.vmem [shape: bf16[64,128], index: 3, kind: output, shape index: {}]
  %s4 = sld [smem:[#allocation0]]
  $region22: #{voxelmorph_forward.18} parent=0
    _
  %s6 = ssub.s32 1, %s4
  %s7 = scalar_select 0, %s6, %s4
  // Predicated region
  $region2: #{voxelmorph_forward.18} parent=0 // pred_check
    _
  $region3: #{voxelmorph_forward.18} parent=0 // pred_check_branch
    %9 = sbr.rel (0) target = $region5
  $region4: #{voxelmorph_forward.18} parent=0 // pred_region
    _
  $region5: #{voxelmorph_forward.18} parent=0 // pred_fallthru
    _
  // Predicated region
  $region6: #{voxelmorph_forward.18} parent=0 // pred_check
    _
  $region7: #{voxelmorph_forward.18} parent=0 // pred_check_branch
    %11 = sbr.rel (0) target = $region9
  $region8: #{voxelmorph_forward.18} parent=0 // pred_region
    _
  $region9: #{voxelmorph_forward.18} parent=0 // pred_fallthru
    _
  // Predicated region
  $region10: #{voxelmorph_forward.18} parent=0 // pred_check
    _
  $region11: #{voxelmorph_forward.18} parent=0 // pred_check_branch
    %13 = sbr.rel (0) target = $region13
  $region12: #{voxelmorph_forward.18} parent=0 // pred_region
    _
  $region13: #{voxelmorph_forward.18} parent=0 // pred_fallthru
    _
  %v15 = vld [vmem:[%s0] sm:$0xf]
  %v16 = vld [vmem:[%s0 + $0x4] sm:$0xf]
  %v17 = vld [vmem:[%s0 + $0x8] sm:$0xf]
  %v18 = vld [vmem:[%s0 + $0xc] sm:$0xf]
  %v19 = vld [vmem:[%s0 + $0x10] sm:$0xf]
  %v20 = vld [vmem:[%s0 + $0x14] sm:$0xf]
  %v21 = vld [vmem:[%s0 + $0x18] sm:$0xf]
  %v22 = vld [vmem:[%s0 + $0x1c] sm:$0xf]
  %v23 = vld [vmem:[%s1] sm:$0xf]
  %v24 = vld [vmem:[%s1 + $0x4] sm:$0xf]
  %v25 = vld [vmem:[%s1 + $0x8] sm:$0xf]
  %v26 = vld [vmem:[%s1 + $0xc] sm:$0xf]
  %v27 = vld [vmem:[%s1 + $0x10] sm:$0xf]
  %v28 = vld [vmem:[%s1 + $0x14] sm:$0xf]
  %v29 = vld [vmem:[%s1 + $0x18] sm:$0xf]
  %v30 = vld [vmem:[%s1 + $0x1c] sm:$0xf]
  %v31 = vld [vmem:[%s2] sm:$0xff]
  %v32 = vld [vmem:[%s2 + $0x8] sm:$0xff]
  %v33 = vld [vmem:[%s2 + $0x10] sm:$0xff]
  %v34 = vld [vmem:[%s2 + $0x18] sm:$0xff]
  %v35 = vld [vmem:[%s2 + $0x20] sm:$0xff]
  %v36 = vld [vmem:[%s2 + $0x28] sm:$0xff]
  %v37 = vld [vmem:[%s2 + $0x30] sm:$0xff]
  %v38 = vld [vmem:[%s2 + $0x38] sm:$0xff]
  %40 = vset.pattern.permute.xlu0 0
  %41 = vperm.xlu0 %40, %v31
  %v42 = vpop.permute.xlu0 %41
  %45 = vset.pattern.permute.xlu0 0
  %46 = vperm.xlu0 %45, %v32
  %v47 = vpop.permute.xlu0 %46
  %50 = vset.pattern.permute.xlu0 0
  %51 = vperm.xlu0 %50, %v33
  %v52 = vpop.permute.xlu0 %51
  %55 = vset.pattern.permute.xlu0 0
  %56 = vperm.xlu0 %55, %v34
  %v57 = vpop.permute.xlu0 %56
  %60 = vset.pattern.permute.xlu0 0
  %61 = vperm.xlu0 %60, %v35
  %v62 = vpop.permute.xlu0 %61
  %65 = vset.pattern.permute.xlu0 0
  %66 = vperm.xlu0 %65, %v36
  %v67 = vpop.permute.xlu0 %66
  %70 = vset.pattern.permute.xlu0 0
  %71 = vperm.xlu0 %70, %v37
  %v72 = vpop.permute.xlu0 %71
  %75 = vset.pattern.permute.xlu0 0
  %76 = vperm.xlu0 %75, %v38
  %v77 = vpop.permute.xlu0 %76
  %v87 = vunpack.c.l.b16 %v15
  %v88 = vunpack.c.l.b16 %v16
  %v89 = vunpack.c.l.b16 %v17
  %v90 = vunpack.c.l.b16 %v18
  %v91 = vunpack.c.l.b16 %v19
  %v92 = vunpack.c.l.b16 %v20
  %v93 = vunpack.c.l.b16 %v21
  %v94 = vunpack.c.l.b16 %v22
  %v95 = vpack.c.b16 %v88, %v87
  %v96 = vpack.c.b16 %v90, %v89
  %v97 = vpack.c.b16 %v92, %v91
  %v98 = vpack.c.b16 %v94, %v93
  %v107 = vunpack.c.l.b16 %v23
  %v108 = vunpack.c.l.b16 %v24
  %v109 = vunpack.c.l.b16 %v25
  %v110 = vunpack.c.l.b16 %v26
  %v111 = vunpack.c.l.b16 %v27
  %v112 = vunpack.c.l.b16 %v28
  %v113 = vunpack.c.l.b16 %v29
  %v114 = vunpack.c.l.b16 %v30
  %v115 = vpack.c.b16 %v108, %v107
  %v116 = vpack.c.b16 %v110, %v109
  %v117 = vpack.c.b16 %v112, %v111
  %v118 = vpack.c.b16 %v114, %v113
  %vm123 = vcmask 523264
  %v125 = vsel %vm123, %v95, 0
  %v128 = vsel %vm123, %v96, 0
  %v131 = vsel %vm123, %v97, 0
  %v134 = vsel %vm123, %v98, 0
  %136 = vmatprep.subr.bf16.mxu0 0
  %137 = vmatpush1.bf16.msra.mxu0 %v115
  %138 = vmatprep.subr.bf16.mxu0 0
  %139 = vmatpush1.bf16.msra.mxu0 %v116
  %140 = vmatprep.subr.bf16.mxu0 0
  %141 = vmatpush1.bf16.msra.mxu0 %v117
  %142 = vmatprep.subr.bf16.mxu0 0
  %143 = vmatpush1.bf16.msra.mxu0 %v118
  %144 = vmatprep.subr.bf16.mxu0 0
  %145 = vmatpush1.bf16.msra.mxu0 0
  %146 = vmatprep.subr.bf16.mxu0 0
  %147 = vmatpush1.bf16.msra.mxu0 0
  %148 = vmatprep.subr.bf16.mxu0 0
  %149 = vmatpush1.bf16.msra.mxu0 0
  %150 = vmatprep.subr.bf16.mxu0 0
  %151 = vmatpush1.bf16.msra.mxu0 0
  %152 = vmatprep.subr.bf16.mxu0 0
  %153 = vmatpush1.bf16.msra.mxu0 0
  %154 = vmatprep.subr.bf16.mxu0 0
  %155 = vmatpush1.bf16.msra.mxu0 0
  %156 = vmatprep.subr.bf16.mxu0 0
  %157 = vmatpush1.bf16.msra.mxu0 0
  %158 = vmatprep.subr.bf16.mxu0 0
  %159 = vmatpush1.bf16.msra.mxu0 0
  %160 = vmatprep.subr.bf16.mxu0 0
  %161 = vmatpush1.bf16.msra.mxu0 0
  %162 = vmatprep.subr.bf16.mxu0 0
  %163 = vmatpush1.bf16.msra.mxu0 0
  %164 = vmatprep.subr.bf16.mxu0 0
  %165 = vmatpush1.bf16.msra.mxu0 0
  %166 = vmatprep.subr.bf16.mxu0 0
  %167 = vmatpush1.bf16.msra.mxu0 0
  %168 = vmatprep.mubr.bf16.mxu0 0
  %169 = vmatmul.mubr.bf16.gmra.mrb[0].mxu0 %v125
  %v170 = vpop.f32.mrb[0].mxu0
  %v171 = vadd.f32 %v42, %v170
  %v172 = vpop.f32.mrb[0].mxu0
  %v173 = vpop.f32.mrb[0].mxu0
  %v174 = vadd.f32 %v47, %v173
  %v175 = vpop.f32.mrb[0].mxu0
  %176 = vmatprep.mubr.bf16.mxu0 0
  %177 = vmatmul.mubr.bf16.gmra.mrb[0].mxu0 %v128
  %v178 = vpop.f32.mrb[0].mxu0
  %v179 = vadd.f32 %v52, %v178
  %v180 = vpop.f32.mrb[0].mxu0
  %v181 = vpop.f32.mrb[0].mxu0
  %v182 = vadd.f32 %v57, %v181
  %v183 = vpop.f32.mrb[0].mxu0
  %184 = vmatprep.mubr.bf16.mxu0 0
  %185 = vmatmul.mubr.bf16.gmra.mrb[0].mxu0 %v131
  %v186 = vpop.f32.mrb[0].mxu0
  %v187 = vadd.f32 %v62, %v186
  %v188 = vpop.f32.mrb[0].mxu0
  %v189 = vpop.f32.mrb[0].mxu0
  %v190 = vadd.f32 %v67, %v189
  %v191 = vpop.f32.mrb[0].mxu0
  %192 = vmatprep.mubr.bf16.mxu0 0
  %193 = vmatmul.mubr.bf16.gmra.mrb[0].mxu0 %v134
  %v194 = vpop.f32.mrb[0].mxu0
  %v195 = vadd.f32 %v72, %v194
  %v196 = vpop.f32.mrb[0].mxu0
  %v197 = vpop.f32.mrb[0].mxu0
  %v198 = vadd.f32 %v77, %v197
  %v199 = vpop.f32.mrb[0].mxu0
  %200 = vdwg.mxu0
  %vm201 = vcmp.gt.f32.partialorder %v171, 0.0
  %vm202 = vcmp.gt.f32.partialorder %v174, 0.0
  %vm203 = vcmp.gt.f32.partialorder %v179, 0.0
  %vm204 = vcmp.gt.f32.partialorder %v182, 0.0
  %vm205 = vcmp.gt.f32.partialorder %v187, 0.0
  %vm206 = vcmp.gt.f32.partialorder %v190, 0.0
  %vm207 = vcmp.gt.f32.partialorder %v195, 0.0
  %vm208 = vcmp.gt.f32.partialorder %v198, 0.0
  %v209 = vmul.f32 %v171, 0.2
  %v210 = vmul.f32 %v174, 0.2
  %v211 = vmul.f32 %v179, 0.2
  %v212 = vmul.f32 %v182, 0.2
  %v213 = vmul.f32 %v187, 0.2
  %v214 = vmul.f32 %v190, 0.2
  %v215 = vmul.f32 %v195, 0.2
  %v216 = vmul.f32 %v198, 0.2
  %v217 = vsel %vm201, %v171, %v209
  %v218 = vsel %vm202, %v174, %v210
  %v219 = vsel %vm203, %v179, %v211
  %v220 = vsel %vm204, %v182, %v212
  %v221 = vsel %vm205, %v187, %v213
  %v222 = vsel %vm206, %v190, %v214
  %v223 = vsel %vm207, %v195, %v215
  %v224 = vsel %vm208, %v198, %v216
  %v225 = vpack.c.bf16 %v218, %v217
  %v226 = vpack.c.bf16 %v220, %v219
  %v227 = vpack.c.bf16 %v222, %v221
  %v228 = vpack.c.bf16 %v224, %v223
  %v233 = vunpack.c.l.b16 %v225
  %v234 = vunpack.c.h.b16 %v225
  %v235 = vunpack.c.l.b16 %v226
  %v236 = vunpack.c.h.b16 %v226
  %v237 = vunpack.c.l.b16 %v227
  %v238 = vunpack.c.h.b16 %v227
  %v239 = vunpack.c.l.b16 %v228
  %v240 = vunpack.c.h.b16 %v228
  %v241 = vpack.c.b16 %v233, %v233
  %v242 = vpack.c.b16 %v234, %v234
  %v243 = vpack.c.b16 %v235, %v235
  %v244 = vpack.c.b16 %v236, %v236
  %v245 = vpack.c.b16 %v237, %v237
  %v246 = vpack.c.b16 %v238, %v238
  %v247 = vpack.c.b16 %v239, %v239
  %v248 = vpack.c.b16 %v240, %v240
  %257 = vst [vmem:[%s3] sm:$0xf] %v241
  %258 = vst [vmem:[%s3 + $0x4] sm:$0xf] %v242
  %259 = vst [vmem:[%s3 + $0x8] sm:$0xf] %v243
  %260 = vst [vmem:[%s3 + $0xc] sm:$0xf] %v244
  %261 = vst [vmem:[%s3 + $0x10] sm:$0xf] %v245
  %262 = vst [vmem:[%s3 + $0x14] sm:$0xf] %v246
  %263 = vst [vmem:[%s3 + $0x18] sm:$0xf] %v247
  %264 = vst [vmem:[%s3 + $0x1c] sm:$0xf] %v248
  // Predicated region
  $region14: #{voxelmorph_forward.18} parent=0 // pred_check
    _
  $region15: #{voxelmorph_forward.18} parent=0 // pred_check_branch
    %266 = sbr.rel (0) target = $region17
  $region16: #{voxelmorph_forward.18} parent=0 // pred_region
    _
  $region17: #{voxelmorph_forward.18} parent=0 // pred_fallthru
    _
  // Predicated region
  $region18: #{voxelmorph_forward.18} parent=0 // pred_check
    _
  $region19: #{voxelmorph_forward.18} parent=0 // pred_check_branch
    %268 = sbr.rel (0) target = $region21
  $region20: #{voxelmorph_forward.18} parent=0 // pred_region
    _
  $region21: #{voxelmorph_forward.18} parent=0 // pred_fallthru
    _

// kernel: squeeze.70
$region0: #{squeeze.70}
  %s0 = inlined_call_operand.vmem [shape: bf16[8,128], index: 0, kind: input, shape index: {}]
  %s1 = inlined_call_operand.vmem [shape: bf16[8,2,8,8,1], index: 1, kind: output, shape index: {}]
  $region1: #{squeeze.70} parent=0
    #allocation0 [shape = 'u8[65536]{0}', space=vmem, size = 0x10000, scoped, tag = 'scoped mem for output reshape']
    #allocation1 [shape = 'u8[4096]{0}', space=vmem, size = 0x1000, scoped, tag = 'scoped mem for input reshape']
    %s3 = smul.u32 4, 2
    %s4 = sshllo.u32 0, %s3
    %s5 = sshrl.u32 %s4, 1
    %s6 = sor.u32 %s4, %s5
    %s7 = sand.u32 %s6, 85
    %s8 = sshrl.u32 %s7, 1
    %s9 = sor.u32 %s7, %s8
    %s10 = sand.u32 51, %s9
    %s11 = sshrl.u32 %s10, 2
    %s12 = sor.u32 %s10, %s11
    %s13 = sand.u32 15, %s12
    %v14 = vld [vmem:[%s0] sm:%s13]
    %v15 = vunpack.c.l.bf16 %v14
    %v16 = vunpack.c.h.bf16 %v14
    %17 = vst [vmem:[#allocation1] sm:%s4] %v15
    %v18 = vld [vmem:[#allocation1] sm:$0xff]
    %vm19 = vcmask 64512
    %20 = vst.msk [vmem:[#allocation0] ss:$16 sm:$0x3] %vm19, %v18
    %21 = vst.msk [vmem:[#allocation0] ss:$16 sm:$0xc] %vm19, %v18
    %22 = vst.msk [vmem:[#allocation0] ss:$16 sm:$0x30] %vm19, %v18
    %23 = vst.msk [vmem:[#allocation0] ss:$16 sm:$0xc0] %vm19, %v18
    %v24 = vld [vmem:[#allocation1] sm:$0xff]
    %25 = vrot.lane.b32.xlu0 %v24, 120
    %v26 = vpop.permute.xlu0 %25
    %vm27 = vcmask 64512
    %s28 = scalar_lea.vmem [#allocation0], 1
    %29 = vst.msk [vmem:[%s28] ss:$16 sm:$0x3] %vm27, %v26
    %s30 = scalar_lea.vmem [#allocation0], 1
    %31 = vst.msk [vmem:[%s30] ss:$16 sm:$0xc] %vm27, %v26
    %s32 = scalar_lea.vmem [#allocation0], 1
    %33 = vst.msk [vmem:[%s32] ss:$16 sm:$0x30] %vm27, %v26
    %s34 = scalar_lea.vmem [#allocation0], 1
    %35 = vst.msk [vmem:[%s34] ss:$16 sm:$0xc0] %vm27, %v26
    %v36 = vld [vmem:[#allocation1] sm:$0xff]
    %37 = vrot.lane.b32.xlu0 %v36, 112
    %v38 = vpop.permute.xlu0 %37
    %vm39 = vcmask 64512
    %s40 = scalar_lea.vmem [#allocation0], 2
    %41 = vst.msk [vmem:[%s40] ss:$16 sm:$0x3] %vm39, %v38
    %s42 = scalar_lea.vmem [#allocation0], 2
    %43 = vst.msk [vmem:[%s42] ss:$16 sm:$0xc] %vm39, %v38
    %s44 = scalar_lea.vmem [#allocation0], 2
    %45 = vst.msk [vmem:[%s44] ss:$16 sm:$0x30] %vm39, %v38
    %s46 = scalar_lea.vmem [#allocation0], 2
    %47 = vst.msk [vmem:[%s46] ss:$16 sm:$0xc0] %vm39, %v38
    %v48 = vld [vmem:[#allocation1] sm:$0xff]
    %49 = vrot.lane.b32.xlu0 %v48, 104
    %v50 = vpop.permute.xlu0 %49
    %vm51 = vcmask 64512
    %s52 = scalar_lea.vmem [#allocation0], 3
    %53 = vst.msk [vmem:[%s52] ss:$16 sm:$0x3] %vm51, %v50
    %s54 = scalar_lea.vmem [#allocation0], 3
    %55 = vst.msk [vmem:[%s54] ss:$16 sm:$0xc] %vm51, %v50
    %s56 = scalar_lea.vmem [#allocation0], 3
    %57 = vst.msk [vmem:[%s56] ss:$16 sm:$0x30] %vm51, %v50
    %s58 = scalar_lea.vmem [#allocation0], 3
    %59 = vst.msk [vmem:[%s58] ss:$16 sm:$0xc0] %vm51, %v50
    %v60 = vld [vmem:[#allocation1] sm:$0xff]
    %61 = vrot.lane.b32.xlu0 %v60, 96
    %v62 = vpop.permute.xlu0 %61
    %vm63 = vcmask 64512
    %s64 = scalar_lea.vmem [#allocation0], 4
    %65 = vst.msk [vmem:[%s64] ss:$16 sm:$0x3] %vm63, %v62
    %s66 = scalar_lea.vmem [#allocation0], 4
    %67 = vst.msk [vmem:[%s66] ss:$16 sm:$0xc] %vm63, %v62
    %s68 = scalar_lea.vmem [#allocation0], 4
    %69 = vst.msk [vmem:[%s68] ss:$16 sm:$0x30] %vm63, %v62
    %s70 = scalar_lea.vmem [#allocation0], 4
    %71 = vst.msk [vmem:[%s70] ss:$16 sm:$0xc0] %vm63, %v62
    %v72 = vld [vmem:[#allocation1] sm:$0xff]
    %73 = vrot.lane.b32.xlu0 %v72, 88
    %v74 = vpop.permute.xlu0 %73
    %vm75 = vcmask 64512
    %s76 = scalar_lea.vmem [#allocation0], 5
    %77 = vst.msk [vmem:[%s76] ss:$16 sm:$0x3] %vm75, %v74
    %s78 = scalar_lea.vmem [#allocation0], 5
    %79 = vst.msk [vmem:[%s78] ss:$16 sm:$0xc] %vm75, %v74
    %s80 = scalar_lea.vmem [#allocation0], 5
    %81 = vst.msk [vmem:[%s80] ss:$16 sm:$0x30] %vm75, %v74
    %s82 = scalar_lea.vmem [#allocation0], 5
    %83 = vst.msk [vmem:[%s82] ss:$16 sm:$0xc0] %vm75, %v74
    %v84 = vld [vmem:[#allocation1] sm:$0xff]
    %85 = vrot.lane.b32.xlu0 %v84, 80
    %v86 = vpop.permute.xlu0 %85
    %vm87 = vcmask 64512
    %s88 = scalar_lea.vmem [#allocation0], 6
    %89 = vst.msk [vmem:[%s88] ss:$16 sm:$0x3] %vm87, %v86
    %s90 = scalar_lea.vmem [#allocation0], 6
    %91 = vst.msk [vmem:[%s90] ss:$16 sm:$0xc] %vm87, %v86
    %s92 = scalar_lea.vmem [#allocation0], 6
    %93 = vst.msk [vmem:[%s92] ss:$16 sm:$0x30] %vm87, %v86
    %s94 = scalar_lea.vmem [#allocation0], 6
    %95 = vst.msk [vmem:[%s94] ss:$16 sm:$0xc0] %vm87, %v86
    %v96 = vld [vmem:[#allocation1] sm:$0xff]
    %97 = vrot.lane.b32.xlu0 %v96, 72
    %v98 = vpop.permute.xlu0 %97
    %vm99 = vcmask 64512
    %s100 = scalar_lea.vmem [#allocation0], 7
    %101 = vst.msk [vmem:[%s100] ss:$16 sm:$0x3] %vm99, %v98
    %s102 = scalar_lea.vmem [#allocation0], 7
    %103 = vst.msk [vmem:[%s102] ss:$16 sm:$0xc] %vm99, %v98
    %s104 = scalar_lea.vmem [#allocation0], 7
    %105 = vst.msk [vmem:[%s104] ss:$16 sm:$0x30] %vm99, %v98
    %s106 = scalar_lea.vmem [#allocation0], 7
    %107 = vst.msk [vmem:[%s106] ss:$16 sm:$0xc0] %vm99, %v98
    %v108 = vld [vmem:[#allocation1] sm:$0xff]
    %109 = vrot.lane.b32.xlu0 %v108, 64
    %v110 = vpop.permute.xlu0 %109
    %vm111 = vcmask 64512
    %s112 = scalar_lea.vmem [#allocation0], 8
    %113 = vst.msk [vmem:[%s112] ss:$16 sm:$0x3] %vm111, %v110
    %s114 = scalar_lea.vmem [#allocation0], 8
    %115 = vst.msk [vmem:[%s114] ss:$16 sm:$0xc] %vm111, %v110
    %s116 = scalar_lea.vmem [#allocation0], 8
    %117 = vst.msk [vmem:[%s116] ss:$16 sm:$0x30] %vm111, %v110
    %s118 = scalar_lea.vmem [#allocation0], 8
    %119 = vst.msk [vmem:[%s118] ss:$16 sm:$0xc0] %vm111, %v110
    %v120 = vld [vmem:[#allocation1] sm:$0xff]
    %121 = vrot.lane.b32.xlu0 %v120, 56
    %v122 = vpop.permute.xlu0 %121
    %vm123 = vcmask 64512
    %s124 = scalar_lea.vmem [#allocation0], 9
    %125 = vst.msk [vmem:[%s124] ss:$16 sm:$0x3] %vm123, %v122
    %s126 = scalar_lea.vmem [#allocation0], 9
    %127 = vst.msk [vmem:[%s126] ss:$16 sm:$0xc] %vm123, %v122
    %s128 = scalar_lea.vmem [#allocation0], 9
    %129 = vst.msk [vmem:[%s128] ss:$16 sm:$0x30] %vm123, %v122
    %s130 = scalar_lea.vmem [#allocation0], 9
    %131 = vst.msk [vmem:[%s130] ss:$16 sm:$0xc0] %vm123, %v122
    %v132 = vld [vmem:[#allocation1] sm:$0xff]
    %133 = vrot.lane.b32.xlu0 %v132, 48
    %v134 = vpop.permute.xlu0 %133
    %vm135 = vcmask 64512
    %s136 = scalar_lea.vmem [#allocation0], 10
    %137 = vst.msk [vmem:[%s136] ss:$16 sm:$0x3] %vm135, %v134
    %s138 = scalar_lea.vmem [#allocation0], 10
    %139 = vst.msk [vmem:[%s138] ss:$16 sm:$0xc] %vm135, %v134
    %s140 = scalar_lea.vmem [#allocation0], 10
    %141 = vst.msk [vmem:[%s140] ss:$16 sm:$0x30] %vm135, %v134
    %s142 = scalar_lea.vmem [#allocation0], 10
    %143 = vst.msk [vmem:[%s142] ss:$16 sm:$0xc0] %vm135, %v134
    %v144 = vld [vmem:[#allocation1] sm:$0xff]
    %145 = vrot.lane.b32.xlu0 %v144, 40
    %v146 = vpop.permute.xlu0 %145
    %vm147 = vcmask 64512
    %s148 = scalar_lea.vmem [#allocation0], 11
    %149 = vst.msk [vmem:[%s148] ss:$16 sm:$0x3] %vm147, %v146
    %s150 = scalar_lea.vmem [#allocation0], 11
    %151 = vst.msk [vmem:[%s150] ss:$16 sm:$0xc] %vm147, %v146
    %s152 = scalar_lea.vmem [#allocation0], 11
    %153 = vst.msk [vmem:[%s152] ss:$16 sm:$0x30] %vm147, %v146
    %s154 = scalar_lea.vmem [#allocation0], 11
    %155 = vst.msk [vmem:[%s154] ss:$16 sm:$0xc0] %vm147, %v146
    %v156 = vld [vmem:[#allocation1] sm:$0xff]
    %157 = vrot.lane.b32.xlu0 %v156, 32
    %v158 = vpop.permute.xlu0 %157
    %vm159 = vcmask 64512
    %s160 = scalar_lea.vmem [#allocation0], 12
    %161 = vst.msk [vmem:[%s160] ss:$16 sm:$0x3] %vm159, %v158
    %s162 = scalar_lea.vmem [#allocation0], 12
    %163 = vst.msk [vmem:[%s162] ss:$16 sm:$0xc] %vm159, %v158
    %s164 = scalar_lea.vmem [#allocation0], 12
    %165 = vst.msk [vmem:[%s164] ss:$16 sm:$0x30] %vm159, %v158
    %s166 = scalar_lea.vmem [#allocation0], 12
    %167 = vst.msk [vmem:[%s166] ss:$16 sm:$0xc0] %vm159, %v158
    %v168 = vld [vmem:[#allocation1] sm:$0xff]
    %169 = vrot.lane.b32.xlu0 %v168, 24
    %v170 = vpop.permute.xlu0 %169
    %vm171 = vcmask 64512
    %s172 = scalar_lea.vmem [#allocation0], 13
    %173 = vst.msk [vmem:[%s172] ss:$16 sm:$0x3] %vm171, %v170
    %s174 = scalar_lea.vmem [#allocation0], 13
    %175 = vst.msk [vmem:[%s174] ss:$16 sm:$0xc] %vm171, %v170
    %s176 = scalar_lea.vmem [#allocation0], 13
    %177 = vst.msk [vmem:[%s176] ss:$16 sm:$0x30] %vm171, %v170
    %s178 = scalar_lea.vmem [#allocation0], 13
    %179 = vst.msk [vmem:[%s178] ss:$16 sm:$0xc0] %vm171, %v170
    %v180 = vld [vmem:[#allocation1] sm:$0xff]
    %181 = vrot.lane.b32.xlu0 %v180, 16
    %v182 = vpop.permute.xlu0 %181
    %vm183 = vcmask 64512
    %s184 = scalar_lea.vmem [#allocation0], 14
    %185 = vst.msk [vmem:[%s184] ss:$16 sm:$0x3] %vm183, %v182
    %s186 = scalar_lea.vmem [#allocation0], 14
    %187 = vst.msk [vmem:[%s186] ss:$16 sm:$0xc] %vm183, %v182
    %s188 = scalar_lea.vmem [#allocation0], 14
    %189 = vst.msk [vmem:[%s188] ss:$16 sm:$0x30] %vm183, %v182
    %s190 = scalar_lea.vmem [#allocation0], 14
    %191 = vst.msk [vmem:[%s190] ss:$16 sm:$0xc0] %vm183, %v182
    %v192 = vld [vmem:[#allocation1] sm:$0xff]
    %193 = vrot.lane.b32.xlu0 %v192, 8
    %v194 = vpop.permute.xlu0 %193
    %vm195 = vcmask 64512
    %s196 = scalar_lea.vmem [#allocation0], 15
    %197 = vst.msk [vmem:[%s196] ss:$16 sm:$0x3] %vm195, %v194
    %s198 = scalar_lea.vmem [#allocation0], 15
    %199 = vst.msk [vmem:[%s198] ss:$16 sm:$0xc] %vm195, %v194
    %s200 = scalar_lea.vmem [#allocation0], 15
    %201 = vst.msk [vmem:[%s200] ss:$16 sm:$0x30] %vm195, %v194
    %s202 = scalar_lea.vmem [#allocation0], 15
    %203 = vst.msk [vmem:[%s202] ss:$16 sm:$0xc0] %vm195, %v194
    %s205 = smul.u32 4, 2
    %s206 = sshllo.u32 0, %s205
    %s207 = sshrl.u32 %s205, 1
    %v208 = vld [vmem:[#allocation0] sm:%s206]
    %v209 = vpack.c.bf16 0.0, %v208
    %s210 = sshllo.u32 0, %s207
    %211 = vst [vmem:[%s1] sm:%s210] %v209
    %s212 = scalar_lea.vmem [#allocation0], 8
    %v213 = vld [vmem:[%s212] sm:%s206]
    %v214 = vpack.c.bf16 0.0, %v213
    %s215 = sshllo.u32 0, %s207
    %s216 = scalar_lea.vmem %s1, 4
    %217 = vst [vmem:[%s216] sm:%s215] %v214
    %s218 = scalar_lea.vmem [#allocation0], 16
    %v219 = vld [vmem:[%s218] sm:%s206]
    %v220 = vpack.c.bf16 0.0, %v219
    %s221 = sshllo.u32 0, %s207
    %s222 = smul.addr 4, 2
    %s223 = scalar_lea.vmem %s1, %s222
    %224 = vst [vmem:[%s223] sm:%s221] %v220
    %s225 = scalar_lea.vmem [#allocation0], 24
    %v226 = vld [vmem:[%s225] sm:%s206]
    %v227 = vpack.c.bf16 0.0, %v226
    %s228 = sshllo.u32 0, %s207
    %s229 = smul.addr 4, 3
    %s230 = scalar_lea.vmem %s1, %s229
    %231 = vst [vmem:[%s230] sm:%s228] %v227
    %s232 = scalar_lea.vmem [#allocation0], 32
    %v233 = vld [vmem:[%s232] sm:%s206]
    %v234 = vpack.c.bf16 0.0, %v233
    %s235 = sshllo.u32 0, %s207
    %s236 = smul.addr 4, 4
    %s237 = scalar_lea.vmem %s1, %s236
    %238 = vst [vmem:[%s237] sm:%s235] %v234
    %s239 = scalar_lea.vmem [#allocation0], 40
    %v240 = vld [vmem:[%s239] sm:%s206]
    %v241 = vpack.c.bf16 0.0, %v240
    %s242 = sshllo.u32 0, %s207
    %s243 = smul.addr 4, 5
    %s244 = scalar_lea.vmem %s1, %s243
    %245 = vst [vmem:[%s244] sm:%s242] %v241
    %s246 = scalar_lea.vmem [#allocation0], 48
    %v247 = vld [vmem:[%s246] sm:%s206]
    %v248 = vpack.c.bf16 0.0, %v247
    %s249 = sshllo.u32 0, %s207
    %s250 = smul.addr 4, 6
    %s251 = scalar_lea.vmem %s1, %s250
    %252 = vst [vmem:[%s251] sm:%s249] %v248
    %s253 = scalar_lea.vmem [#allocation0], 56
    %v254 = vld [vmem:[%s253] sm:%s206]
    %v255 = vpack.c.bf16 0.0, %v254
    %s256 = sshllo.u32 0, %s207
    %s257 = smul.addr 4, 7
    %s258 = scalar_lea.vmem %s1, %s257
    %259 = vst [vmem:[%s258] sm:%s256] %v255
    %s260 = scalar_lea.vmem [#allocation0], 64
    %v261 = vld [vmem:[%s260] sm:%s206]
    %v262 = vpack.c.bf16 0.0, %v261
    %s263 = sshllo.u32 0, %s207
    %s264 = smul.addr 4, 8
    %s265 = scalar_lea.vmem %s1, %s264
    %266 = vst [vmem:[%s265] sm:%s263] %v262
    %s267 = scalar_lea.vmem [#allocation0], 72
    %v268 = vld [vmem:[%s267] sm:%s206]
    %v269 = vpack.c.bf16 0.0, %v268
    %s270 = sshllo.u32 0, %s207
    %s271 = smul.addr 4, 9
    %s272 = scalar_lea.vmem %s1, %s271
    %273 = vst [vmem:[%s272] sm:%s270] %v269
    %s274 = scalar_lea.vmem [#allocation0], 80
    %v275 = vld [vmem:[%s274] sm:%s206]
    %v276 = vpack.c.bf16 0.0, %v275
    %s277 = sshllo.u32 0, %s207
    %s278 = smul.addr 4, 10
    %s279 = scalar_lea.vmem %s1, %s278
    %280 = vst [vmem:[%s279] sm:%s277] %v276
    %s281 = scalar_lea.vmem [#allocation0], 88
    %v282 = vld [vmem:[%s281] sm:%s206]
    %v283 = vpack.c.bf16 0.0, %v282
    %s284 = sshllo.u32 0, %s207
    %s285 = smul.addr 4, 11
    %s286 = scalar_lea.vmem %s1, %s285
    %287 = vst [vmem:[%s286] sm:%s284] %v283
    %s288 = scalar_lea.vmem [#allocation0], 96
    %v289 = vld [vmem:[%s288] sm:%s206]
    %v290 = vpack.c.bf16 0.0, %v289
    %s291 = sshllo.u32 0, %s207
    %s292 = smul.addr 4, 12
    %s293 = scalar_lea.vmem %s1, %s292
    %294 = vst [vmem:[%s293] sm:%s291] %v290
    %s295 = scalar_lea.vmem [#allocation0], 104
    %v296 = vld [vmem:[%s295] sm:%s206]
    %v297 = vpack.c.bf16 0.0, %v296
    %s298 = sshllo.u32 0, %s207
    %s299 = smul.addr 4, 13
    %s300 = scalar_lea.vmem %s1, %s299
    %301 = vst [vmem:[%s300] sm:%s298] %v297
    %s302 = scalar_lea.vmem [#allocation0], 112
    %v303 = vld [vmem:[%s302] sm:%s206]
    %v304 = vpack.c.bf16 0.0, %v303
    %s305 = sshllo.u32 0, %s207
    %s306 = smul.addr 4, 14
    %s307 = scalar_lea.vmem %s1, %s306
    %308 = vst [vmem:[%s307] sm:%s305] %v304
    %s309 = scalar_lea.vmem [#allocation0], 120
    %v310 = vld [vmem:[%s309] sm:%s206]
    %v311 = vpack.c.bf16 0.0, %v310
    %s312 = sshllo.u32 0, %s207
    %s313 = smul.addr 4, 15
    %s314 = scalar_lea.vmem %s1, %s313
    %315 = vst [vmem:[%s314] sm:%s312] %v311

// kernel: voxelmorph_forward.19
$region0: #{voxelmorph_forward.19}
  #allocation0 [shape = 'u32[]', space=smem, size = 0x4, offset = 0x4, fixed_abs, tag = 'smem constant byte address 0x4 - core index']
  #allocation1 [shape = 'u32[144,128]{1,0:T(1,128)}', space=vmem, size = 0x12000, scoped, tag = 'internal scratch']
  %s0 = inlined_call_operand.vmem [shape: bf16[32,96], index: 0, kind: input, shape index: {}]
  %s1 = inlined_call_operand.vmem [shape: bf16[96,128], index: 1, kind: input, shape index: {}]
  %s2 = inlined_call_operand.vmem [shape: f32[32,1], index: 2, kind: input, shape index: {}]
  %s3 = inlined_call_operand.vmem [shape: bf16[32,128], index: 3, kind: output, shape index: {}]
  %s4 = sld [smem:[#allocation0]]
  $region22: #{voxelmorph_forward.19} parent=0
    _
  %s6 = ssub.s32 1, %s4
  %s7 = scalar_select 0, %s6, %s4
  // Predicated region
  $region2: #{voxelmorph_forward.19} parent=0 // pred_check
    _
  $region3: #{voxelmorph_forward.19} parent=0 // pred_check_branch
    %9 = sbr.rel (0) target = $region5
  $region4: #{voxelmorph_forward.19} parent=0 // pred_region
    _
  $region5: #{voxelmorph_forward.19} parent=0 // pred_fallthru
    _
  // Predicated region
  $region6: #{voxelmorph_forward.19} parent=0 // pred_check
    _
  $region7: #{voxelmorph_forward.19} parent=0 // pred_check_branch
    %11 = sbr.rel (0) target = $region9
  $region8: #{voxelmorph_forward.19} parent=0 // pred_region
    _
  $region9: #{voxelmorph_forward.19} parent=0 // pred_fallthru
    _
  // Predicated region
  $region10: #{voxelmorph_forward.19} parent=0 // pred_check
    _
  $region11: #{voxelmorph_forward.19} parent=0 // pred_check_branch
    %13 = sbr.rel (0) target = $region13
  $region12: #{voxelmorph_forward.19} parent=0 // pred_region
    _
  $region13: #{voxelmorph_forward.19} parent=0 // pred_fallthru
    _
  %v15 = vld [vmem:[%s0] sm:$0xf]
  %v16 = vld [vmem:[%s0 + $0x4] sm:$0xf]
  %v17 = vld [vmem:[%s0 + $0x8] sm:$0xf]
  %v18 = vld [vmem:[%s0 + $0xc] sm:$0xf]
  %v19 = vld [vmem:[%s1] sm:$0xf]
  %v20 = vld [vmem:[%s1 + $0x4] sm:$0xf]
  %v21 = vld [vmem:[%s1 + $0x8] sm:$0xf]
  %v22 = vld [vmem:[%s1 + $0xc] sm:$0xf]
  %v23 = vld [vmem:[%s1 + $0x10] sm:$0xf]
  %v24 = vld [vmem:[%s1 + $0x14] sm:$0xf]
  %v25 = vld [vmem:[%s1 + $0x18] sm:$0xf]
  %v26 = vld [vmem:[%s1 + $0x1c] sm:$0xf]
  %v27 = vld [vmem:[%s1 + $0x20] sm:$0xf]
  %v28 = vld [vmem:[%s1 + $0x24] sm:$0xf]
  %v29 = vld [vmem:[%s1 + $0x28] sm:$0xf]
  %v30 = vld [vmem:[%s1 + $0x2c] sm:$0xf]
  %v31 = vld [vmem:[%s2] sm:$0xff]
  %v32 = vld [vmem:[%s2 + $0x8] sm:$0xff]
  %v33 = vld [vmem:[%s2 + $0x10] sm:$0xff]
  %v34 = vld [vmem:[%s2 + $0x18] sm:$0xff]
  %36 = vset.pattern.permute.xlu0 0
  %37 = vperm.xlu0 %36, %v31
  %v38 = vpop.permute.xlu0 %37
  %41 = vset.pattern.permute.xlu0 0
  %42 = vperm.xlu0 %41, %v32
  %v43 = vpop.permute.xlu0 %42
  %46 = vset.pattern.permute.xlu0 0
  %47 = vperm.xlu0 %46, %v33
  %v48 = vpop.permute.xlu0 %47
  %51 = vset.pattern.permute.xlu0 0
  %52 = vperm.xlu0 %51, %v34
  %v53 = vpop.permute.xlu0 %52
  %v59 = vunpack.c.l.b16 %v15
  %v60 = vunpack.c.l.b16 %v16
  %v61 = vunpack.c.l.b16 %v17
  %v62 = vunpack.c.l.b16 %v18
  %v63 = vpack.c.b16 %v60, %v59
  %v64 = vpack.c.b16 %v62, %v61
  %v77 = vunpack.c.l.b16 %v19
  %v78 = vunpack.c.l.b16 %v20
  %v79 = vunpack.c.l.b16 %v21
  %v80 = vunpack.c.l.b16 %v22
  %v81 = vunpack.c.l.b16 %v23
  %v82 = vunpack.c.l.b16 %v24
  %v83 = vunpack.c.l.b16 %v25
  %v84 = vunpack.c.l.b16 %v26
  %v85 = vunpack.c.l.b16 %v27
  %v86 = vunpack.c.l.b16 %v28
  %v87 = vunpack.c.l.b16 %v29
  %v88 = vunpack.c.l.b16 %v30
  %v89 = vpack.c.b16 %v78, %v77
  %v90 = vpack.c.b16 %v80, %v79
  %v91 = vpack.c.b16 %v82, %v81
  %v92 = vpack.c.b16 %v84, %v83
  %v93 = vpack.c.b16 %v86, %v85
  %v94 = vpack.c.b16 %v88, %v87
  %vm101 = vcmask 785408
  %v103 = vsel %vm101, %v63, 0
  %v106 = vsel %vm101, %v64, 0
  %108 = vmatprep.subr.bf16.mxu0 0
  %109 = vmatpush1.bf16.msra.mxu0 %v89
  %110 = vmatprep.subr.bf16.mxu0 0
  %111 = vmatpush1.bf16.msra.mxu0 %v90
  %112 = vmatprep.subr.bf16.mxu0 0
  %113 = vmatpush1.bf16.msra.mxu0 %v91
  %114 = vmatprep.subr.bf16.mxu0 0
  %115 = vmatpush1.bf16.msra.mxu0 %v92
  %116 = vmatprep.subr.bf16.mxu0 0
  %117 = vmatpush1.bf16.msra.mxu0 %v93
  %118 = vmatprep.subr.bf16.mxu0 0
  %119 = vmatpush1.bf16.msra.mxu0 %v94
  %120 = vmatprep.subr.bf16.mxu0 0
  %121 = vmatpush1.bf16.msra.mxu0 0
  %122 = vmatprep.subr.bf16.mxu0 0
  %123 = vmatpush1.bf16.msra.mxu0 0
  %124 = vmatprep.subr.bf16.mxu0 0
  %125 = vmatpush1.bf16.msra.mxu0 0
  %126 = vmatprep.subr.bf16.mxu0 0
  %127 = vmatpush1.bf16.msra.mxu0 0
  %128 = vmatprep.subr.bf16.mxu0 0
  %129 = vmatpush1.bf16.msra.mxu0 0
  %130 = vmatprep.subr.bf16.mxu0 0
  %131 = vmatpush1.bf16.msra.mxu0 0
  %132 = vmatprep.subr.bf16.mxu0 0
  %133 = vmatpush1.bf16.msra.mxu0 0
  %134 = vmatprep.subr.bf16.mxu0 0
  %135 = vmatpush1.bf16.msra.mxu0 0
  %136 = vmatprep.subr.bf16.mxu0 0
  %137 = vmatpush1.bf16.msra.mxu0 0
  %138 = vmatprep.subr.bf16.mxu0 0
  %139 = vmatpush1.bf16.msra.mxu0 0
  %140 = vmatprep.mubr.bf16.mxu0 0
  %141 = vmatmul.mubr.bf16.gmra.mrb[0].mxu0 %v103
  %v142 = vpop.f32.mrb[0].mxu0
  %v143 = vadd.f32 %v38, %v142
  %v144 = vpop.f32.mrb[0].mxu0
  %v145 = vpop.f32.mrb[0].mxu0
  %v146 = vadd.f32 %v43, %v145
  %v147 = vpop.f32.mrb[0].mxu0
  %148 = vmatprep.mubr.bf16.mxu0 0
  %149 = vmatmul.mubr.bf16.gmra.mrb[0].mxu0 %v106
  %v150 = vpop.f32.mrb[0].mxu0
  %v151 = vadd.f32 %v48, %v150
  %v152 = vpop.f32.mrb[0].mxu0
  %v153 = vpop.f32.mrb[0].mxu0
  %v154 = vadd.f32 %v53, %v153
  %v155 = vpop.f32.mrb[0].mxu0
  %156 = vdwg.mxu0
  %vm157 = vcmp.gt.f32.partialorder %v143, 0.0
  %vm158 = vcmp.gt.f32.partialorder %v146, 0.0
  %vm159 = vcmp.gt.f32.partialorder %v151, 0.0
  %vm160 = vcmp.gt.f32.partialorder %v154, 0.0
  %v161 = vmul.f32 %v143, 0.2
  %v162 = vmul.f32 %v146, 0.2
  %v163 = vmul.f32 %v151, 0.2
  %v164 = vmul.f32 %v154, 0.2
  %v165 = vsel %vm157, %v143, %v161
  %v166 = vsel %vm158, %v146, %v162
  %v167 = vsel %vm159, %v151, %v163
  %v168 = vsel %vm160, %v154, %v164
  %v169 = vpack.c.bf16 %v166, %v165
  %v170 = vpack.c.bf16 %v168, %v167
  %v173 = vunpack.c.l.b16 %v169
  %v174 = vunpack.c.h.b16 %v169
  %v175 = vunpack.c.l.b16 %v170
  %v176 = vunpack.c.h.b16 %v170
  %v177 = vpack.c.b16 %v173, %v173
  %v178 = vpack.c.b16 %v174, %v174
  %v179 = vpack.c.b16 %v175, %v175
  %v180 = vpack.c.b16 %v176, %v176
  %185 = vst [vmem:[%s3] sm:$0xf] %v177
  %186 = vst [vmem:[%s3 + $0x4] sm:$0xf] %v178
  %187 = vst [vmem:[%s3 + $0x8] sm:$0xf] %v179
  %188 = vst [vmem:[%s3 + $0xc] sm:$0xf] %v180
  // Predicated region
  $region14: #{voxelmorph_forward.19} parent=0 // pred_check
    _
  $region15: #{voxelmorph_forward.19} parent=0 // pred_check_branch
    %190 = sbr.rel (0) target = $region17
  $region16: #{voxelmorph_forward.19} parent=0 // pred_region
    _
  $region17: #{voxelmorph_forward.19} parent=0 // pred_fallthru
    _
  // Predicated region
  $region18: #{voxelmorph_forward.19} parent=0 // pred_check
    _
  $region19: #{voxelmorph_forward.19} parent=0 // pred_check_branch
    %192 = sbr.rel (0) target = $region21
  $region20: #{voxelmorph_forward.19} parent=0 // pred_region
    _
  $region21: #{voxelmorph_forward.19} parent=0 // pred_fallthru
    _

// kernel: voxelmorph_forward.20
$region0: #{voxelmorph_forward.20}
  #allocation0 [shape = 'u32[]', space=smem, size = 0x4, offset = 0x4, fixed_abs, tag = 'smem constant byte address 0x4 - core index']
  #allocation1 [shape = 'u32[144,128]{1,0:T(1,128)}', space=vmem, size = 0x12000, scoped, tag = 'internal scratch']
  %s0 = inlined_call_operand.vmem [shape: bf16[16,96], index: 0, kind: input, shape index: {}]
  %s1 = inlined_call_operand.vmem [shape: bf16[96,512], index: 1, kind: input, shape index: {}]
  %s2 = inlined_call_operand.vmem [shape: f32[16,1], index: 2, kind: input, shape index: {}]
  %s3 = inlined_call_operand.vmem [shape: f32[16,512], index: 3, kind: output, shape index: {}]
  %s4 = sld [smem:[#allocation0]]
  $region102: #{voxelmorph_forward.20} parent=0
    _
  %s6 = ssub.s32 1, %s4
  %s7 = scalar_select 0, %s6, %s4
  $region1: #{voxelmorph_forward.20} parent=0
    #allocation2 [shape = 'u8[98304]{0}', space=vmem, size = 0x18000, scoped, tag = 'input window, operand 1']
    #allocation3 [shape = 'u8[32768]{0}', space=vmem, size = 0x8000, scoped, tag = 'output window, operand 0']
    loop: start=0, step=1, limit=4
    $region2: #{voxelmorph_forward.20} parent=1 // loop_pre_header
      _
    $region3: #{voxelmorph_forward.20} parent=1 // loop_header
      %s9 = sphi 0, %s13
      %p10 = scmp.ge.s32.totalorder %s9, 4
      %s17 = sphi 0, %s17
      %s19 = sphi 0, %s17
      %s20 = sphi 0, %s19
      %s34 = sphi 0, %s20
      %s40 = sphi 0, %s42
      %s43 = sphi 0, %s40
      %s44 = sphi 0, %s43
      %s60 = sphi 0, %s44
      %s64 = sphi 0, %s64
      %s66 = sphi 0, %s64
      %s67 = sphi 0, %s66
      %s81 = sphi 0, %s67
      %s87 = sphi 0, %s89
      %s90 = sphi 0, %s87
      %s91 = sphi 0, %s90
      %s107 = sphi 0, %s91
    $region4: #{voxelmorph_forward.20} parent=1 // loop_header_branch
      %12 = sbr.rel (%p10) target = $region8
    $region5: #{voxelmorph_forward.20} parent=1 // loop_body
      %s14 = ssub.s32 %s9, 1
      %s15 = ssub.s32 %s9, 2
      %s16 = sadd.s32 %s9, 1
      %s18 = sadd.s32 %s17, 1
      %p21 = scmp.eq.s32.totalorder %s9, 1
      %p22 = scmp.ne.s32.totalorder %s17, %s19
      %p23 = scmp.eq.s32.totalorder %s9, 0
      %p24 = por %p22, %p23
      %p25 = scmp.ne.s32.totalorder %s17, %s19
      %p26 = scmp.eq.s32.totalorder %s14, 1
      %p27 = por %p25, %p26
      %p28 = scmp.ne.s32.totalorder %s19, %s20
      %p29 = scmp.eq.s32.totalorder %s14, 0
      %p30 = por %p28, %p29
      %p31 = scmp.ne.s32.totalorder %s19, %s20
      %p32 = scmp.eq.s32.totalorder %s15, 1
      %p33 = por %p31, %p32
      %p35 = scmp.ne.s32.totalorder %s20, %s34
      %p36 = scmp.eq.s32.totalorder %s15, 0
      %p37 = por %p35, %p36
      %s38 = ssub.s32 %s9, %s16
      %p39 = scmp.eq.s32.totalorder %s38, 0
      %s41 = sadd.s32 %s40, 1
      %s42 = scalar_select %p39, %s40, %s41
      %p45 = pneg %p39
      %p46 = scmp.eq.s32.totalorder %s9, 1
      %p47 = por %p45, %p46
      %p48 = scmp.ne.s32.totalorder %s40, %s43
      %p49 = scmp.eq.s32.totalorder %s9, 0
      %p50 = por %p48, %p49
      %p51 = scmp.ne.s32.totalorder %s40, %s43
      %p52 = scmp.eq.s32.totalorder %s14, 1
      %p53 = por %p51, %p52
      %p54 = scmp.ne.s32.totalorder %s43, %s44
      %p55 = scmp.eq.s32.totalorder %s14, 0
      %p56 = por %p54, %p55
      %p57 = scmp.ne.s32.totalorder %s43, %s44
      %p58 = scmp.eq.s32.totalorder %s15, 1
      %p59 = por %p57, %p58
      %p61 = scmp.ne.s32.totalorder %s44, %s60
      %p62 = scmp.eq.s32.totalorder %s15, 0
      %p63 = por %p61, %p62
      %s65 = sadd.s32 %s64, 1
      %p68 = scmp.eq.s32.totalorder %s9, 1
      %p69 = scmp.ne.s32.totalorder %s64, %s66
      %p70 = scmp.eq.s32.totalorder %s9, 0
      %p71 = por %p69, %p70
      %p72 = scmp.ne.s32.totalorder %s64, %s66
      %p73 = scmp.eq.s32.totalorder %s14, 1
      %p74 = por %p72, %p73
      %p75 = scmp.ne.s32.totalorder %s66, %s67
      %p76 = scmp.eq.s32.totalorder %s14, 0
      %p77 = por %p75, %p76
      %p78 = scmp.ne.s32.totalorder %s66, %s67
      %p79 = scmp.eq.s32.totalorder %s15, 1
      %p80 = por %p78, %p79
      %p82 = scmp.ne.s32.totalorder %s67, %s81
      %p83 = scmp.eq.s32.totalorder %s15, 0
      %p84 = por %p82, %p83
      %s85 = ssub.s32 %s9, %s16
      %p86 = scmp.eq.s32.totalorder %s85, 0
      %s88 = sadd.s32 %s87, 1
      %s89 = scalar_select %p86, %s87, %s88
      %p92 = pneg %p86
      %p93 = scmp.eq.s32.totalorder %s9, 1
      %p94 = por %p92, %p93
      %p95 = scmp.ne.s32.totalorder %s87, %s90
      %p96 = scmp.eq.s32.totalorder %s9, 0
      %p97 = por %p95, %p96
      %p98 = scmp.ne.s32.totalorder %s87, %s90
      %p99 = scmp.eq.s32.totalorder %s14, 1
      %p100 = por %p98, %p99
      %p101 = scmp.ne.s32.totalorder %s90, %s91
      %p102 = scmp.eq.s32.totalorder %s14, 0
      %p103 = por %p101, %p102
      %p104 = scmp.ne.s32.totalorder %s90, %s91
      %p105 = scmp.eq.s32.totalorder %s15, 1
      %p106 = por %p104, %p105
      %p108 = scmp.ne.s32.totalorder %s91, %s107
      %p109 = scmp.eq.s32.totalorder %s15, 0
      %p110 = por %p108, %p109
      %p111 = scmp.le.s32.totalorder 1, %s9
      %p112 = scmp.lt.s32.totalorder %s9, 3
      %p113 = pnand %p111, %p112
      %p114 = pneg %p113
      // Predicated region
      $region9: #{voxelmorph_forward.20} parent=5 // pred_check
        _
      $region10: #{voxelmorph_forward.20} parent=5 // pred_check_branch
        %116 = sbr.rel (%p113) target = $region12
      $region11: #{voxelmorph_forward.20} parent=5 // pred_region
        %s117 = ssub.s32 %s9, 1
        // Predicated region
        $region13: #{voxelmorph_forward.20} parent=11 // pred_check
          %p118 = pneg %p30
        $region14: #{voxelmorph_forward.20} parent=11 // pred_check_branch
          %120 = sbr.rel (%p118) target = $region16
        $region15: #{voxelmorph_forward.20} parent=11 // pred_region
          _
        $region16: #{voxelmorph_forward.20} parent=11 // pred_fallthru
          _
        // Predicated region
        $region17: #{voxelmorph_forward.20} parent=11 // pred_check
          %p121 = pneg %p77
        $region18: #{voxelmorph_forward.20} parent=11 // pred_check_branch
          %123 = sbr.rel (%p121) target = $region20
        $region19: #{voxelmorph_forward.20} parent=11 // pred_region
          _
        $region20: #{voxelmorph_forward.20} parent=11 // pred_fallthru
          _
      $region12: #{voxelmorph_forward.20} parent=5 // pred_fallthru
        _
      %p124 = scmp.lt.s32.totalorder %s9, 2
      // Predicated region
      $region21: #{voxelmorph_forward.20} parent=5 // pred_check
        %p125 = pneg %p124
      $region22: #{voxelmorph_forward.20} parent=5 // pred_check_branch
        %127 = sbr.rel (%p125) target = $region24
      $region23: #{voxelmorph_forward.20} parent=5 // pred_region
        // Predicated region
        $region25: #{voxelmorph_forward.20} parent=23 // pred_check
          %p128 = pneg %p50
        $region26: #{voxelmorph_forward.20} parent=23 // pred_check_branch
          %130 = sbr.rel (%p128) target = $region28
        $region27: #{voxelmorph_forward.20} parent=23 // pred_region
          %s131 = sand.u32 %s40, 1
          %s132 = sand.u32 %s40, 1
          %s133 = smul.addr %s132, 96
          %s134 = scalar_lea.vmem [#allocation2], %s133
          %s135 = smul.u32 2, %s9
          %s136 = smul.addr %s135, 4
          %s137 = scalar_lea.vmem %s1, %s136
          // Predicated region
          $region29: #{voxelmorph_forward.20} parent=27 // pred_check
            _
          $region30: #{voxelmorph_forward.20} parent=27 // pred_check_branch
            %139 = sbr.rel (0) target = $region32
          $region31: #{voxelmorph_forward.20} parent=27 // pred_region
            // Predicated region
            $region33: #{voxelmorph_forward.20} parent=31 // pred_check
              _
            $region34: #{voxelmorph_forward.20} parent=31 // pred_check_branch
              %141 = sbr.rel (0) target = $region36
            $region35: #{voxelmorph_forward.20} parent=31 // pred_region
              // Predicated region
              $region48: #{voxelmorph_forward.20} parent=35 // pred_check
                _
              $region49: #{voxelmorph_forward.20} parent=35 // pred_check_branch
                %178 = sbr.rel (0) target = $region51
              $region50: #{voxelmorph_forward.20} parent=35 // pred_region
                loop: start=0, step=1, limit=1
                $region52: #{voxelmorph_forward.20} parent=50 // loop_pre_header
                  _
                $region53: #{voxelmorph_forward.20} parent=50 // loop_header
                  %s180 = sphi 0, %s184
                  %p181 = scmp.ge.s32.totalorder %s180, 1
                  %s185 = sphi %s137, %s137
                  %s186 = sphi %s134, %s134
                $region54: #{voxelmorph_forward.20} parent=50 // loop_header_branch
                  %183 = sbr.rel (%p181) target = $region58
                $region55: #{voxelmorph_forward.20} parent=50 // loop_body
                  %v187 = vld [vmem:[%s185] sm:$0xff]
                  %188 = vst [vmem:[%s186] sm:$0xff] %v187
                  %v189 = vld [vmem:[%s185 + $0x10] sm:$0xff]
                  %190 = vst [vmem:[%s186 + $0x8] sm:$0xff] %v189
                  %v191 = vld [vmem:[%s185 + $0x20] sm:$0xff]
                  %192 = vst [vmem:[%s186 + $0x10] sm:$0xff] %v191
                  %v193 = vld [vmem:[%s185 + $0x30] sm:$0xff]
                  %194 = vst [vmem:[%s186 + $0x18] sm:$0xff] %v193
                  %v195 = vld [vmem:[%s185 + $0x40] sm:$0xff]
                  %196 = vst [vmem:[%s186 + $0x20] sm:$0xff] %v195
                  %v197 = vld [vmem:[%s185 + $0x50] sm:$0xff]
                  %198 = vst [vmem:[%s186 + $0x28] sm:$0xff] %v197
                  %v199 = vld [vmem:[%s185 + $0x60] sm:$0xff]
                  %200 = vst [vmem:[%s186 + $0x30] sm:$0xff] %v199
                  %v201 = vld [vmem:[%s185 + $0x70] sm:$0xff]
                  %202 = vst [vmem:[%s186 + $0x38] sm:$0xff] %v201
                  %v203 = vld [vmem:[%s185 + $0x80] sm:$0xff]
                  %204 = vst [vmem:[%s186 + $0x40] sm:$0xff] %v203
                  %v205 = vld [vmem:[%s185 + $0x90] sm:$0xff]
                  %206 = vst [vmem:[%s186 + $0x48] sm:$0xff] %v205
                  %v207 = vld [vmem:[%s185 + $0xa0] sm:$0xff]
                  %208 = vst [vmem:[%s186 + $0x50] sm:$0xff] %v207
                  %v209 = vld [vmem:[%s185 + $0xb0] sm:$0xff]
                  %210 = vst [vmem:[%s186 + $0x58] sm:$0xff] %v209
                $region56: #{voxelmorph_forward.20} parent=50 // loop_footer
                  %s184 = sadd.s32 1, %s180
                $region57: #{voxelmorph_forward.20} parent=50 // loop_footer_branch
                  %179 = sbr.rel target = $region53
                $region58: #{voxelmorph_forward.20} parent=50 // loop_exit
                  _
              $region51: #{voxelmorph_forward.20} parent=35 // pred_fallthru
                _
              // Predicated region
              $region59: #{voxelmorph_forward.20} parent=35 // pred_check
                _
              $region60: #{voxelmorph_forward.20} parent=35 // pred_check_branch
                %212 = sbr.rel target = $region62
              $region61: #{voxelmorph_forward.20} parent=35 // pred_region
                _
              $region62: #{voxelmorph_forward.20} parent=35 // pred_fallthru
                _
            $region36: #{voxelmorph_forward.20} parent=31 // pred_fallthru
              _
            // Predicated region
            $region37: #{voxelmorph_forward.20} parent=31 // pred_check
              _
            $region38: #{voxelmorph_forward.20} parent=31 // pred_check_branch
              %143 = sbr.rel target = $region40
            $region39: #{voxelmorph_forward.20} parent=31 // pred_region
              loop: start=0, step=1, limit=1
              $region41: #{voxelmorph_forward.20} parent=39 // loop_pre_header
                _
              $region42: #{voxelmorph_forward.20} parent=39 // loop_header
                %s146 = sphi 0, %s150
                %p147 = scmp.ge.s32.totalorder %s146, 1
                %s151 = sphi %s137, %s137
                %s152 = sphi %s134, %s134
              $region43: #{voxelmorph_forward.20} parent=39 // loop_header_branch
                %149 = sbr.rel (%p147) target = $region47
              $region44: #{voxelmorph_forward.20} parent=39 // loop_body
                %v153 = vld [vmem:[%s151] sm:$0xff]
                %154 = vst [vmem:[%s152] sm:$0xff] %v153
                %v155 = vld [vmem:[%s151 + $0x10] sm:$0xff]
                %156 = vst [vmem:[%s152 + $0x8] sm:$0xff] %v155
                %v157 = vld [vmem:[%s151 + $0x20] sm:$0xff]
                %158 = vst [vmem:[%s152 + $0x10] sm:$0xff] %v157
                %v159 = vld [vmem:[%s151 + $0x30] sm:$0xff]
                %160 = vst [vmem:[%s152 + $0x18] sm:$0xff] %v159
                %v161 = vld [vmem:[%s151 + $0x40] sm:$0xff]
                %162 = vst [vmem:[%s152 + $0x20] sm:$0xff] %v161
                %v163 = vld [vmem:[%s151 + $0x50] sm:$0xff]
                %164 = vst [vmem:[%s152 + $0x28] sm:$0xff] %v163
                %v165 = vld [vmem:[%s151 + $0x60] sm:$0xff]
                %166 = vst [vmem:[%s152 + $0x30] sm:$0xff] %v165
                %v167 = vld [vmem:[%s151 + $0x70] sm:$0xff]
                %168 = vst [vmem:[%s152 + $0x38] sm:$0xff] %v167
                %v169 = vld [vmem:[%s151 + $0x80] sm:$0xff]
                %170 = vst [vmem:[%s152 + $0x40] sm:$0xff] %v169
                %v171 = vld [vmem:[%s151 + $0x90] sm:$0xff]
                %172 = vst [vmem:[%s152 + $0x48] sm:$0xff] %v171
                %v173 = vld [vmem:[%s151 + $0xa0] sm:$0xff]
                %174 = vst [vmem:[%s152 + $0x50] sm:$0xff] %v173
                %v175 = vld [vmem:[%s151 + $0xb0] sm:$0xff]
                %176 = vst [vmem:[%s152 + $0x58] sm:$0xff] %v175
              $region45: #{voxelmorph_forward.20} parent=39 // loop_footer
                %s150 = sadd.s32 1, %s146
              $region46: #{voxelmorph_forward.20} parent=39 // loop_footer_branch
                %145 = sbr.rel target = $region42
              $region47: #{voxelmorph_forward.20} parent=39 // loop_exit
                _
            $region40: #{voxelmorph_forward.20} parent=31 // pred_fallthru
              _
          $region32: #{voxelmorph_forward.20} parent=27 // pred_fallthru
            _
          %213 = vnop
        $region28: #{voxelmorph_forward.20} parent=23 // pred_fallthru
          _
      $region24: #{voxelmorph_forward.20} parent=5 // pred_fallthru
        _
      %p214 = scmp.le.s32.totalorder 1, %s9
      %p215 = scmp.lt.s32.totalorder %s9, 3
      %p216 = pnand %p214, %p215
      %p217 = pneg %p216
      // Predicated region
      $region63: #{voxelmorph_forward.20} parent=5 // pred_check
        _
      $region64: #{voxelmorph_forward.20} parent=5 // pred_check_branch
        %219 = sbr.rel (%p216) target = $region66
      $region65: #{voxelmorph_forward.20} parent=5 // pred_region
        %s220 = ssub.s32 %s9, 1
        %s221 = sand.u32 %s43, 1
        %s222 = sand.u32 %s43, 1
        %s223 = smul.addr %s222, 96
        %s224 = scalar_lea.vmem [#allocation2], %s223
        // Predicated region
        $region67: #{voxelmorph_forward.20} parent=65 // pred_check
          %p225 = pneg %p56
        $region68: #{voxelmorph_forward.20} parent=65 // pred_check_branch
          %227 = sbr.rel (%p225) target = $region70
        $region69: #{voxelmorph_forward.20} parent=65 // pred_region
          _
        $region70: #{voxelmorph_forward.20} parent=65 // pred_fallthru
          _
        %p228 = pneg %p30
        %p229 = pneg %p27
        %s230 = sand.u32 %s43, 1
        %s231 = sand.u32 %s43, 1
        %s232 = smul.addr %s231, 96
        %s233 = scalar_lea.vmem [#allocation2], %s232
        %p234 = pneg %p56
        %p235 = pneg %p53
        %p236 = pneg %p77
        %p237 = pneg %p74
        %p238 = pneg %p103
        %p239 = pneg %p100
        %s240 = sand.u32 %s90, 1
        %s241 = sand.u32 %s90, 1
        %s242 = smul.addr %s241, 32
        %s243 = scalar_lea.vmem [#allocation3], %s242
        %s244 = smul.u32 2, %s14
        %s245 = smul.u32 2, %s14
        %v247 = vld [vmem:[%s0] sm:$0xf]
        %v248 = vld [vmem:[%s0 + $0x4] sm:$0xf]
        %v249 = vld [vmem:[%s224] sm:$0xff]
        %v250 = vld [vmem:[%s224 + $0x8] sm:$0xff]
        %v251 = vld [vmem:[%s224 + $0x10] sm:$0xff]
        %v252 = vld [vmem:[%s224 + $0x18] sm:$0xff]
        %v253 = vld [vmem:[%s224 + $0x20] sm:$0xff]
        %v254 = vld [vmem:[%s224 + $0x28] sm:$0xff]
        %v255 = vld [vmem:[%s224 + $0x30] sm:$0xff]
        %v256 = vld [vmem:[%s224 + $0x38] sm:$0xff]
        %v257 = vld [vmem:[%s224 + $0x40] sm:$0xff]
        %v258 = vld [vmem:[%s224 + $0x48] sm:$0xff]
        %v259 = vld [vmem:[%s224 + $0x50] sm:$0xff]
        %v260 = vld [vmem:[%s224 + $0x58] sm:$0xff]
        %v261 = vld [vmem:[%s2] sm:$0xff]
        %v262 = vld [vmem:[%s2 + $0x8] sm:$0xff]
        %264 = vset.pattern.permute.xlu0 0
        %265 = vperm.xlu0 %264, %v261
        %v266 = vpop.permute.xlu0 %265
        %269 = vset.pattern.permute.xlu0 0
        %270 = vperm.xlu0 %269, %v262
        %v271 = vpop.permute.xlu0 %270
        %v275 = vunpack.c.l.b16 %v247
        %v276 = vunpack.c.l.b16 %v248
        %v277 = vpack.c.b16 %v276, %v275
        %v290 = vunpack.c.l.b16 %v249
        %v291 = vunpack.c.h.b16 %v249
        %v292 = vunpack.c.l.b16 %v250
        %v293 = vunpack.c.h.b16 %v250
        %v294 = vunpack.c.l.b16 %v251
        %v295 = vunpack.c.h.b16 %v251
        %v296 = vunpack.c.l.b16 %v252
        %v297 = vunpack.c.h.b16 %v252
        %v298 = vunpack.c.l.b16 %v253
        %v299 = vunpack.c.h.b16 %v253
        %v300 = vunpack.c.l.b16 %v254
        %v301 = vunpack.c.h.b16 %v254
        %v302 = vunpack.c.l.b16 %v255
        %v303 = vunpack.c.h.b16 %v255
        %v304 = vunpack.c.l.b16 %v256
        %v305 = vunpack.c.h.b16 %v256
        %v306 = vunpack.c.l.b16 %v257
        %v307 = vunpack.c.h.b16 %v257
        %v308 = vunpack.c.l.b16 %v258
        %v309 = vunpack.c.h.b16 %v258
        %v310 = vunpack.c.l.b16 %v259
        %v311 = vunpack.c.h.b16 %v259
        %v312 = vunpack.c.l.b16 %v260
        %v313 = vunpack.c.h.b16 %v260
        %v314 = vpack.c.b16 %v292, %v290
        %v315 = vpack.c.b16 %v293, %v291
        %v316 = vpack.c.b16 %v296, %v294
        %v317 = vpack.c.b16 %v297, %v295
        %v318 = vpack.c.b16 %v300, %v298
        %v319 = vpack.c.b16 %v301, %v299
        %v320 = vpack.c.b16 %v304, %v302
        %v321 = vpack.c.b16 %v305, %v303
        %v322 = vpack.c.b16 %v308, %v306
        %v323 = vpack.c.b16 %v309, %v307
        %v324 = vpack.c.b16 %v312, %v310
        %v325 = vpack.c.b16 %v313, %v311
        %vm338 = vcmask 785408
        %v340 = vsel %vm338, %v277, 0
        %342 = vmatprep.subr.bf16.mxu0 %v315
        %343 = vmatpush1.bf16.msra.mxu0 %v314
        %344 = vmatprep.subr.bf16.mxu0 %v317
        %345 = vmatpush1.bf16.msra.mxu0 %v316
        %346 = vmatprep.subr.bf16.mxu0 %v319
        %347 = vmatpush1.bf16.msra.mxu0 %v318
        %348 = vmatprep.subr.bf16.mxu0 %v321
        %349 = vmatpush1.bf16.msra.mxu0 %v320
        %350 = vmatprep.subr.bf16.mxu0 %v323
        %351 = vmatpush1.bf16.msra.mxu0 %v322
        %352 = vmatprep.subr.bf16.mxu0 %v325
        %353 = vmatpush1.bf16.msra.mxu0 %v324
        %354 = vmatprep.subr.bf16.mxu0 0
        %355 = vmatpush1.bf16.msra.mxu0 0
        %356 = vmatprep.subr.bf16.mxu0 0
        %357 = vmatpush1.bf16.msra.mxu0 0
        %358 = vmatprep.subr.bf16.mxu0 0
        %359 = vmatpush1.bf16.msra.mxu0 0
        %360 = vmatprep.subr.bf16.mxu0 0
        %361 = vmatpush1.bf16.msra.mxu0 0
        %362 = vmatprep.subr.bf16.mxu0 0
        %363 = vmatpush1.bf16.msra.mxu0 0
        %364 = vmatprep.subr.bf16.mxu0 0
        %365 = vmatpush1.bf16.msra.mxu0 0
        %366 = vmatprep.subr.bf16.mxu0 0
        %367 = vmatpush1.bf16.msra.mxu0 0
        %368 = vmatprep.subr.bf16.mxu0 0
        %369 = vmatpush1.bf16.msra.mxu0 0
        %370 = vmatprep.subr.bf16.mxu0 0
        %371 = vmatpush1.bf16.msra.mxu0 0
        %372 = vmatprep.subr.bf16.mxu0 0
        %373 = vmatpush1.bf16.msra.mxu0 0
        %374 = vmatprep.mubr.bf16.mxu0 0
        %375 = vmatmul.mubr.bf16.gmra.mrb[0].mxu0 %v340
        %v376 = vpop.f32.mrb[0].mxu0
        %v377 = vadd.f32 %v266, %v376
        %v378 = vpop.f32.mrb[0].mxu0
        %v379 = vadd.f32 %v266, %v378
        %v380 = vpop.f32.mrb[0].mxu0
        %v381 = vadd.f32 %v271, %v380
        %v382 = vpop.f32.mrb[0].mxu0
        %v383 = vadd.f32 %v271, %v382
        %384 = vdwg.mxu0
        %385 = vst [vmem:[%s243] sm:$0xff] %v377
        %386 = vst [vmem:[%s243 + $0x8] sm:$0xff] %v379
        %387 = vst [vmem:[%s243 + $0x10] sm:$0xff] %v381
        %388 = vst [vmem:[%s243 + $0x18] sm:$0xff] %v383
        %s389 = sand.u32 %s90, 1
        %s390 = sand.u32 %s90, 1
        %s391 = smul.addr %s390, 32
        %s392 = scalar_lea.vmem [#allocation3], %s391
        // Predicated region
        $region71: #{voxelmorph_forward.20} parent=65 // pred_check
          %p393 = pneg %p100
        $region72: #{voxelmorph_forward.20} parent=65 // pred_check_branch
          %395 = sbr.rel (%p393) target = $region74
        $region73: #{voxelmorph_forward.20} parent=65 // pred_region
          %s396 = smul.u32 2, %s14
          %s397 = smul.addr %s396, 8
          %s398 = scalar_lea.vmem %s3, %s397
          // Predicated region
          $region75: #{voxelmorph_forward.20} parent=73 // pred_check
            _
          $region76: #{voxelmorph_forward.20} parent=73 // pred_check_branch
            %400 = sbr.rel (0) target = $region78
          $region77: #{voxelmorph_forward.20} parent=73 // pred_region
            // Predicated region
            $region79: #{voxelmorph_forward.20} parent=77 // pred_check
              _
            $region80: #{voxelmorph_forward.20} parent=77 // pred_check_branch
              %402 = sbr.rel (0) target = $region82
            $region81: #{voxelmorph_forward.20} parent=77 // pred_region
              loop: start=0, step=1, limit=1
              $region83: #{voxelmorph_forward.20} parent=81 // loop_pre_header
                _
              $region84: #{voxelmorph_forward.20} parent=81 // loop_header
                %s404 = sphi 0, %s408
                %p405 = scmp.ge.s32.totalorder %s404, 1
                %s409 = sphi %s392, %s392
                %s410 = sphi %s398, %s398
              $region85: #{voxelmorph_forward.20} parent=81 // loop_header_branch
                %407 = sbr.rel (%p405) target = $region89
              $region86: #{voxelmorph_forward.20} parent=81 // loop_body
                %v411 = vld [vmem:[%s409] sm:$0xff]
                %412 = vst [vmem:[%s410] sm:$0xff] %v411
                %v413 = vld [vmem:[%s409 + $0x8] sm:$0xff]
                %414 = vst [vmem:[%s410 + $0x8] sm:$0xff] %v413
                %v415 = vld [vmem:[%s409 + $0x10] sm:$0xff]
                %416 = vst [vmem:[%s410 + $0x20] sm:$0xff] %v415
                %v417 = vld [vmem:[%s409 + $0x18] sm:$0xff]
                %418 = vst [vmem:[%s410 + $0x28] sm:$0xff] %v417
              $region87: #{voxelmorph_forward.20} parent=81 // loop_footer
                %s408 = sadd.s32 1, %s404
              $region88: #{voxelmorph_forward.20} parent=81 // loop_footer_branch
                %403 = sbr.rel target = $region84
              $region89: #{voxelmorph_forward.20} parent=81 // loop_exit
                _
            $region82: #{voxelmorph_forward.20} parent=77 // pred_fallthru
              _
            // Predicated region
            $region90: #{voxelmorph_forward.20} parent=77 // pred_check
              _
            $region91: #{voxelmorph_forward.20} parent=77 // pred_check_branch
              %420 = sbr.rel target = $region93
            $region92: #{voxelmorph_forward.20} parent=77 // pred_region
              _
            $region93: #{voxelmorph_forward.20} parent=77 // pred_fallthru
              _
          $region78: #{voxelmorph_forward.20} parent=73 // pred_fallthru
            _
          %421 = vnop
        $region74: #{voxelmorph_forward.20} parent=65 // pred_fallthru
          _
      $region66: #{voxelmorph_forward.20} parent=5 // pred_fallthru
        _
      %p422 = scmp.le.s32.totalorder 2, %s9
      // Predicated region
      $region94: #{voxelmorph_forward.20} parent=5 // pred_check
        %p423 = pneg %p422
      $region95: #{voxelmorph_forward.20} parent=5 // pred_check_branch
        %425 = sbr.rel (%p423) target = $region97
      $region96: #{voxelmorph_forward.20} parent=5 // pred_region
        %s426 = ssub.s32 %s9, 2
        // Predicated region
        $region98: #{voxelmorph_forward.20} parent=96 // pred_check
          %p427 = pneg %p106
        $region99: #{voxelmorph_forward.20} parent=96 // pred_check_branch
          %429 = sbr.rel (%p427) target = $region101
        $region100: #{voxelmorph_forward.20} parent=96 // pred_region
          %s430 = sand.u32 %s91, 1
          %s431 = sand.u32 %s91, 1
          %s432 = smul.addr %s431, 32
          %s433 = scalar_lea.vmem [#allocation3], %s432
        $region101: #{voxelmorph_forward.20} parent=96 // pred_fallthru
          _
      $region97: #{voxelmorph_forward.20} parent=5 // pred_fallthru
        _
    $region6: #{voxelmorph_forward.20} parent=1 // loop_footer
      %s13 = sadd.s32 1, %s9
    $region7: #{voxelmorph_forward.20} parent=1 // loop_footer_branch
      %8 = sbr.rel target = $region3
    $region8: #{voxelmorph_forward.20} parent=1 // loop_exit
      _

// kernel: voxelmorph_forward.21
$region0: #{voxelmorph_forward.21}
  #allocation0 [shape = 'u32[]', space=smem, size = 0x4, offset = 0x4, fixed_abs, tag = 'smem constant byte address 0x4 - core index']
  #allocation1 [shape = 'u32[144,128]{1,0:T(1,128)}', space=vmem, size = 0x12000, scoped, tag = 'internal scratch']
  %s0 = inlined_call_operand.vmem [shape: f32[2,4,2,128], index: 0, kind: input, shape index: {}]
  %s1 = inlined_call_operand.vmem [shape: f32[2,2,128], index: 1, kind: input, shape index: {}]
  %s2 = inlined_call_operand.vmem [shape: f32[2,2,128], index: 2, kind: output, shape index: {}]
  %s3 = sld [smem:[#allocation0]]
  $region41: #{voxelmorph_forward.21} parent=0
    _
  %s5 = ssub.s32 1, %s3
  %s6 = scalar_select 0, %s5, %s3
  loop: start=0, step=1, limit=4
  $region2: #{voxelmorph_forward.21} parent=0 // loop_pre_header
    _
  $region3: #{voxelmorph_forward.21} parent=0 // loop_header
    %s8 = sphi 0, %s12
    %p9 = scmp.ge.s32.totalorder %s8, 4
    %s15 = sphi 0, %s27
    %s16 = sphi 0, %s23
    %s17 = sphi 0, %s15
    %s18 = sphi 0, %s16
    %s19 = sphi 0, %s17
    %s20 = sphi 0, %s18
    %s32 = sphi 0, %s34
    %s35 = sphi 0, %s32
    %s36 = sphi 0, %s35
    %s52 = sphi 0, %s36
    %s60 = sphi 0, %s62
    %s63 = sphi 0, %s60
    %s64 = sphi 0, %s63
    %s80 = sphi 0, %s64
    %s88 = sphi 0, %s90
    %s91 = sphi 0, %s88
    %s92 = sphi 0, %s91
    %s108 = sphi 0, %s92
  $region4: #{voxelmorph_forward.21} parent=0 // loop_header_branch
    %11 = sbr.rel (%p9) target = $region8
  $region5: #{voxelmorph_forward.21} parent=0 // loop_body
    %s13 = ssub.s32 %s8, 1
    %s14 = ssub.s32 %s8, 2
    %s21 = sadd.s32 1, %s16
    %p22 = scmp.ge.s32.totalorder %s21, 1
    %s23 = scalar_select %p22, 0, %s21
    %s24 = sadd.s32 1, %s15
    %s25 = scalar_select %p22, %s24, %s15
    %p26 = scmp.ge.s32.totalorder %s25, 2
    %s27 = scalar_select %p26, 0, %s25
    %s28 = ssub.s32 %s15, %s27
    %s29 = ssub.s32 %s16, %s23
    %s30 = sor.u32 %s28, %s29
    %p31 = scmp.eq.s32.totalorder %s30, 0
    %s33 = sadd.s32 %s32, 1
    %s34 = scalar_select %p31, %s32, %s33
    %p37 = pneg %p31
    %p38 = scmp.eq.s32.totalorder %s8, 1
    %p39 = por %p37, %p38
    %p40 = scmp.ne.s32.totalorder %s32, %s35
    %p41 = scmp.eq.s32.totalorder %s8, 0
    %p42 = por %p40, %p41
    %p43 = scmp.ne.s32.totalorder %s32, %s35
    %p44 = scmp.eq.s32.totalorder %s13, 1
    %p45 = por %p43, %p44
    %p46 = scmp.ne.s32.totalorder %s35, %s36
    %p47 = scmp.eq.s32.totalorder %s13, 0
    %p48 = por %p46, %p47
    %p49 = scmp.ne.s32.totalorder %s35, %s36
    %p50 = scmp.eq.s32.totalorder %s14, 1
    %p51 = por %p49, %p50
    %p53 = scmp.ne.s32.totalorder %s36, %s52
    %p54 = scmp.eq.s32.totalorder %s14, 0
    %p55 = por %p53, %p54
    %s56 = ssub.s32 %s15, %s27
    %s57 = ssub.s32 %s16, %s23
    %s58 = sor.u32 %s56, %s57
    %p59 = scmp.eq.s32.totalorder %s58, 0
    %s61 = sadd.s32 %s60, 1
    %s62 = scalar_select %p59, %s60, %s61
    %p65 = pneg %p59
    %p66 = scmp.eq.s32.totalorder %s8, 1
    %p67 = por %p65, %p66
    %p68 = scmp.ne.s32.totalorder %s60, %s63
    %p69 = scmp.eq.s32.totalorder %s8, 0
    %p70 = por %p68, %p69
    %p71 = scmp.ne.s32.totalorder %s60, %s63
    %p72 = scmp.eq.s32.totalorder %s13, 1
    %p73 = por %p71, %p72
    %p74 = scmp.ne.s32.totalorder %s63, %s64
    %p75 = scmp.eq.s32.totalorder %s13, 0
    %p76 = por %p74, %p75
    %p77 = scmp.ne.s32.totalorder %s63, %s64
    %p78 = scmp.eq.s32.totalorder %s14, 1
    %p79 = por %p77, %p78
    %p81 = scmp.ne.s32.totalorder %s64, %s80
    %p82 = scmp.eq.s32.totalorder %s14, 0
    %p83 = por %p81, %p82
    %s84 = ssub.s32 %s15, %s27
    %s85 = ssub.s32 %s16, %s23
    %s86 = sor.u32 %s84, %s85
    %p87 = scmp.eq.s32.totalorder %s86, 0
    %s89 = sadd.s32 %s88, 1
    %s90 = scalar_select %p87, %s88, %s89
    %p93 = pneg %p87
    %p94 = scmp.eq.s32.totalorder %s8, 1
    %p95 = por %p93, %p94
    %p96 = scmp.ne.s32.totalorder %s88, %s91
    %p97 = scmp.eq.s32.totalorder %s8, 0
    %p98 = por %p96, %p97
    %p99 = scmp.ne.s32.totalorder %s88, %s91
    %p100 = scmp.eq.s32.totalorder %s13, 1
    %p101 = por %p99, %p100
    %p102 = scmp.ne.s32.totalorder %s91, %s92
    %p103 = scmp.eq.s32.totalorder %s13, 0
    %p104 = por %p102, %p103
    %p105 = scmp.ne.s32.totalorder %s91, %s92
    %p106 = scmp.eq.s32.totalorder %s14, 1
    %p107 = por %p105, %p106
    %p109 = scmp.ne.s32.totalorder %s92, %s108
    %p110 = scmp.eq.s32.totalorder %s14, 0
    %p111 = por %p109, %p110
    %p112 = scmp.le.s32.totalorder 1, %s8
    %p113 = scmp.lt.s32.totalorder %s8, 3
    %p114 = pnand %p112, %p113
    %p115 = pneg %p114
    // Predicated region
    $region9: #{voxelmorph_forward.21} parent=5 // pred_check
      _
    $region10: #{voxelmorph_forward.21} parent=5 // pred_check_branch
      %117 = sbr.rel (%p114) target = $region12
    $region11: #{voxelmorph_forward.21} parent=5 // pred_region
      %s118 = ssub.s32 %s8, 1
    $region12: #{voxelmorph_forward.21} parent=5 // pred_fallthru
      _
    %p119 = scmp.lt.s32.totalorder %s8, 2
    // Predicated region
    $region13: #{voxelmorph_forward.21} parent=5 // pred_check
      %p120 = pneg %p119
    $region14: #{voxelmorph_forward.21} parent=5 // pred_check_branch
      %122 = sbr.rel (%p120) target = $region16
    $region15: #{voxelmorph_forward.21} parent=5 // pred_region
      // Predicated region
      $region17: #{voxelmorph_forward.21} parent=15 // pred_check
        %p123 = pneg %p42
      $region18: #{voxelmorph_forward.21} parent=15 // pred_check_branch
        %125 = sbr.rel (%p123) target = $region20
      $region19: #{voxelmorph_forward.21} parent=15 // pred_region
        %p126 = scmp.lt.s32.totalorder %s15, 1
        %s127 = scalar_select %p126, %s15, 1
        %p128 = scmp.lt.s32.totalorder %s16, 0
        %s129 = scalar_select %p128, %s16, 0
        %s130 = smul.addr %s127, 4
        %s131 = sadd.s32 %s129, %s130
        %s132 = smul.addr %s131, 2
        %s133 = scalar_lea.vmem %s0, %s132
      $region20: #{voxelmorph_forward.21} parent=15 // pred_fallthru
        _
      // Predicated region
      $region21: #{voxelmorph_forward.21} parent=15 // pred_check
        %p134 = pneg %p70
      $region22: #{voxelmorph_forward.21} parent=15 // pred_check_branch
        %136 = sbr.rel (%p134) target = $region24
      $region23: #{voxelmorph_forward.21} parent=15 // pred_region
        %p137 = scmp.lt.s32.totalorder %s15, 1
        %s138 = scalar_select %p137, %s15, 1
        %p139 = scmp.lt.s32.totalorder %s16, 0
        %s140 = scalar_select %p139, %s16, 0
        %s141 = sadd.s32 %s140, %s138
        %s142 = smul.addr %s141, 2
        %s143 = scalar_lea.vmem %s1, %s142
      $region24: #{voxelmorph_forward.21} parent=15 // pred_fallthru
        _
    $region16: #{voxelmorph_forward.21} parent=5 // pred_fallthru
      _
    %p144 = scmp.le.s32.totalorder 1, %s8
    %p145 = scmp.lt.s32.totalorder %s8, 3
    %p146 = pnand %p144, %p145
    %p147 = pneg %p146
    // Predicated region
    $region25: #{voxelmorph_forward.21} parent=5 // pred_check
      _
    $region26: #{voxelmorph_forward.21} parent=5 // pred_check_branch
      %149 = sbr.rel (%p146) target = $region28
    $region27: #{voxelmorph_forward.21} parent=5 // pred_region
      %s150 = ssub.s32 %s8, 1
      %p151 = scmp.lt.s32.totalorder %s17, 1
      %s152 = scalar_select %p151, %s17, 1
      %p153 = scmp.lt.s32.totalorder %s18, 0
      %s154 = scalar_select %p153, %s18, 0
      %s155 = smul.addr %s152, 4
      %s156 = sadd.s32 %s154, %s155
      %s157 = smul.addr %s156, 2
      %s158 = scalar_lea.vmem %s0, %s157
      %p159 = pneg %p48
      %p160 = pneg %p45
      %p161 = scmp.lt.s32.totalorder %s17, 1
      %s162 = scalar_select %p161, %s17, 1
      %p163 = scmp.lt.s32.totalorder %s18, 0
      %s164 = scalar_select %p163, %s18, 0
      %s165 = sadd.s32 %s164, %s162
      %s166 = smul.addr %s165, 2
      %s167 = scalar_lea.vmem %s1, %s166
      %p168 = pneg %p76
      %p169 = pneg %p73
      %p170 = pneg %p104
      %p171 = pneg %p101
      %p172 = scmp.lt.s32.totalorder %s17, 1
      %s173 = scalar_select %p172, %s17, 1
      %p174 = scmp.lt.s32.totalorder %s18, 0
      %s175 = scalar_select %p174, %s18, 0
      %s176 = sadd.s32 %s175, %s173
      %s177 = smul.addr %s176, 2
      %s178 = scalar_lea.vmem %s2, %s177
      %p179 = scmp.lt.s32.totalorder %s17, 1
      %s180 = scalar_select %p179, %s17, 1
      %p181 = scmp.lt.s32.totalorder %s18, 0
      %s182 = scalar_select %p181, %s18, 0
      %s183 = smul.addr %s180, 4
      %s184 = sadd.s32 %s182, %s183
      %s185 = smul.addr %s184, 2
      %s186 = scalar_lea.vmem %s0, %s185
      %p187 = scmp.lt.s32.totalorder %s17, 1
      %s188 = scalar_select %p187, %s17, 1
      %p189 = scmp.lt.s32.totalorder %s18, 0
      %s190 = scalar_select %p189, %s18, 0
      %s191 = sadd.s32 %s190, %s188
      %s192 = smul.addr %s191, 2
      %s193 = scalar_lea.vmem %s1, %s192
      %p194 = scmp.lt.s32.totalorder %s17, 1
      %s195 = scalar_select %p194, %s17, 1
      %p196 = scmp.lt.s32.totalorder %s18, 0
      %s197 = scalar_select %p196, %s18, 0
      %s198 = sadd.s32 %s197, %s195
      %s199 = smul.addr %s198, 2
      %s200 = scalar_lea.vmem %s2, %s199
      %v201 = vld [vmem:[%s193] sm:$0x1]
      %v202 = vld [vmem:[%s193 + $0x1] sm:$0x1]
      %v203 = vfloor.f32 %v201
      %v204 = vsub.f32 %v201, %v203
      %v205 = vfloor.f32 %v202
      %v206 = vsub.f32 %v202, %v205
      %v207 = vld [vmem:[%s186] sm:$0x3]
      %s208 = scalar_lea.vmem %s186, 2
      %v209 = vld [vmem:[%s208] sm:$0x3]
      %s210 = scalar_lea.vmem %s186, 4
      %v211 = vld [vmem:[%s210] sm:$0x3]
      %s212 = scalar_lea.vmem %s186, 6
      %v213 = vld [vmem:[%s212] sm:$0x3]
      %v214 = vsub.f32 %v209, %v207
      %v215 = vlaneseq
      %v216 = vshrl.u32 %v215, 7
      %v217 = vsub.s32 0, %v216
      %v218 = vrot.slane %v206, %v217
      %v219 = vmul.f32 %v218, %v214
      %v220 = vadd.f32 %v207, %v219
      %v221 = vsub.f32 %v213, %v211
      %v222 = vmul.f32 %v218, %v221
      %v223 = vadd.f32 %v211, %v222
      %v224 = vsub.f32 %v223, %v220
      %v225 = vlaneseq
      %v226 = vshrl.u32 %v225, 7
      %v227 = vsub.s32 0, %v226
      %v228 = vrot.slane %v204, %v227
      %v229 = vmul.f32 %v228, %v224
      %v230 = vadd.f32 %v220, %v229
      %231 = vst [vmem:[%s200] sm:$0x3] %v230
      %p232 = scmp.lt.s32.totalorder %s17, 1
      %s233 = scalar_select %p232, %s17, 1
      %p234 = scmp.lt.s32.totalorder %s18, 0
      %s235 = scalar_select %p234, %s18, 0
      %s236 = sadd.s32 %s235, %s233
      %s237 = smul.addr %s236, 2
      %s238 = scalar_lea.vmem %s2, %s237
      // Predicated region
      $region29: #{voxelmorph_forward.21} parent=27 // pred_check
        %p239 = pneg %p101
      $region30: #{voxelmorph_forward.21} parent=27 // pred_check_branch
        %241 = sbr.rel (%p239) target = $region32
      $region31: #{voxelmorph_forward.21} parent=27 // pred_region
        _
      $region32: #{voxelmorph_forward.21} parent=27 // pred_fallthru
        _
    $region28: #{voxelmorph_forward.21} parent=5 // pred_fallthru
      _
    %p242 = scmp.le.s32.totalorder 2, %s8
    // Predicated region
    $region33: #{voxelmorph_forward.21} parent=5 // pred_check
      %p243 = pneg %p242
    $region34: #{voxelmorph_forward.21} parent=5 // pred_check_branch
      %245 = sbr.rel (%p243) target = $region36
    $region35: #{voxelmorph_forward.21} parent=5 // pred_region
      %s246 = ssub.s32 %s8, 2
      // Predicated region
      $region37: #{voxelmorph_forward.21} parent=35 // pred_check
        %p247 = pneg %p107
      $region38: #{voxelmorph_forward.21} parent=35 // pred_check_branch
        %249 = sbr.rel (%p247) target = $region40
      $region39: #{voxelmorph_forward.21} parent=35 // pred_region
        %p250 = scmp.lt.s32.totalorder %s19, 1
        %s251 = scalar_select %p250, %s19, 1
        %p252 = scmp.lt.s32.totalorder %s20, 0
        %s253 = scalar_select %p252, %s20, 0
        %s254 = sadd.s32 %s253, %s251
        %s255 = smul.addr %s254, 2
        %s256 = scalar_lea.vmem %s2, %s255
      $region40: #{voxelmorph_forward.21} parent=35 // pred_fallthru
        _
    $region36: #{voxelmorph_forward.21} parent=5 // pred_fallthru
      _
  $region6: #{voxelmorph_forward.21} parent=0 // loop_footer
    %s12 = sadd.s32 1, %s8
  $region7: #{voxelmorph_forward.21} parent=0 // loop_footer_branch
    %7 = sbr.rel target = $region3
  $region8: #{voxelmorph_forward.21} parent=0 // loop_exit
    _

// kernel: voxelmorph_forward.30
$region0: #{voxelmorph_forward.30}
  #allocation0 [shape = 'u32[]', space=smem, size = 0x4, offset = 0x4, fixed_abs, tag = 'smem constant byte address 0x4 - core index']
  #allocation1 [shape = 'u32[144,128]{1,0:T(1,128)}', space=vmem, size = 0x12000, scoped, tag = 'internal scratch']
  %s0 = inlined_call_operand.vmem [shape: f32[2,4,2,256], index: 0, kind: input, shape index: {}]
  %s1 = inlined_call_operand.vmem [shape: f32[2,2,256], index: 1, kind: input, shape index: {}]
  %s2 = inlined_call_operand.vmem [shape: f32[2,2,256], index: 2, kind: output, shape index: {}]
  %s3 = sld [smem:[#allocation0]]
  $region82: #{voxelmorph_forward.30} parent=0
    _
  %s5 = ssub.s32 1, %s3
  %s6 = scalar_select 0, %s5, %s3
  $region1: #{voxelmorph_forward.30} parent=0
    #allocation2 [shape = 'u8[8192]{0}', space=vmem, size = 0x2000, scoped, tag = 'input window, operand 0']
    loop: start=0, step=1, limit=6
    $region2: #{voxelmorph_forward.30} parent=1 // loop_pre_header
      _
    $region3: #{voxelmorph_forward.30} parent=1 // loop_header
      %s8 = sphi 0, %s12
      %p9 = scmp.ge.s32.totalorder %s8, 6
      %s15 = sphi 0, %s27
      %s16 = sphi 0, %s23
      %s17 = sphi 0, %s15
      %s18 = sphi 0, %s16
      %s19 = sphi 0, %s17
      %s20 = sphi 0, %s18
      %s32 = sphi 0, %s34
      %s35 = sphi 0, %s32
      %s36 = sphi 0, %s35
      %s52 = sphi 0, %s36
      %s60 = sphi 0, %s62
      %s63 = sphi 0, %s60
      %s64 = sphi 0, %s63
      %s80 = sphi 0, %s64
      %s88 = sphi 0, %s90
      %s91 = sphi 0, %s88
      %s92 = sphi 0, %s91
      %s108 = sphi 0, %s92
    $region4: #{voxelmorph_forward.30} parent=1 // loop_header_branch
      %11 = sbr.rel (%p9) target = $region8
    $region5: #{voxelmorph_forward.30} parent=1 // loop_body
      %s13 = ssub.s32 %s8, 1
      %s14 = ssub.s32 %s8, 2
      %s21 = sadd.s32 1, %s16
      %p22 = scmp.ge.s32.totalorder %s21, 2
      %s23 = scalar_select %p22, 0, %s21
      %s24 = sadd.s32 1, %s15
      %s25 = scalar_select %p22, %s24, %s15
      %p26 = scmp.ge.s32.totalorder %s25, 2
      %s27 = scalar_select %p26, 0, %s25
      %s28 = ssub.s32 %s15, %s27
      %s29 = ssub.s32 %s16, %s23
      %s30 = sor.u32 %s28, %s29
      %p31 = scmp.eq.s32.totalorder %s30, 0
      %s33 = sadd.s32 %s32, 1
      %s34 = scalar_select %p31, %s32, %s33
      %p37 = pneg %p31
      %p38 = scmp.eq.s32.totalorder %s8, 3
      %p39 = por %p37, %p38
      %p40 = scmp.ne.s32.totalorder %s32, %s35
      %p41 = scmp.eq.s32.totalorder %s8, 0
      %p42 = por %p40, %p41
      %p43 = scmp.ne.s32.totalorder %s32, %s35
      %p44 = scmp.eq.s32.totalorder %s13, 3
      %p45 = por %p43, %p44
      %p46 = scmp.ne.s32.totalorder %s35, %s36
      %p47 = scmp.eq.s32.totalorder %s13, 0
      %p48 = por %p46, %p47
      %p49 = scmp.ne.s32.totalorder %s35, %s36
      %p50 = scmp.eq.s32.totalorder %s14, 3
      %p51 = por %p49, %p50
      %p53 = scmp.ne.s32.totalorder %s36, %s52
      %p54 = scmp.eq.s32.totalorder %s14, 0
      %p55 = por %p53, %p54
      %s56 = ssub.s32 %s15, %s27
      %s57 = ssub.s32 %s16, %s23
      %s58 = sor.u32 %s56, %s57
      %p59 = scmp.eq.s32.totalorder %s58, 0
      %s61 = sadd.s32 %s60, 1
      %s62 = scalar_select %p59, %s60, %s61
      %p65 = pneg %p59
      %p66 = scmp.eq.s32.totalorder %s8, 3
      %p67 = por %p65, %p66
      %p68 = scmp.ne.s32.totalorder %s60, %s63
      %p69 = scmp.eq.s32.totalorder %s8, 0
      %p70 = por %p68, %p69
      %p71 = scmp.ne.s32.totalorder %s60, %s63
      %p72 = scmp.eq.s32.totalorder %s13, 3
      %p73 = por %p71, %p72
      %p74 = scmp.ne.s32.totalorder %s63, %s64
      %p75 = scmp.eq.s32.totalorder %s13, 0
      %p76 = por %p74, %p75
      %p77 = scmp.ne.s32.totalorder %s63, %s64
      %p78 = scmp.eq.s32.totalorder %s14, 3
      %p79 = por %p77, %p78
      %p81 = scmp.ne.s32.totalorder %s64, %s80
      %p82 = scmp.eq.s32.totalorder %s14, 0
      %p83 = por %p81, %p82
      %s84 = ssub.s32 %s15, %s27
      %s85 = ssub.s32 %s16, %s23
      %s86 = sor.u32 %s84, %s85
      %p87 = scmp.eq.s32.totalorder %s86, 0
      %s89 = sadd.s32 %s88, 1
      %s90 = scalar_select %p87, %s88, %s89
      %p93 = pneg %p87
      %p94 = scmp.eq.s32.totalorder %s8, 3
      %p95 = por %p93, %p94
      %p96 = scmp.ne.s32.totalorder %s88, %s91
      %p97 = scmp.eq.s32.totalorder %s8, 0
      %p98 = por %p96, %p97
      %p99 = scmp.ne.s32.totalorder %s88, %s91
      %p100 = scmp.eq.s32.totalorder %s13, 3
      %p101 = por %p99, %p100
      %p102 = scmp.ne.s32.totalorder %s91, %s92
      %p103 = scmp.eq.s32.totalorder %s13, 0
      %p104 = por %p102, %p103
      %p105 = scmp.ne.s32.totalorder %s91, %s92
      %p106 = scmp.eq.s32.totalorder %s14, 3
      %p107 = por %p105, %p106
      %p109 = scmp.ne.s32.totalorder %s92, %s108
      %p110 = scmp.eq.s32.totalorder %s14, 0
      %p111 = por %p109, %p110
      %p112 = scmp.le.s32.totalorder 1, %s8
      %p113 = scmp.lt.s32.totalorder %s8, 5
      %p114 = pnand %p112, %p113
      %p115 = pneg %p114
      // Predicated region
      $region9: #{voxelmorph_forward.30} parent=5 // pred_check
        _
      $region10: #{voxelmorph_forward.30} parent=5 // pred_check_branch
        %117 = sbr.rel (%p114) target = $region12
      $region11: #{voxelmorph_forward.30} parent=5 // pred_region
        %s118 = ssub.s32 %s8, 1
      $region12: #{voxelmorph_forward.30} parent=5 // pred_fallthru
        _
      %p119 = scmp.lt.s32.totalorder %s8, 4
      // Predicated region
      $region13: #{voxelmorph_forward.30} parent=5 // pred_check
        %p120 = pneg %p119
      $region14: #{voxelmorph_forward.30} parent=5 // pred_check_branch
        %122 = sbr.rel (%p120) target = $region16
      $region15: #{voxelmorph_forward.30} parent=5 // pred_region
        // Predicated region
        $region17: #{voxelmorph_forward.30} parent=15 // pred_check
          %p123 = pneg %p42
        $region18: #{voxelmorph_forward.30} parent=15 // pred_check_branch
          %125 = sbr.rel (%p123) target = $region20
        $region19: #{voxelmorph_forward.30} parent=15 // pred_region
          %s126 = sand.u32 %s32, 1
          %s127 = sand.u32 %s32, 1
          %s128 = smul.addr %s127, 8
          %s129 = scalar_lea.vmem [#allocation2], %s128
          %s130 = smul.addr %s15, 8
          %s131 = sadd.s32 %s16, %s130
          %s132 = smul.addr %s131, 2
          %s133 = scalar_lea.vmem %s0, %s132
          // Predicated region
          $region21: #{voxelmorph_forward.30} parent=19 // pred_check
            _
          $region22: #{voxelmorph_forward.30} parent=19 // pred_check_branch
            %135 = sbr.rel (0) target = $region24
          $region23: #{voxelmorph_forward.30} parent=19 // pred_region
            // Predicated region
            $region25: #{voxelmorph_forward.30} parent=23 // pred_check
              _
            $region26: #{voxelmorph_forward.30} parent=23 // pred_check_branch
              %137 = sbr.rel target = $region28
            $region27: #{voxelmorph_forward.30} parent=23 // pred_region
              // Predicated region
              $region40: #{voxelmorph_forward.30} parent=27 // pred_check
                _
              $region41: #{voxelmorph_forward.30} parent=27 // pred_check_branch
                %158 = sbr.rel (0) target = $region43
              $region42: #{voxelmorph_forward.30} parent=27 // pred_region
                loop: start=0, step=1, limit=1
                $region44: #{voxelmorph_forward.30} parent=42 // loop_pre_header
                  _
                $region45: #{voxelmorph_forward.30} parent=42 // loop_header
                  %s160 = sphi 0, %s164
                  %p161 = scmp.ge.s32.totalorder %s160, 1
                  %s165 = sphi %s133, %s133
                  %s166 = sphi %s129, %s129
                $region46: #{voxelmorph_forward.30} parent=42 // loop_header_branch
                  %163 = sbr.rel (%p161) target = $region50
                $region47: #{voxelmorph_forward.30} parent=42 // loop_body
                  _
                $region48: #{voxelmorph_forward.30} parent=42 // loop_footer
                  %s164 = sadd.s32 1, %s160
                $region49: #{voxelmorph_forward.30} parent=42 // loop_footer_branch
                  %159 = sbr.rel target = $region45
                $region50: #{voxelmorph_forward.30} parent=42 // loop_exit
                  _
                loop: start=0, step=1, limit=1
                $region51: #{voxelmorph_forward.30} parent=42 // loop_pre_header
                  _
                $region52: #{voxelmorph_forward.30} parent=42 // loop_header
                  %s169 = sphi 0, %s173
                  %p170 = scmp.ge.s32.totalorder %s169, 1
                  %s174 = sphi %s133, %s133
                  %s175 = sphi %s129, %s129
                $region53: #{voxelmorph_forward.30} parent=42 // loop_header_branch
                  %172 = sbr.rel (%p170) target = $region57
                $region54: #{voxelmorph_forward.30} parent=42 // loop_body
                  %v176 = vld [vmem:[%s174] sm:$0x3]
                  %177 = vst [vmem:[%s175] sm:$0x3] %v176
                  %v178 = vld [vmem:[%s174 + $0x4] sm:$0x3]
                  %179 = vst [vmem:[%s175 + $0x2] sm:$0x3] %v178
                  %v180 = vld [vmem:[%s174 + $0x8] sm:$0x3]
                  %181 = vst [vmem:[%s175 + $0x4] sm:$0x3] %v180
                  %v182 = vld [vmem:[%s174 + $0xc] sm:$0x3]
                  %183 = vst [vmem:[%s175 + $0x6] sm:$0x3] %v182
                $region55: #{voxelmorph_forward.30} parent=42 // loop_footer
                  %s173 = sadd.s32 1, %s169
                $region56: #{voxelmorph_forward.30} parent=42 // loop_footer_branch
                  %168 = sbr.rel target = $region52
                $region57: #{voxelmorph_forward.30} parent=42 // loop_exit
                  _
              $region43: #{voxelmorph_forward.30} parent=27 // pred_fallthru
                _
            $region28: #{voxelmorph_forward.30} parent=23 // pred_fallthru
              _
            // Predicated region
            $region29: #{voxelmorph_forward.30} parent=23 // pred_check
              _
            $region30: #{voxelmorph_forward.30} parent=23 // pred_check_branch
              %139 = sbr.rel (0) target = $region32
            $region31: #{voxelmorph_forward.30} parent=23 // pred_region
              loop: start=0, step=1, limit=1
              $region33: #{voxelmorph_forward.30} parent=31 // loop_pre_header
                _
              $region34: #{voxelmorph_forward.30} parent=31 // loop_header
                %s142 = sphi 0, %s146
                %p143 = scmp.ge.s32.totalorder %s142, 1
                %s147 = sphi %s133, %s133
                %s148 = sphi %s129, %s129
              $region35: #{voxelmorph_forward.30} parent=31 // loop_header_branch
                %145 = sbr.rel (%p143) target = $region39
              $region36: #{voxelmorph_forward.30} parent=31 // loop_body
                %v149 = vld [vmem:[%s147] sm:$0x3]
                %150 = vst [vmem:[%s148] sm:$0x3] %v149
                %v151 = vld [vmem:[%s147 + $0x4] sm:$0x3]
                %152 = vst [vmem:[%s148 + $0x2] sm:$0x3] %v151
                %v153 = vld [vmem:[%s147 + $0x8] sm:$0x3]
                %154 = vst [vmem:[%s148 + $0x4] sm:$0x3] %v153
                %v155 = vld [vmem:[%s147 + $0xc] sm:$0x3]
                %156 = vst [vmem:[%s148 + $0x6] sm:$0x3] %v155
              $region37: #{voxelmorph_forward.30} parent=31 // loop_footer
                %s146 = sadd.s32 1, %s142
              $region38: #{voxelmorph_forward.30} parent=31 // loop_footer_branch
                %141 = sbr.rel target = $region34
              $region39: #{voxelmorph_forward.30} parent=31 // loop_exit
                _
            $region32: #{voxelmorph_forward.30} parent=23 // pred_fallthru
              _
          $region24: #{voxelmorph_forward.30} parent=19 // pred_fallthru
            _
          %184 = vnop
        $region20: #{voxelmorph_forward.30} parent=15 // pred_fallthru
          _
        // Predicated region
        $region58: #{voxelmorph_forward.30} parent=15 // pred_check
          %p185 = pneg %p70
        $region59: #{voxelmorph_forward.30} parent=15 // pred_check_branch
          %187 = sbr.rel (%p185) target = $region61
        $region60: #{voxelmorph_forward.30} parent=15 // pred_region
          %p188 = scmp.lt.s32.totalorder %s15, 1
          %s189 = scalar_select %p188, %s15, 1
          %p190 = scmp.lt.s32.totalorder %s16, 1
          %s191 = scalar_select %p190, %s16, 1
          %s192 = smul.addr %s189, 2
          %s193 = sadd.s32 %s191, %s192
          %s194 = smul.addr %s193, 2
          %s195 = scalar_lea.vmem %s1, %s194
        $region61: #{voxelmorph_forward.30} parent=15 // pred_fallthru
          _
      $region16: #{voxelmorph_forward.30} parent=5 // pred_fallthru
        _
      %p196 = scmp.le.s32.totalorder 1, %s8
      %p197 = scmp.lt.s32.totalorder %s8, 5
      %p198 = pnand %p196, %p197
      %p199 = pneg %p198
      // Predicated region
      $region62: #{voxelmorph_forward.30} parent=5 // pred_check
        _
      $region63: #{voxelmorph_forward.30} parent=5 // pred_check_branch
        %201 = sbr.rel (%p198) target = $region65
      $region64: #{voxelmorph_forward.30} parent=5 // pred_region
        %s202 = ssub.s32 %s8, 1
        %s203 = sand.u32 %s35, 1
        %s204 = sand.u32 %s35, 1
        %s205 = smul.addr %s204, 8
        %s206 = scalar_lea.vmem [#allocation2], %s205
        // Predicated region
        $region66: #{voxelmorph_forward.30} parent=64 // pred_check
          %p207 = pneg %p48
        $region67: #{voxelmorph_forward.30} parent=64 // pred_check_branch
          %209 = sbr.rel (%p207) target = $region69
        $region68: #{voxelmorph_forward.30} parent=64 // pred_region
          _
        $region69: #{voxelmorph_forward.30} parent=64 // pred_fallthru
          _
        %s210 = sand.u32 %s35, 1
        %s211 = sand.u32 %s35, 1
        %s212 = smul.addr %s211, 8
        %s213 = scalar_lea.vmem [#allocation2], %s212
        %p214 = pneg %p48
        %p215 = pneg %p45
        %p216 = scmp.lt.s32.totalorder %s17, 1
        %s217 = scalar_select %p216, %s17, 1
        %p218 = scmp.lt.s32.totalorder %s18, 1
        %s219 = scalar_select %p218, %s18, 1
        %s220 = smul.addr %s217, 2
        %s221 = sadd.s32 %s219, %s220
        %s222 = smul.addr %s221, 2
        %s223 = scalar_lea.vmem %s1, %s222
        %p224 = pneg %p76
        %p225 = pneg %p73
        %p226 = pneg %p104
        %p227 = pneg %p101
        %p228 = scmp.lt.s32.totalorder %s17, 1
        %s229 = scalar_select %p228, %s17, 1
        %p230 = scmp.lt.s32.totalorder %s18, 1
        %s231 = scalar_select %p230, %s18, 1
        %s232 = smul.addr %s229, 2
        %s233 = sadd.s32 %s231, %s232
        %s234 = smul.addr %s233, 2
        %s235 = scalar_lea.vmem %s2, %s234
        %p236 = scmp.lt.s32.totalorder %s17, 1
        %s237 = scalar_select %p236, %s17, 1
        %p238 = scmp.lt.s32.totalorder %s18, 1
        %s239 = scalar_select %p238, %s18, 1
        %s240 = smul.addr %s237, 2
        %s241 = sadd.s32 %s239, %s240
        %s242 = smul.addr %s241, 2
        %s243 = scalar_lea.vmem %s1, %s242
        %p244 = scmp.lt.s32.totalorder %s17, 1
        %s245 = scalar_select %p244, %s17, 1
        %p246 = scmp.lt.s32.totalorder %s18, 1
        %s247 = scalar_select %p246, %s18, 1
        %s248 = smul.addr %s245, 2
        %s249 = sadd.s32 %s247, %s248
        %s250 = smul.addr %s249, 2
        %s251 = scalar_lea.vmem %s2, %s250
        %v252 = vld [vmem:[%s243] sm:$0x1]
        %v253 = vld [vmem:[%s243 + $0x1] sm:$0x1]
        %v254 = vfloor.f32 %v252
        %v255 = vsub.f32 %v252, %v254
        %v256 = vfloor.f32 %v253
        %v257 = vsub.f32 %v253, %v256
        %v258 = vld [vmem:[%s206] sm:$0x3]
        %s259 = scalar_lea.vmem %s206, 2 [#allocation2]
        %v260 = vld [vmem:[%s259] sm:$0x3]
        %s261 = scalar_lea.vmem %s206, 4 [#allocation2]
        %v262 = vld [vmem:[%s261] sm:$0x3]
        %s263 = scalar_lea.vmem %s206, 6 [#allocation2]
        %v264 = vld [vmem:[%s263] sm:$0x3]
        %v265 = vsub.f32 %v260, %v258
        %v266 = vlaneseq
        %v267 = vshrl.u32 %v266, 7
        %v268 = vsub.s32 0, %v267
        %v269 = vrot.slane %v257, %v268
        %v270 = vmul.f32 %v269, %v265
        %v271 = vadd.f32 %v258, %v270
        %v272 = vsub.f32 %v264, %v262
        %v273 = vmul.f32 %v269, %v272
        %v274 = vadd.f32 %v262, %v273
        %v275 = vsub.f32 %v274, %v271
        %v276 = vlaneseq
        %v277 = vshrl.u32 %v276, 7
        %v278 = vsub.s32 0, %v277
        %v279 = vrot.slane %v255, %v278
        %v280 = vmul.f32 %v279, %v275
        %v281 = vadd.f32 %v271, %v280
        %282 = vst [vmem:[%s251] sm:$0x3] %v281
        %p283 = scmp.lt.s32.totalorder %s17, 1
        %s284 = scalar_select %p283, %s17, 1
        %p285 = scmp.lt.s32.totalorder %s18, 1
        %s286 = scalar_select %p285, %s18, 1
        %s287 = smul.addr %s284, 2
        %s288 = sadd.s32 %s286, %s287
        %s289 = smul.addr %s288, 2
        %s290 = scalar_lea.vmem %s2, %s289
        // Predicated region
        $region70: #{voxelmorph_forward.30} parent=64 // pred_check
          %p291 = pneg %p101
        $region71: #{voxelmorph_forward.30} parent=64 // pred_check_branch
          %293 = sbr.rel (%p291) target = $region73
        $region72: #{voxelmorph_forward.30} parent=64 // pred_region
          _
        $region73: #{voxelmorph_forward.30} parent=64 // pred_fallthru
          _
      $region65: #{voxelmorph_forward.30} parent=5 // pred_fallthru
        _
      %p294 = scmp.le.s32.totalorder 2, %s8
      // Predicated region
      $region74: #{voxelmorph_forward.30} parent=5 // pred_check
        %p295 = pneg %p294
      $region75: #{voxelmorph_forward.30} parent=5 // pred_check_branch
        %297 = sbr.rel (%p295) target = $region77
      $region76: #{voxelmorph_forward.30} parent=5 // pred_region
        %s298 = ssub.s32 %s8, 2
        // Predicated region
        $region78: #{voxelmorph_forward.30} parent=76 // pred_check
          %p299 = pneg %p107
        $region79: #{voxelmorph_forward.30} parent=76 // pred_check_branch
          %301 = sbr.rel (%p299) target = $region81
        $region80: #{voxelmorph_forward.30} parent=76 // pred_region
          %p302 = scmp.lt.s32.totalorder %s19, 1
          %s303 = scalar_select %p302, %s19, 1
          %p304 = scmp.lt.s32.totalorder %s20, 1
          %s305 = scalar_select %p304, %s20, 1
          %s306 = smul.addr %s303, 2
          %s307 = sadd.s32 %s305, %s306
          %s308 = smul.addr %s307, 2
          %s309 = scalar_lea.vmem %s2, %s308
        $region81: #{voxelmorph_forward.30} parent=76 // pred_fallthru
          _
      $region77: #{voxelmorph_forward.30} parent=5 // pred_fallthru
        _
    $region6: #{voxelmorph_forward.30} parent=1 // loop_footer
      %s12 = sadd.s32 1, %s8
    $region7: #{voxelmorph_forward.30} parent=1 // loop_footer_branch
      %7 = sbr.rel target = $region3
    $region8: #{voxelmorph_forward.30} parent=1 // loop_exit
      _

// kernel: voxelmorph_forward.31
$region0: #{voxelmorph_forward.31}
  #allocation0 [shape = 'u32[]', space=smem, size = 0x4, offset = 0x4, fixed_abs, tag = 'smem constant byte address 0x4 - core index']
  #allocation1 [shape = 'u32[144,128]{1,0:T(1,128)}', space=vmem, size = 0x12000, scoped, tag = 'internal scratch']
  %s0 = inlined_call_operand.vmem [shape: f32[2,4,1,256], index: 0, kind: input, shape index: {}]
  %s1 = inlined_call_operand.vmem [shape: f32[2,2,256], index: 1, kind: input, shape index: {}]
  %s2 = inlined_call_operand.vmem [shape: f32[2,1,256], index: 2, kind: output, shape index: {}]
  %s3 = sld [smem:[#allocation0]]
  $region75: #{voxelmorph_forward.31} parent=0
    _
  %s5 = ssub.s32 1, %s3
  %s6 = scalar_select 0, %s5, %s3
  $region1: #{voxelmorph_forward.31} parent=0
    #allocation2 [shape = 'u8[4096]{0}', space=vmem, size = 0x1000, scoped, tag = 'input window, operand 0']
    loop: start=0, step=1, limit=6
    $region2: #{voxelmorph_forward.31} parent=1 // loop_pre_header
      _
    $region3: #{voxelmorph_forward.31} parent=1 // loop_header
      %s8 = sphi 0, %s12
      %p9 = scmp.ge.s32.totalorder %s8, 6
      %s15 = sphi 0, %s27
      %s16 = sphi 0, %s23
      %s17 = sphi 0, %s15
      %s18 = sphi 0, %s16
      %s19 = sphi 0, %s17
      %s20 = sphi 0, %s18
      %s32 = sphi 0, %s34
      %s35 = sphi 0, %s32
      %s36 = sphi 0, %s35
      %s52 = sphi 0, %s36
      %s60 = sphi 0, %s62
      %s63 = sphi 0, %s60
      %s64 = sphi 0, %s63
      %s80 = sphi 0, %s64
      %s88 = sphi 0, %s90
      %s91 = sphi 0, %s88
      %s92 = sphi 0, %s91
      %s108 = sphi 0, %s92
    $region4: #{voxelmorph_forward.31} parent=1 // loop_header_branch
      %11 = sbr.rel (%p9) target = $region8
    $region5: #{voxelmorph_forward.31} parent=1 // loop_body
      %s13 = ssub.s32 %s8, 1
      %s14 = ssub.s32 %s8, 2
      %s21 = sadd.s32 1, %s16
      %p22 = scmp.ge.s32.totalorder %s21, 2
      %s23 = scalar_select %p22, 0, %s21
      %s24 = sadd.s32 1, %s15
      %s25 = scalar_select %p22, %s24, %s15
      %p26 = scmp.ge.s32.totalorder %s25, 2
      %s27 = scalar_select %p26, 0, %s25
      %s28 = ssub.s32 %s15, %s27
      %s29 = ssub.s32 %s16, %s23
      %s30 = sor.u32 %s28, %s29
      %p31 = scmp.eq.s32.totalorder %s30, 0
      %s33 = sadd.s32 %s32, 1
      %s34 = scalar_select %p31, %s32, %s33
      %p37 = pneg %p31
      %p38 = scmp.eq.s32.totalorder %s8, 3
      %p39 = por %p37, %p38
      %p40 = scmp.ne.s32.totalorder %s32, %s35
      %p41 = scmp.eq.s32.totalorder %s8, 0
      %p42 = por %p40, %p41
      %p43 = scmp.ne.s32.totalorder %s32, %s35
      %p44 = scmp.eq.s32.totalorder %s13, 3
      %p45 = por %p43, %p44
      %p46 = scmp.ne.s32.totalorder %s35, %s36
      %p47 = scmp.eq.s32.totalorder %s13, 0
      %p48 = por %p46, %p47
      %p49 = scmp.ne.s32.totalorder %s35, %s36
      %p50 = scmp.eq.s32.totalorder %s14, 3
      %p51 = por %p49, %p50
      %p53 = scmp.ne.s32.totalorder %s36, %s52
      %p54 = scmp.eq.s32.totalorder %s14, 0
      %p55 = por %p53, %p54
      %s56 = ssub.s32 %s15, %s27
      %s57 = ssub.s32 %s16, %s23
      %s58 = sor.u32 %s56, %s57
      %p59 = scmp.eq.s32.totalorder %s58, 0
      %s61 = sadd.s32 %s60, 1
      %s62 = scalar_select %p59, %s60, %s61
      %p65 = pneg %p59
      %p66 = scmp.eq.s32.totalorder %s8, 3
      %p67 = por %p65, %p66
      %p68 = scmp.ne.s32.totalorder %s60, %s63
      %p69 = scmp.eq.s32.totalorder %s8, 0
      %p70 = por %p68, %p69
      %p71 = scmp.ne.s32.totalorder %s60, %s63
      %p72 = scmp.eq.s32.totalorder %s13, 3
      %p73 = por %p71, %p72
      %p74 = scmp.ne.s32.totalorder %s63, %s64
      %p75 = scmp.eq.s32.totalorder %s13, 0
      %p76 = por %p74, %p75
      %p77 = scmp.ne.s32.totalorder %s63, %s64
      %p78 = scmp.eq.s32.totalorder %s14, 3
      %p79 = por %p77, %p78
      %p81 = scmp.ne.s32.totalorder %s64, %s80
      %p82 = scmp.eq.s32.totalorder %s14, 0
      %p83 = por %p81, %p82
      %s84 = ssub.s32 %s15, %s27
      %s85 = ssub.s32 %s16, %s23
      %s86 = sor.u32 %s84, %s85
      %p87 = scmp.eq.s32.totalorder %s86, 0
      %s89 = sadd.s32 %s88, 1
      %s90 = scalar_select %p87, %s88, %s89
      %p93 = pneg %p87
      %p94 = scmp.eq.s32.totalorder %s8, 3
      %p95 = por %p93, %p94
      %p96 = scmp.ne.s32.totalorder %s88, %s91
      %p97 = scmp.eq.s32.totalorder %s8, 0
      %p98 = por %p96, %p97
      %p99 = scmp.ne.s32.totalorder %s88, %s91
      %p100 = scmp.eq.s32.totalorder %s13, 3
      %p101 = por %p99, %p100
      %p102 = scmp.ne.s32.totalorder %s91, %s92
      %p103 = scmp.eq.s32.totalorder %s13, 0
      %p104 = por %p102, %p103
      %p105 = scmp.ne.s32.totalorder %s91, %s92
      %p106 = scmp.eq.s32.totalorder %s14, 3
      %p107 = por %p105, %p106
      %p109 = scmp.ne.s32.totalorder %s92, %s108
      %p110 = scmp.eq.s32.totalorder %s14, 0
      %p111 = por %p109, %p110
      %p112 = scmp.le.s32.totalorder 1, %s8
      %p113 = scmp.lt.s32.totalorder %s8, 5
      %p114 = pnand %p112, %p113
      %p115 = pneg %p114
      // Predicated region
      $region9: #{voxelmorph_forward.31} parent=5 // pred_check
        _
      $region10: #{voxelmorph_forward.31} parent=5 // pred_check_branch
        %117 = sbr.rel (%p114) target = $region12
      $region11: #{voxelmorph_forward.31} parent=5 // pred_region
        %s118 = ssub.s32 %s8, 1
      $region12: #{voxelmorph_forward.31} parent=5 // pred_fallthru
        _
      %p119 = scmp.lt.s32.totalorder %s8, 4
      // Predicated region
      $region13: #{voxelmorph_forward.31} parent=5 // pred_check
        %p120 = pneg %p119
      $region14: #{voxelmorph_forward.31} parent=5 // pred_check_branch
        %122 = sbr.rel (%p120) target = $region16
      $region15: #{voxelmorph_forward.31} parent=5 // pred_region
        // Predicated region
        $region17: #{voxelmorph_forward.31} parent=15 // pred_check
          %p123 = pneg %p42
        $region18: #{voxelmorph_forward.31} parent=15 // pred_check_branch
          %125 = sbr.rel (%p123) target = $region20
        $region19: #{voxelmorph_forward.31} parent=15 // pred_region
          %s126 = sand.u32 %s32, 1
          %s127 = sand.u32 %s32, 1
          %s128 = smul.addr %s127, 4
          %s129 = scalar_lea.vmem [#allocation2], %s128
          %s130 = smul.addr %s15, 8
          %s131 = sadd.s32 %s16, %s130
          %s132 = scalar_lea.vmem %s0, %s131
          // Predicated region
          $region21: #{voxelmorph_forward.31} parent=19 // pred_check
            _
          $region22: #{voxelmorph_forward.31} parent=19 // pred_check_branch
            %134 = sbr.rel (0) target = $region24
          $region23: #{voxelmorph_forward.31} parent=19 // pred_region
            // Predicated region
            $region25: #{voxelmorph_forward.31} parent=23 // pred_check
              _
            $region26: #{voxelmorph_forward.31} parent=23 // pred_check_branch
              %136 = sbr.rel target = $region28
            $region27: #{voxelmorph_forward.31} parent=23 // pred_region
              // Predicated region
              $region40: #{voxelmorph_forward.31} parent=27 // pred_check
                _
              $region41: #{voxelmorph_forward.31} parent=27 // pred_check_branch
                %157 = sbr.rel (0) target = $region43
              $region42: #{voxelmorph_forward.31} parent=27 // pred_region
                loop: start=0, step=1, limit=1
                $region44: #{voxelmorph_forward.31} parent=42 // loop_pre_header
                  _
                $region45: #{voxelmorph_forward.31} parent=42 // loop_header
                  %s160 = sphi 0, %s164
                  %p161 = scmp.ge.s32.totalorder %s160, 1
                  %s165 = sphi %s132, %s132
                  %s166 = sphi %s129, %s129
                $region46: #{voxelmorph_forward.31} parent=42 // loop_header_branch
                  %163 = sbr.rel (%p161) target = $region50
                $region47: #{voxelmorph_forward.31} parent=42 // loop_body
                  %v167 = vld [vmem:[%s165] sm:$0x1]
                  %168 = vst [vmem:[%s166] sm:$0x1] %v167
                  %v169 = vld [vmem:[%s165 + $0x2] sm:$0x1]
                  %170 = vst [vmem:[%s166 + $0x1] sm:$0x1] %v169
                  %v171 = vld [vmem:[%s165 + $0x4] sm:$0x1]
                  %172 = vst [vmem:[%s166 + $0x2] sm:$0x1] %v171
                  %v173 = vld [vmem:[%s165 + $0x6] sm:$0x1]
                  %174 = vst [vmem:[%s166 + $0x3] sm:$0x1] %v173
                $region48: #{voxelmorph_forward.31} parent=42 // loop_footer
                  %s164 = sadd.s32 1, %s160
                $region49: #{voxelmorph_forward.31} parent=42 // loop_footer_branch
                  %159 = sbr.rel target = $region45
                $region50: #{voxelmorph_forward.31} parent=42 // loop_exit
                  _
              $region43: #{voxelmorph_forward.31} parent=27 // pred_fallthru
                _
            $region28: #{voxelmorph_forward.31} parent=23 // pred_fallthru
              _
            // Predicated region
            $region29: #{voxelmorph_forward.31} parent=23 // pred_check
              _
            $region30: #{voxelmorph_forward.31} parent=23 // pred_check_branch
              %138 = sbr.rel (0) target = $region32
            $region31: #{voxelmorph_forward.31} parent=23 // pred_region
              loop: start=0, step=1, limit=1
              $region33: #{voxelmorph_forward.31} parent=31 // loop_pre_header
                _
              $region34: #{voxelmorph_forward.31} parent=31 // loop_header
                %s141 = sphi 0, %s145
                %p142 = scmp.ge.s32.totalorder %s141, 1
                %s146 = sphi %s132, %s132
                %s147 = sphi %s129, %s129
              $region35: #{voxelmorph_forward.31} parent=31 // loop_header_branch
                %144 = sbr.rel (%p142) target = $region39
              $region36: #{voxelmorph_forward.31} parent=31 // loop_body
                %v148 = vld [vmem:[%s146] sm:$0x1]
                %149 = vst [vmem:[%s147] sm:$0x1] %v148
                %v150 = vld [vmem:[%s146 + $0x2] sm:$0x1]
                %151 = vst [vmem:[%s147 + $0x1] sm:$0x1] %v150
                %v152 = vld [vmem:[%s146 + $0x4] sm:$0x1]
                %153 = vst [vmem:[%s147 + $0x2] sm:$0x1] %v152
                %v154 = vld [vmem:[%s146 + $0x6] sm:$0x1]
                %155 = vst [vmem:[%s147 + $0x3] sm:$0x1] %v154
              $region37: #{voxelmorph_forward.31} parent=31 // loop_footer
                %s145 = sadd.s32 1, %s141
              $region38: #{voxelmorph_forward.31} parent=31 // loop_footer_branch
                %140 = sbr.rel target = $region34
              $region39: #{voxelmorph_forward.31} parent=31 // loop_exit
                _
            $region32: #{voxelmorph_forward.31} parent=23 // pred_fallthru
              _
          $region24: #{voxelmorph_forward.31} parent=19 // pred_fallthru
            _
          %175 = vnop
        $region20: #{voxelmorph_forward.31} parent=15 // pred_fallthru
          _
        // Predicated region
        $region51: #{voxelmorph_forward.31} parent=15 // pred_check
          %p176 = pneg %p70
        $region52: #{voxelmorph_forward.31} parent=15 // pred_check_branch
          %178 = sbr.rel (%p176) target = $region54
        $region53: #{voxelmorph_forward.31} parent=15 // pred_region
          %p179 = scmp.lt.s32.totalorder %s15, 1
          %s180 = scalar_select %p179, %s15, 1
          %p181 = scmp.lt.s32.totalorder %s16, 1
          %s182 = scalar_select %p181, %s16, 1
          %s183 = smul.addr %s180, 2
          %s184 = sadd.s32 %s182, %s183
          %s185 = smul.addr %s184, 2
          %s186 = scalar_lea.vmem %s1, %s185
        $region54: #{voxelmorph_forward.31} parent=15 // pred_fallthru
          _
      $region16: #{voxelmorph_forward.31} parent=5 // pred_fallthru
        _
      %p187 = scmp.le.s32.totalorder 1, %s8
      %p188 = scmp.lt.s32.totalorder %s8, 5
      %p189 = pnand %p187, %p188
      %p190 = pneg %p189
      // Predicated region
      $region55: #{voxelmorph_forward.31} parent=5 // pred_check
        _
      $region56: #{voxelmorph_forward.31} parent=5 // pred_check_branch
        %192 = sbr.rel (%p189) target = $region58
      $region57: #{voxelmorph_forward.31} parent=5 // pred_region
        %s193 = ssub.s32 %s8, 1
        %s194 = sand.u32 %s35, 1
        %s195 = sand.u32 %s35, 1
        %s196 = smul.addr %s195, 4
        %s197 = scalar_lea.vmem [#allocation2], %s196
        // Predicated region
        $region59: #{voxelmorph_forward.31} parent=57 // pred_check
          %p198 = pneg %p48
        $region60: #{voxelmorph_forward.31} parent=57 // pred_check_branch
          %200 = sbr.rel (%p198) target = $region62
        $region61: #{voxelmorph_forward.31} parent=57 // pred_region
          _
        $region62: #{voxelmorph_forward.31} parent=57 // pred_fallthru
          _
        %s201 = sand.u32 %s35, 1
        %s202 = sand.u32 %s35, 1
        %s203 = smul.addr %s202, 4
        %s204 = scalar_lea.vmem [#allocation2], %s203
        %p205 = pneg %p48
        %p206 = pneg %p45
        %p207 = scmp.lt.s32.totalorder %s17, 1
        %s208 = scalar_select %p207, %s17, 1
        %p209 = scmp.lt.s32.totalorder %s18, 1
        %s210 = scalar_select %p209, %s18, 1
        %s211 = smul.addr %s208, 2
        %s212 = sadd.s32 %s210, %s211
        %s213 = smul.addr %s212, 2
        %s214 = scalar_lea.vmem %s1, %s213
        %p215 = pneg %p76
        %p216 = pneg %p73
        %p217 = pneg %p104
        %p218 = pneg %p101
        %p219 = scmp.lt.s32.totalorder %s17, 1
        %s220 = scalar_select %p219, %s17, 1
        %p221 = scmp.lt.s32.totalorder %s18, 1
        %s222 = scalar_select %p221, %s18, 1
        %s223 = smul.addr %s220, 2
        %s224 = sadd.s32 %s222, %s223
        %s225 = scalar_lea.vmem %s2, %s224
        %p226 = scmp.lt.s32.totalorder %s17, 1
        %s227 = scalar_select %p226, %s17, 1
        %p228 = scmp.lt.s32.totalorder %s18, 1
        %s229 = scalar_select %p228, %s18, 1
        %s230 = smul.addr %s227, 2
        %s231 = sadd.s32 %s229, %s230
        %s232 = smul.addr %s231, 2
        %s233 = scalar_lea.vmem %s1, %s232
        %p234 = scmp.lt.s32.totalorder %s17, 1
        %s235 = scalar_select %p234, %s17, 1
        %p236 = scmp.lt.s32.totalorder %s18, 1
        %s237 = scalar_select %p236, %s18, 1
        %s238 = smul.addr %s235, 2
        %s239 = sadd.s32 %s237, %s238
        %s240 = scalar_lea.vmem %s2, %s239
        %v241 = vld [vmem:[%s233] sm:$0x1]
        %v242 = vld [vmem:[%s233 + $0x1] sm:$0x1]
        %v243 = vfloor.f32 %v241
        %v244 = vsub.f32 %v241, %v243
        %v245 = vfloor.f32 %v242
        %v246 = vsub.f32 %v242, %v245
        %v247 = vld [vmem:[%s197] sm:$0x1]
        %s248 = scalar_lea.vmem %s197, 1 [#allocation2]
        %v249 = vld [vmem:[%s248] sm:$0x1]
        %s250 = scalar_lea.vmem %s197, 2 [#allocation2]
        %v251 = vld [vmem:[%s250] sm:$0x1]
        %s252 = scalar_lea.vmem %s197, 3 [#allocation2]
        %v253 = vld [vmem:[%s252] sm:$0x1]
        %v254 = vsub.f32 %v249, %v247
        %v255 = vmul.f32 %v246, %v254
        %v256 = vadd.f32 %v247, %v255
        %v257 = vsub.f32 %v253, %v251
        %v258 = vmul.f32 %v246, %v257
        %v259 = vadd.f32 %v251, %v258
        %v260 = vsub.f32 %v259, %v256
        %v261 = vmul.f32 %v244, %v260
        %v262 = vadd.f32 %v256, %v261
        %263 = vst [vmem:[%s240] sm:$0x1] %v262
        %p264 = scmp.lt.s32.totalorder %s17, 1
        %s265 = scalar_select %p264, %s17, 1
        %p266 = scmp.lt.s32.totalorder %s18, 1
        %s267 = scalar_select %p266, %s18, 1
        %s268 = smul.addr %s265, 2
        %s269 = sadd.s32 %s267, %s268
        %s270 = scalar_lea.vmem %s2, %s269
        // Predicated region
        $region63: #{voxelmorph_forward.31} parent=57 // pred_check
          %p271 = pneg %p101
        $region64: #{voxelmorph_forward.31} parent=57 // pred_check_branch
          %273 = sbr.rel (%p271) target = $region66
        $region65: #{voxelmorph_forward.31} parent=57 // pred_region
          _
        $region66: #{voxelmorph_forward.31} parent=57 // pred_fallthru
          _
      $region58: #{voxelmorph_forward.31} parent=5 // pred_fallthru
        _
      %p274 = scmp.le.s32.totalorder 2, %s8
      // Predicated region
      $region67: #{voxelmorph_forward.31} parent=5 // pred_check
        %p275 = pneg %p274
      $region68: #{voxelmorph_forward.31} parent=5 // pred_check_branch
        %277 = sbr.rel (%p275) target = $region70
      $region69: #{voxelmorph_forward.31} parent=5 // pred_region
        %s278 = ssub.s32 %s8, 2
        // Predicated region
        $region71: #{voxelmorph_forward.31} parent=69 // pred_check
          %p279 = pneg %p107
        $region72: #{voxelmorph_forward.31} parent=69 // pred_check_branch
          %281 = sbr.rel (%p279) target = $region74
        $region73: #{voxelmorph_forward.31} parent=69 // pred_region
          %p282 = scmp.lt.s32.totalorder %s19, 1
          %s283 = scalar_select %p282, %s19, 1
          %p284 = scmp.lt.s32.totalorder %s20, 1
          %s285 = scalar_select %p284, %s20, 1
          %s286 = smul.addr %s283, 2
          %s287 = sadd.s32 %s285, %s286
          %s288 = scalar_lea.vmem %s2, %s287
        $region74: #{voxelmorph_forward.31} parent=69 // pred_fallthru
          _
      $region70: #{voxelmorph_forward.31} parent=5 // pred_fallthru
        _
    $region6: #{voxelmorph_forward.31} parent=1 // loop_footer
      %s12 = sadd.s32 1, %s8
    $region7: #{voxelmorph_forward.31} parent=1 // loop_footer_branch
      %7 = sbr.rel target = $region3
    $region8: #{voxelmorph_forward.31} parent=1 // loop_exit
      _

</llo_original>
